<compile_context>
chip_gen: v6e
topology: v6e:2x2x1
jax: 0.10.0
libtpu: 0.0.40
codegen_flags: <defaults>
</compile_context>

<pallas_src>
import jax
import jax.numpy as jnp
from jax import lax
from jax.experimental import pallas as pl
from jax.experimental.pallas import tpu as pltpu

B = 2                 # batch
L = 4096              # sequence length (fc1 expects 2048 = 64 * (L/128) -> L = 4096)
K = 128               # conv kernel size / stride (non-overlapping patches)
T = L // K            # 32 conv output positions
C_OUT = 64            # conv output channels
F1_IN, F1_OUT = 2048, 1024
F2_OUT = 512
F3_OUT = 2
TK = 1024             # fc1 reduction tile (review item 3: 512 -> 1024)
NEG_SLOPE = 0.01      # nn.LeakyReLU() default negative_slope

_DN = (((1,), (1,)), ((), ()))   # contract dim1 of activations with dim1 of (out,in) weight


def _leaky(x):
    return jnp.where(x > 0, x, NEG_SLOPE * x)


def conv_kernel(xp_ref, wc_ref, bc_ref, out_ref):
    # xp_ref: (B*T, K) f32   -- non-overlapping conv patches (stride == kernel size)
    # wc_ref: (C_OUT, K) bf16
    # bc_ref: (1, C_OUT) f32
    # out:    (B*T, C_OUT) bf16  -- time-major conv activations
    x_b = xp_ref[...].astype(jnp.bfloat16)
    acc = lax.dot_general(x_b, wc_ref[...], _DN, preferred_element_type=jnp.float32)
    out_ref[...] = (acc + bc_ref[...]).astype(out_ref.dtype)


def mlp_kernel(h_ref, w1_ref, b1_ref, w2_ref, b2_ref, w3_ref, b3_ref, out_ref, acc_ref):
    # h_ref:  (B, TK) bf16      -- k-th chunk of the time-major flattened conv activations
    # w1_ref: (F1_OUT, TK) bf16 -- time-major-permuted fc1 weight, streamed over reduction
    # w2_ref: (F2_OUT, F1_OUT) bf16, w3_ref: (F3_OUT, F2_OUT) bf16 -- resident
    k = pl.program_id(0)

    @pl.when(k == 0)
    def _():
        acc_ref[...] = jnp.zeros_like(acc_ref)

    # partial fc1: h_chunk @ w1_chunk^T, f32 accumulation
    acc_ref[...] += lax.dot_general(h_ref[...], w1_ref[...], _DN,
                                    preferred_element_type=jnp.float32)

    @pl.when(k == pl.num_programs(0) - 1)
    def _():
        h1 = _leaky(acc_ref[...] + b1_ref[...])                      # (B, 1024) f32
        # Dropout(p=0.2) is identity in eval mode.
        h2 = _leaky(lax.dot_general(h1.astype(jnp.bfloat16), w2_ref[...], _DN,
                                    preferred_element_type=jnp.float32) + b2_ref[...])
        h3 = _leaky(lax.dot_general(h2.astype(jnp.bfloat16), w3_ref[...], _DN,
                                    preferred_element_type=jnp.float32) + b3_ref[...])
        out_ref[...] = h3.astype(out_ref.dtype)


def prepare_params(params):
    """One-time (outside jit) prep: bf16 weights in native (out,in) layout, f32 biases.

    w1 is column-permuted to time-major so the kernel's flatten (t-major) matches PyTorch's
    channel-major h.view(B,-1):  w1_perm[o, t*C + c] = w1[o, c*T + t].
    """
    wc, bc, w1, b1, w2, b2, w3, b3 = params
    w1_perm = jnp.transpose(w1.reshape(F1_OUT, C_OUT, T), (0, 2, 1)).reshape(F1_OUT, F1_IN)
    return (wc.reshape(C_OUT, K).astype(jnp.bfloat16),
            bc.reshape(1, C_OUT).astype(jnp.float32),
            w1_perm.astype(jnp.bfloat16),
            b1.reshape(1, F1_OUT).astype(jnp.float32),
            w2.astype(jnp.bfloat16), b2.reshape(1, F2_OUT).astype(jnp.float32),
            w3.astype(jnp.bfloat16), b3.reshape(1, F3_OUT).astype(jnp.float32))


def mycnn_forward(x, prep):
    wc_b, bc_r, w1_p, b1_r, w2_b, b2_r, w3_b, b3_r = prep
    Bn = x.shape[0]

    # (B,1,L) -> (B*T, K): free row-major reshape (no relayout); conv = patches @ wc^T
    xp = x.reshape(Bn * T, K)

    conv_out = pl.pallas_call(
        conv_kernel,
        out_shape=jax.ShapeDtypeStruct((Bn * T, C_OUT), jnp.bfloat16),
        grid=(1,),
        in_specs=[
            pl.BlockSpec((Bn * T, K), lambda i: (0, 0)),
            pl.BlockSpec((C_OUT, K), lambda i: (0, 0)),
            pl.BlockSpec((1, C_OUT), lambda i: (0, 0)),
        ],
        out_specs=pl.BlockSpec((Bn * T, C_OUT), lambda i: (0, 0)),
        compiler_params=pltpu.CompilerParams(dimension_semantics=("arbitrary",)),
    )(xp, wc_b, bc_r)

    # time-major flatten: (B*T, C) and (B, T*C) share the same row-major layout -> bitcast
    flat = conv_out.reshape(Bn, F1_IN)

    out = pl.pallas_call(
        mlp_kernel,
        out_shape=jax.ShapeDtypeStruct((Bn, F3_OUT), jnp.float32),
        grid=(F1_IN // TK,),
        in_specs=[
            pl.BlockSpec((Bn, TK), lambda k: (0, k)),          # activations (4 KB/step, hidden)
            pl.BlockSpec((F1_OUT, TK), lambda k: (0, k)),      # w1 streamed over reduction
            pl.BlockSpec((1, F1_OUT), lambda k: (0, 0)),       # b1
            pl.BlockSpec((F2_OUT, F1_OUT), lambda k: (0, 0)),  # w2 (resident)
            pl.BlockSpec((1, F2_OUT), lambda k: (0, 0)),       # b2
            pl.BlockSpec((F3_OUT, F2_OUT), lambda k: (0, 0)),  # w3 (resident)
            pl.BlockSpec((1, F3_OUT), lambda k: (0, 0)),       # b3
        ],
        out_specs=pl.BlockSpec((Bn, F3_OUT), lambda k: (0, 0)),
        scratch_shapes=[pltpu.VMEM((Bn, F1_OUT), jnp.float32)],
        compiler_params=pltpu.CompilerParams(
            dimension_semantics=("arbitrary",),
            vmem_limit_bytes=32 << 20),                        # v7x-safe (64 MiB physical)
    )(flat, w1_p, b1_r, w2_b, b2_r, w3_b, b3_r)
    return out


def mycnn_reference(x, params):
    """Pure-JAX reference mirroring PyTorch structure (channel-major flatten, un-permuted w1)
    at the kernel's precision (bf16 weights/activations, f32 accumulation).  Matching this
    validates the w1 permutation + time-major flatten exactly."""
    wc, bc, w1, b1, w2, b2, w3, b3 = params
    Bn = x.shape[0]
    p = x.reshape(Bn, T, K).astype(jnp.bfloat16)
    conv = jnp.einsum("btk,ck->bct", p, wc.reshape(C_OUT, K).astype(jnp.bfloat16),
                      preferred_element_type=jnp.float32) + bc[None, :, None]
    flat = conv.reshape(Bn, F1_IN).astype(jnp.bfloat16)     # PyTorch h.view(B,-1): channel-major
    h1 = _leaky(lax.dot_general(flat, w1.astype(jnp.bfloat16), _DN,
                                preferred_element_type=jnp.float32) + b1[None, :])
    h2 = _leaky(lax.dot_general(h1.astype(jnp.bfloat16), w2.astype(jnp.bfloat16), _DN,
                                preferred_element_type=jnp.float32) + b2[None, :])
    h3 = _leaky(lax.dot_general(h2.astype(jnp.bfloat16), w3.astype(jnp.bfloat16), _DN,
                                preferred_element_type=jnp.float32) + b3[None, :])
    return h3


def init_params(key):
    ks = jax.random.split(key, 8)
    wc = jax.random.normal(ks[0], (C_OUT, 1, K), jnp.float32) * 0.05   # Conv1d weight (out, in, k)
    bc = jax.random.normal(ks[1], (C_OUT,), jnp.float32) * 0.05
    w1 = jax.random.normal(ks[2], (F1_OUT, F1_IN), jnp.float32) * 0.02  # Linear weight (out, in)
    b1 = jax.random.normal(ks[3], (F1_OUT,), jnp.float32) * 0.02
    w2 = jax.random.normal(ks[4], (F2_OUT, F1_OUT), jnp.float32) * 0.02
    b2 = jax.random.normal(ks[5], (F2_OUT,), jnp.float32) * 0.02
    w3 = jax.random.normal(ks[6], (F3_OUT, F2_OUT), jnp.float32) * 0.02
    b3 = jax.random.normal(ks[7], (F3_OUT,), jnp.float32) * 0.02
    return (wc, bc, w1, b1, w2, b2, w3, b3)


if __name__ == "__main__":
    key = jax.random.PRNGKey(0)
    k_x, k_p = jax.random.split(key)
    x = jax.random.normal(k_x, (B, 1, L), jnp.float32)   # PyTorch NCW input
    params = init_params(k_p)
    prep = prepare_params(params)                        # one-time bf16 prep + w1 column permutation

    out = jax.jit(mycnn_forward)(x, prep)
    out = jax.block_until_ready(out)

    ref = mycnn_reference(x, params)
    assert out.shape == (B, F3_OUT), out.shape
    assert jnp.allclose(out, ref, rtol=2e-3, atol=2e-3), (
        f"max abs err {float(jnp.max(jnp.abs(out - ref)))}")

    print("KERNEL_OK")
</pallas_src>

<mosaic_0001>
module attributes {stable_mosaic.version = 11 : i64} {
  func.func @conv_kernel(%arg0: i32, %arg1: memref<64x128xf32, #tpu.memory_space<vmem>>, %arg2: memref<64x128xbf16, #tpu.memory_space<vmem>>, %arg3: memref<1x64xf32, #tpu.memory_space<vmem>>, %arg4: memref<64x64xbf16, #tpu.memory_space<vmem>>) attributes {dimension_semantics = [#tpu.dimension_semantics<arbitrary>], iteration_bounds = array<i64: 1>, scalar_prefetch = 0 : i64, scratch_operands = 0 : i64, tpu.core_type = #tpu.core_type<tc>, window_params = [{pipeline_mode = #tpu.pipeline_mode<synchronous>, transform_indices = @transform_0, window_bounds = array<i64: 64, 128>}, {pipeline_mode = #tpu.pipeline_mode<synchronous>, transform_indices = @transform_1, window_bounds = array<i64: 64, 128>}, {pipeline_mode = #tpu.pipeline_mode<synchronous>, transform_indices = @transform_2, window_bounds = array<i64: 1, 64>}, {pipeline_mode = #tpu.pipeline_mode<synchronous>, transform_indices = @transform_3, window_bounds = array<i64: 64, 64>}]} {
    %c0 = arith.constant 0 : index
    %c0_0 = arith.constant 0 : index
    %0 = vector.load %arg1[%c0, %c0_0] : memref<64x128xf32, #tpu.memory_space<vmem>>, vector<64x128xf32>
    %1 = arith.truncf %0 : vector<64x128xf32> to vector<64x128xbf16>
    %c0_1 = arith.constant 0 : index
    %c0_2 = arith.constant 0 : index
    %2 = vector.load %arg2[%c0_1, %c0_2] : memref<64x128xbf16, #tpu.memory_space<vmem>>, vector<64x128xbf16>
    %cst = arith.constant dense<0.000000e+00> : vector<64x64xf32>
    %3 = tpu.matmul %1, %2, %cst {dimension_numbers = #tpu.dot_dimension_numbers<[1], [1], [0], [0], [0, 0, 1, 0], [], []>} : vector<64x128xbf16>, vector<64x128xbf16>, vector<64x64xf32> -> vector<64x64xf32>
    %c0_3 = arith.constant 0 : index
    %c0_4 = arith.constant 0 : index
    %4 = vector.load %arg3[%c0_3, %c0_4] : memref<1x64xf32, #tpu.memory_space<vmem>>, vector<1x64xf32>
    %5 = vector.broadcast %4 : vector<1x64xf32> to vector<64x64xf32>
    %6 = arith.addf %3, %5 : vector<64x64xf32>
    %7 = arith.truncf %6 : vector<64x64xf32> to vector<64x64xbf16>
    %c0_5 = arith.constant 0 : index
    %c0_6 = arith.constant 0 : index
    %8 = vector.load %arg4[%c0_5, %c0_6] : memref<64x64xbf16, #tpu.memory_space<vmem>>, vector<64x64xbf16>
    tpu.vector_store %arg4[%c0_5, %c0_6], %7 {strides = array<i32>} : memref<64x64xbf16, #tpu.memory_space<vmem>>, vector<64x64xbf16>,
    return
  }
  func.func @transform_0(%arg0: i32) -> (i32, i32) {
    %c0_i32 = arith.constant 0 : i32
    %c0_i32_0 = arith.constant 0 : i32
    %c0_i32_1 = arith.constant 0 : i32
    return %c0_i32, %c0_i32_0 : i32, i32
  }
  func.func @transform_1(%arg0: i32) -> (i32, i32) {
    %c0_i32 = arith.constant 0 : i32
    %c0_i32_0 = arith.constant 0 : i32
    %c0_i32_1 = arith.constant 0 : i32
    return %c0_i32, %c0_i32_0 : i32, i32
  }
  func.func @transform_2(%arg0: i32) -> (i32, i32) {
    %c0_i32 = arith.constant 0 : i32
    %c0_i32_0 = arith.constant 0 : i32
    %c0_i32_1 = arith.constant 0 : i32
    return %c0_i32, %c0_i32_0 : i32, i32
  }
  func.func @transform_3(%arg0: i32) -> (i32, i32) {
    %c0_i32 = arith.constant 0 : i32
    %c0_i32_0 = arith.constant 0 : i32
    %c0_i32_1 = arith.constant 0 : i32
    return %c0_i32, %c0_i32_0 : i32, i32
  }
}

module attributes {stable_mosaic.version = 11 : i64} {
  func.func @mlp_kernel(%arg0: i32, %arg1: memref<2x1024xbf16, #tpu.memory_space<vmem>>, %arg2: memref<1024x1024xbf16, #tpu.memory_space<vmem>>, %arg3: memref<1x1024xf32, #tpu.memory_space<vmem>>, %arg4: memref<512x1024xbf16, #tpu.memory_space<vmem>>, %arg5: memref<1x512xf32, #tpu.memory_space<vmem>>, %arg6: memref<2x512xbf16, #tpu.memory_space<vmem>>, %arg7: memref<1x2xf32, #tpu.memory_space<vmem>>, %arg8: memref<2x2xf32, #tpu.memory_space<vmem>>, %arg9: memref<2x1024xf32, #tpu.memory_space<vmem>>) attributes {dimension_semantics = [#tpu.dimension_semantics<arbitrary>], iteration_bounds = array<i64: 2>, scalar_prefetch = 0 : i64, scratch_operands = 1 : i64, tpu.core_type = #tpu.core_type<tc>, window_params = [{transform_indices = @transform_0, window_bounds = array<i64: 2, 1024>}, {transform_indices = @transform_1, window_bounds = array<i64: 1024, 1024>}, {pipeline_mode = #tpu.pipeline_mode<synchronous>, transform_indices = @transform_2, window_bounds = array<i64: 1, 1024>}, {pipeline_mode = #tpu.pipeline_mode<synchronous>, transform_indices = @transform_3, window_bounds = array<i64: 512, 1024>}, {pipeline_mode = #tpu.pipeline_mode<synchronous>, transform_indices = @transform_4, window_bounds = array<i64: 1, 512>}, {pipeline_mode = #tpu.pipeline_mode<synchronous>, transform_indices = @transform_5, window_bounds = array<i64: 2, 512>}, {pipeline_mode = #tpu.pipeline_mode<synchronous>, transform_indices = @transform_6, window_bounds = array<i64: 1, 2>}, {pipeline_mode = #tpu.pipeline_mode<synchronous>, transform_indices = @transform_7, window_bounds = array<i64: 2, 2>}]} {
    %c0_i32 = arith.constant 0 : i32
    %0 = arith.cmpi eq, %arg0, %c0_i32 : i32
    %1 = arith.extui %0 : i1 to i32
    %c0_i32_0 = arith.constant 0 : i32
    %2 = arith.cmpi ne, %1, %c0_i32_0 : i32
    scf.if %2 {
      %cst_9 = arith.constant 0.000000e+00 : f32
      %12 = vector.broadcast %cst_9 : f32 to vector<2x1024xf32>
      %c0_10 = arith.constant 0 : index
      %c0_11 = arith.constant 0 : index
      %13 = vector.load %arg9[%c0_10, %c0_11] : memref<2x1024xf32, #tpu.memory_space<vmem>>, vector<2x1024xf32>
      tpu.vector_store %arg9[%c0_10, %c0_11], %12 {strides = array<i32>} : memref<2x1024xf32, #tpu.memory_space<vmem>>, vector<2x1024xf32>,
    } else {
    }
    %c0 = arith.constant 0 : index
    %c0_1 = arith.constant 0 : index
    %3 = vector.load %arg9[%c0, %c0_1] : memref<2x1024xf32, #tpu.memory_space<vmem>>, vector<2x1024xf32>
    %c0_2 = arith.constant 0 : index
    %c0_3 = arith.constant 0 : index
    %4 = vector.load %arg1[%c0_2, %c0_3] : memref<2x1024xbf16, #tpu.memory_space<vmem>>, vector<2x1024xbf16>
    %c0_4 = arith.constant 0 : index
    %c0_5 = arith.constant 0 : index
    %5 = vector.load %arg2[%c0_4, %c0_5] : memref<1024x1024xbf16, #tpu.memory_space<vmem>>, vector<1024x1024xbf16>
    %cst = arith.constant dense<0.000000e+00> : vector<2x1024xf32>
    %6 = tpu.matmul %4, %5, %cst {dimension_numbers = #tpu.dot_dimension_numbers<[1], [1], [0], [0], [0, 0, 1, 0], [], []>} : vector<2x1024xbf16>, vector<1024x1024xbf16>, vector<2x1024xf32> -> vector<2x1024xf32>
    %7 = arith.addf %3, %6 : vector<2x1024xf32>
    %c0_6 = arith.constant 0 : index
    %c0_7 = arith.constant 0 : index
    %8 = vector.load %arg9[%c0_6, %c0_7] : memref<2x1024xf32, #tpu.memory_space<vmem>>, vector<2x1024xf32>
    tpu.vector_store %arg9[%c0_6, %c0_7], %7 {strides = array<i32>} : memref<2x1024xf32, #tpu.memory_space<vmem>>, vector<2x1024xf32>,
    %c1_i32 = arith.constant 1 : i32
    %9 = arith.cmpi eq, %arg0, %c1_i32 : i32
    %10 = arith.extui %9 : i1 to i32
    %c0_i32_8 = arith.constant 0 : i32
    %11 = arith.cmpi ne, %10, %c0_i32_8 : i32
    scf.if %11 {
      %c0_9 = arith.constant 0 : index
      %c0_10 = arith.constant 0 : index
      %12 = vector.load %arg9[%c0_9, %c0_10] : memref<2x1024xf32, #tpu.memory_space<vmem>>, vector<2x1024xf32>
      %c0_11 = arith.constant 0 : index
      %c0_12 = arith.constant 0 : index
      %13 = vector.load %arg3[%c0_11, %c0_12] : memref<1x1024xf32, #tpu.memory_space<vmem>>, vector<1x1024xf32>
      %14 = vector.broadcast %13 : vector<1x1024xf32> to vector<2x1024xf32>
      %15 = arith.addf %12, %14 : vector<2x1024xf32>
      %cst_13 = arith.constant 0.000000e+00 : f32
      %16 = vector.broadcast %cst_13 : f32 to vector<2x1024xf32>
      %17 = arith.cmpf ogt, %15, %16 : vector<2x1024xf32>
      %cst_14 = arith.constant 0.00999999977 : f32
      %18 = vector.broadcast %cst_14 : f32 to vector<2x1024xf32>
      %19 = arith.mulf %18, %15 : vector<2x1024xf32>
      %20 = arith.select %17, %15, %19 : vector<2x1024xi1>, vector<2x1024xf32>
      %21 = arith.truncf %20 : vector<2x1024xf32> to vector<2x1024xbf16>
      %c0_15 = arith.constant 0 : index
      %c0_16 = arith.constant 0 : index
      %22 = vector.load %arg4[%c0_15, %c0_16] : memref<512x1024xbf16, #tpu.memory_space<vmem>>, vector<512x1024xbf16>
      %cst_17 = arith.constant dense<0.000000e+00> : vector<2x512xf32>
      %23 = tpu.matmul %21, %22, %cst_17 {dimension_numbers = #tpu.dot_dimension_numbers<[1], [1], [0], [0], [0, 0, 1, 0], [], []>} : vector<2x1024xbf16>, vector<512x1024xbf16>, vector<2x512xf32> -> vector<2x512xf32>
      %c0_18 = arith.constant 0 : index
      %c0_19 = arith.constant 0 : index
      %24 = vector.load %arg5[%c0_18, %c0_19] : memref<1x512xf32, #tpu.memory_space<vmem>>, vector<1x512xf32>
      %25 = vector.broadcast %24 : vector<1x512xf32> to vector<2x512xf32>
      %26 = arith.addf %23, %25 : vector<2x512xf32>
      %cst_20 = arith.constant 0.000000e+00 : f32
      %27 = vector.broadcast %cst_20 : f32 to vector<2x512xf32>
      %28 = arith.cmpf ogt, %26, %27 : vector<2x512xf32>
      %cst_21 = arith.constant 0.00999999977 : f32
      %29 = vector.broadcast %cst_21 : f32 to vector<2x512xf32>
      %30 = arith.mulf %29, %26 : vector<2x512xf32>
      %31 = arith.select %28, %26, %30 : vector<2x512xi1>, vector<2x512xf32>
      %32 = arith.truncf %31 : vector<2x512xf32> to vector<2x512xbf16>
      %c0_22 = arith.constant 0 : index
      %c0_23 = arith.constant 0 : index
      %33 = vector.load %arg6[%c0_22, %c0_23] : memref<2x512xbf16, #tpu.memory_space<vmem>>, vector<2x512xbf16>
      %cst_24 = arith.constant dense<0.000000e+00> : vector<2x2xf32>
      %34 = tpu.matmul %32, %33, %cst_24 {dimension_numbers = #tpu.dot_dimension_numbers<[1], [1], [0], [0], [0, 0, 1, 0], [], []>} : vector<2x512xbf16>, vector<2x512xbf16>, vector<2x2xf32> -> vector<2x2xf32>
      %c0_25 = arith.constant 0 : index
      %c0_26 = arith.constant 0 : index
      %35 = vector.load %arg7[%c0_25, %c0_26] : memref<1x2xf32, #tpu.memory_space<vmem>>, vector<1x2xf32>
      %36 = vector.broadcast %35 : vector<1x2xf32> to vector<2x2xf32>
      %37 = arith.addf %34, %36 : vector<2x2xf32>
      %cst_27 = arith.constant 0.000000e+00 : f32
      %38 = vector.broadcast %cst_27 : f32 to vector<2x2xf32>
      %39 = arith.cmpf ogt, %37, %38 : vector<2x2xf32>
      %cst_28 = arith.constant 0.00999999977 : f32
      %40 = vector.broadcast %cst_28 : f32 to vector<2x2xf32>
      %41 = arith.mulf %40, %37 : vector<2x2xf32>
      %42 = arith.select %39, %37, %41 : vector<2x2xi1>, vector<2x2xf32>
      %c0_29 = arith.constant 0 : index
      %c0_30 = arith.constant 0 : index
      %43 = vector.load %arg8[%c0_29, %c0_30] : memref<2x2xf32, #tpu.memory_space<vmem>>, vector<2x2xf32>
      tpu.vector_store %arg8[%c0_29, %c0_30], %42 {strides = array<i32>} : memref<2x2xf32, #tpu.memory_space<vmem>>, vector<2x2xf32>,
    } else {
    }
    return
  }
  func.func @transform_0(%arg0: i32) -> (i32, i32) {
    %c0_i32 = arith.constant 0 : i32
    %c0_i32_0 = arith.constant 0 : i32
    return %c0_i32, %arg0 : i32, i32
  }
  func.func @transform_1(%arg0: i32) -> (i32, i32) {
    %c0_i32 = arith.constant 0 : i32
    %c0_i32_0 = arith.constant 0 : i32
    return %c0_i32, %arg0 : i32, i32
  }
  func.func @transform_2(%arg0: i32) -> (i32, i32) {
    %c0_i32 = arith.constant 0 : i32
    %c0_i32_0 = arith.constant 0 : i32
    %c0_i32_1 = arith.constant 0 : i32
    return %c0_i32, %c0_i32_0 : i32, i32
  }
  func.func @transform_3(%arg0: i32) -> (i32, i32) {
    %c0_i32 = arith.constant 0 : i32
    %c0_i32_0 = arith.constant 0 : i32
    %c0_i32_1 = arith.constant 0 : i32
    return %c0_i32, %c0_i32_0 : i32, i32
  }
  func.func @transform_4(%arg0: i32) -> (i32, i32) {
    %c0_i32 = arith.constant 0 : i32
    %c0_i32_0 = arith.constant 0 : i32
    %c0_i32_1 = arith.constant 0 : i32
    return %c0_i32, %c0_i32_0 : i32, i32
  }
  func.func @transform_5(%arg0: i32) -> (i32, i32) {
    %c0_i32 = arith.constant 0 : i32
    %c0_i32_0 = arith.constant 0 : i32
    %c0_i32_1 = arith.constant 0 : i32
    return %c0_i32, %c0_i32_0 : i32, i32
  }
  func.func @transform_6(%arg0: i32) -> (i32, i32) {
    %c0_i32 = arith.constant 0 : i32
    %c0_i32_0 = arith.constant 0 : i32
    %c0_i32_1 = arith.constant 0 : i32
    return %c0_i32, %c0_i32_0 : i32, i32
  }
  func.func @transform_7(%arg0: i32) -> (i32, i32) {
    %c0_i32 = arith.constant 0 : i32
    %c0_i32_0 = arith.constant 0 : i32
    %c0_i32_1 = arith.constant 0 : i32
    return %c0_i32, %c0_i32_0 : i32, i32
  }
}

</mosaic_0001>

<llo_original>
// kernel: mycnn_forward.2
$region0: #{mycnn_forward.2}
  #allocation0 [shape = 'u32[]', space=smem, size = 0x4, offset = 0x4, fixed_abs, tag = 'smem constant byte address 0x4 - core index']
  #allocation1 [shape = 'u32[144,128]{1,0:T(1,128)}', space=vmem, size = 0x12000, scoped, tag = 'internal scratch']
  %s0 = inlined_call_operand.hbm [shape: f32[64,128], index: 0, kind: input, shape index: {}]
  %s1 = inlined_call_operand.hbm [shape: bf16[64,128], index: 1, kind: input, shape index: {}]
  %s2 = inlined_call_operand.hbm [shape: f32[1,64], index: 2, kind: input, shape index: {}]
  %s3 = inlined_call_operand.vmem [shape: bf16[64,64], index: 3, kind: output, shape index: {}]
  %s4 = sld [smem:[#allocation0]]
  $region34: #{mycnn_forward.2} parent=0
    _
  %s6 = ssub.s32 1, %s4
  %s7 = scalar_select 0, %s6, %s4
  $region1: #{mycnn_forward.2} parent=0
    #allocation2 [shape = 'u8[32768]{0}', space=vmem, size = 0x8000, scoped, tag = 'input window, operand 0, single buffered']
    #allocation3 [shape = 's32[1]{0}', space=sflag, size = 0x4, scoped, tag = 'scoped memory for mycnn_forward.2']
    #allocation4 [shape = 'u8[16384]{0}', space=vmem, size = 0x4000, scoped, tag = 'input window, operand 1, single buffered']
    #allocation5 [shape = 's32[1]{0}', space=sflag, size = 0x4, scoped, tag = 'scoped memory for mycnn_forward.2']
    #allocation6 [shape = 'u8[512]{0}', space=vmem, size = 0x400, scoped, tag = 'input window, operand 2, single buffered']
    %8 = vsyncpa [#allocation3], 0
    %9 = vsyncpa [#allocation5], 0
    // Predicated region
    $region2: #{mycnn_forward.2} parent=1 // pred_check
      _
    $region3: #{mycnn_forward.2} parent=1 // pred_check_branch
      %11 = sbr.rel (0) target = $region5
    $region4: #{mycnn_forward.2} parent=1 // pred_region
      %s13 = ssub.s32 1024, 1024
      %14 = vsyncadd [#allocation3], %s13
      %s15 = sshll.u32 [#allocation2], 4
      %s16 = int_to_ptr.vmem [resolvable:$true] %s15
      %21 = dma.hbm_to_vmem [thread:$0]  %s0, 1024, %s16, [#allocation3], 128, 128, 8
    $region5: #{mycnn_forward.2} parent=1 // pred_fallthru
      _
    // Predicated region
    $region6: #{mycnn_forward.2} parent=1 // pred_check
      _
    $region7: #{mycnn_forward.2} parent=1 // pred_check_branch
      %23 = sbr.rel (0) target = $region9
    $region8: #{mycnn_forward.2} parent=1 // pred_region
      %s25 = ssub.s32 512, 512
      %26 = vsyncadd [#allocation5], %s25
      %s27 = sshll.u32 [#allocation4], 4
      %s28 = int_to_ptr.vmem [resolvable:$true] %s27
      %33 = dma.hbm_to_vmem [thread:$0]  %s1, 512, %s28, [#allocation5], 64, 64, 4
    $region9: #{mycnn_forward.2} parent=1 // pred_fallthru
      _
    // Predicated region
    $region10: #{mycnn_forward.2} parent=1 // pred_check
      _
    $region11: #{mycnn_forward.2} parent=1 // pred_check_branch
      %35 = sbr.rel (0) target = $region13
    $region12: #{mycnn_forward.2} parent=1 // pred_region
      %s37 = ssub.s32 16, 16
      %38 = vsyncadd [#allocation5], %s37
      %s40 = sshll.u32 [#allocation6], 4
      %s41 = int_to_ptr.vmem [resolvable:$true] %s40
      %43 = dma.hbm_to_vmem [thread:$0]  %s2, 16, %s41, [#allocation5]
    $region13: #{mycnn_forward.2} parent=1 // pred_fallthru
      _
    // Predicated region
    $region14: #{mycnn_forward.2} parent=1 // pred_check
      _
    $region15: #{mycnn_forward.2} parent=1 // pred_check_branch
      %45 = sbr.rel (0) target = $region17
    $region16: #{mycnn_forward.2} parent=1 // pred_region
      %46 = dma.done [#allocation3], 1024
    $region17: #{mycnn_forward.2} parent=1 // pred_fallthru
      _
    // Predicated region
    $region18: #{mycnn_forward.2} parent=1 // pred_check
      _
    $region19: #{mycnn_forward.2} parent=1 // pred_check_branch
      %48 = sbr.rel (0) target = $region21
    $region20: #{mycnn_forward.2} parent=1 // pred_region
      %49 = dma.done [#allocation5], 512
    $region21: #{mycnn_forward.2} parent=1 // pred_fallthru
      _
    // Predicated region
    $region22: #{mycnn_forward.2} parent=1 // pred_check
      _
    $region23: #{mycnn_forward.2} parent=1 // pred_check_branch
      %51 = sbr.rel (0) target = $region25
    $region24: #{mycnn_forward.2} parent=1 // pred_region
      %52 = dma.done [#allocation5], 16
    $region25: #{mycnn_forward.2} parent=1 // pred_fallthru
      _
    %v54 = vld [vmem:[#allocation2] sm:$0xff]
    %v55 = vld [vmem:[#allocation2 + $0x8] sm:$0xff]
    %v56 = vld [vmem:[#allocation2 + $0x10] sm:$0xff]
    %v57 = vld [vmem:[#allocation2 + $0x18] sm:$0xff]
    %v58 = vld [vmem:[#allocation2 + $0x20] sm:$0xff]
    %v59 = vld [vmem:[#allocation2 + $0x28] sm:$0xff]
    %v60 = vld [vmem:[#allocation2 + $0x30] sm:$0xff]
    %v61 = vld [vmem:[#allocation2 + $0x38] sm:$0xff]
    %v62 = vpack.c.bf16 %v55, %v54
    %v63 = vpack.c.bf16 %v57, %v56
    %v64 = vpack.c.bf16 %v59, %v58
    %v65 = vpack.c.bf16 %v61, %v60
    %v66 = vld [vmem:[#allocation4] sm:$0xf]
    %v67 = vld [vmem:[#allocation4 + $0x4] sm:$0xf]
    %v68 = vld [vmem:[#allocation4 + $0x8] sm:$0xf]
    %v69 = vld [vmem:[#allocation4 + $0xc] sm:$0xf]
    %v70 = vld [vmem:[#allocation4 + $0x10] sm:$0xf]
    %v71 = vld [vmem:[#allocation4 + $0x14] sm:$0xf]
    %v72 = vld [vmem:[#allocation4 + $0x18] sm:$0xf]
    %v73 = vld [vmem:[#allocation4 + $0x1c] sm:$0xf]
    %v74 = vld [vmem:[#allocation6] sm:$0x1]
    %v76 = vlaneseq
    %v77 = vshrl.u32 %v76, 7
    %v78 = vsub.s32 0, %v77
    %v79 = vrot.slane %v74, %v78
    %v89 = vunpack.c.l.b16 %v66
    %v90 = vunpack.c.l.b16 %v67
    %v91 = vunpack.c.l.b16 %v68
    %v92 = vunpack.c.l.b16 %v69
    %v93 = vunpack.c.l.b16 %v70
    %v94 = vunpack.c.l.b16 %v71
    %v95 = vunpack.c.l.b16 %v72
    %v96 = vunpack.c.l.b16 %v73
    %v97 = vpack.c.b16 %v90, %v89
    %v98 = vpack.c.b16 %v92, %v91
    %v99 = vpack.c.b16 %v94, %v93
    %v100 = vpack.c.b16 %v96, %v95
    %105 = vmatprep.subr.bf16.mxu0 0
    %106 = vmatpush1.bf16.xpose.msra.mxu0 0
    %107 = vmatprep.subr.bf16.mxu0 0
    %108 = vmatpush1.bf16.xpose.msra.mxu0 0
    %109 = vmatprep.subr.bf16.mxu0 0
    %110 = vmatpush1.bf16.xpose.msra.mxu0 0
    %111 = vmatprep.subr.bf16.mxu0 0
    %112 = vmatpush1.bf16.xpose.msra.mxu0 0
    %113 = vmatprep.subr.bf16.mxu0 0
    %114 = vmatpush1.bf16.xpose.msra.mxu0 %v100
    %115 = vmatprep.subr.bf16.mxu0 0
    %116 = vmatpush1.bf16.xpose.msra.mxu0 %v99
    %117 = vmatprep.subr.bf16.mxu0 0
    %118 = vmatpush1.bf16.xpose.msra.mxu0 %v98
    %119 = vmatprep.subr.bf16.mxu0 0
    %120 = vmatpush1.bf16.xpose.msra.mxu0 %v97
    %121 = vmatprep.subr.bf16.mxu0 0
    %122 = vmatpush2.bf16.xpose.msra.mxu0 0
    %123 = vmatprep.subr.bf16.mxu0 0
    %124 = vmatpush2.bf16.xpose.msra.mxu0 0
    %125 = vmatprep.subr.bf16.mxu0 0
    %126 = vmatpush2.bf16.xpose.msra.mxu0 0
    %127 = vmatprep.subr.bf16.mxu0 0
    %128 = vmatpush2.bf16.xpose.msra.mxu0 0
    %129 = vmatprep.subr.bf16.mxu0 0
    %130 = vmatpush2.bf16.xpose.msra.mxu0 0
    %131 = vmatprep.subr.bf16.mxu0 0
    %132 = vmatpush2.bf16.xpose.msra.mxu0 0
    %133 = vmatprep.subr.bf16.mxu0 0
    %134 = vmatpush2.bf16.xpose.msra.mxu0 0
    %135 = vmatprep.subr.bf16.mxu0 0
    %136 = vmatpush2.bf16.xpose.msra.mxu0 0
    %137 = vmatprep.mubr.bf16.mxu0 0
    %138 = vmatmul.mubr.bf16.gmra.mxu0 %v62
    %v139 = vpop.f32.mrf.mxu0
    %v140 = vadd.f32 %v79, %v139
    %v141 = vpop.f32.mrf.mxu0
    %v142 = vpop.f32.mrf.mxu0
    %v143 = vadd.f32 %v79, %v142
    %v144 = vpop.f32.mrf.mxu0
    %145 = vmatprep.mubr.bf16.mxu0 0
    %146 = vmatmul.mubr.bf16.gmra.mxu0 %v63
    %v147 = vpop.f32.mrf.mxu0
    %v148 = vadd.f32 %v79, %v147
    %v149 = vpop.f32.mrf.mxu0
    %v150 = vpop.f32.mrf.mxu0
    %v151 = vadd.f32 %v79, %v150
    %v152 = vpop.f32.mrf.mxu0
    %153 = vmatprep.mubr.bf16.mxu0 0
    %154 = vmatmul.mubr.bf16.gmra.mxu0 %v64
    %v155 = vpop.f32.mrf.mxu0
    %v156 = vadd.f32 %v79, %v155
    %v157 = vpop.f32.mrf.mxu0
    %v158 = vpop.f32.mrf.mxu0
    %v159 = vadd.f32 %v79, %v158
    %v160 = vpop.f32.mrf.mxu0
    %161 = vmatprep.mubr.bf16.mxu0 0
    %162 = vmatmul.mubr.bf16.gmra.mxu0 %v65
    %v163 = vpop.f32.mrf.mxu0
    %v164 = vadd.f32 %v79, %v163
    %v165 = vpop.f32.mrf.mxu0
    %v166 = vpop.f32.mrf.mxu0
    %v167 = vadd.f32 %v79, %v166
    %v168 = vpop.f32.mrf.mxu0
    %169 = vdwg.mxu0
    %v170 = vpack.c.bf16 %v143, %v140
    %v171 = vpack.c.bf16 %v151, %v148
    %v172 = vpack.c.bf16 %v159, %v156
    %v173 = vpack.c.bf16 %v167, %v164
    %v178 = vunpack.c.l.b16 %v170
    %v179 = vunpack.c.h.b16 %v170
    %v180 = vunpack.c.l.b16 %v171
    %v181 = vunpack.c.h.b16 %v171
    %v182 = vunpack.c.l.b16 %v172
    %v183 = vunpack.c.h.b16 %v172
    %v184 = vunpack.c.l.b16 %v173
    %v185 = vunpack.c.h.b16 %v173
    %v186 = vpack.c.b16 %v178, %v178
    %v187 = vpack.c.b16 %v179, %v179
    %v188 = vpack.c.b16 %v180, %v180
    %v189 = vpack.c.b16 %v181, %v181
    %v190 = vpack.c.b16 %v182, %v182
    %v191 = vpack.c.b16 %v183, %v183
    %v192 = vpack.c.b16 %v184, %v184
    %v193 = vpack.c.b16 %v185, %v185
    %vm202 = vcmask 519168
    %203 = vst.msk [vmem:[%s3] sm:$0xf] %vm202, %v186
    %204 = vst.msk [vmem:[%s3 + $0x4] sm:$0xf] %vm202, %v187
    %205 = vst.msk [vmem:[%s3 + $0x8] sm:$0xf] %vm202, %v188
    %206 = vst.msk [vmem:[%s3 + $0xc] sm:$0xf] %vm202, %v189
    %207 = vst.msk [vmem:[%s3 + $0x10] sm:$0xf] %vm202, %v190
    %208 = vst.msk [vmem:[%s3 + $0x14] sm:$0xf] %vm202, %v191
    %209 = vst.msk [vmem:[%s3 + $0x18] sm:$0xf] %vm202, %v192
    %210 = vst.msk [vmem:[%s3 + $0x1c] sm:$0xf] %vm202, %v193
    // Predicated region
    $region26: #{mycnn_forward.2} parent=1 // pred_check
      _
    $region27: #{mycnn_forward.2} parent=1 // pred_check_branch
      %212 = sbr.rel (0) target = $region29
    $region28: #{mycnn_forward.2} parent=1 // pred_region
      _
    $region29: #{mycnn_forward.2} parent=1 // pred_fallthru
      _
    // Predicated region
    $region30: #{mycnn_forward.2} parent=1 // pred_check
      _
    $region31: #{mycnn_forward.2} parent=1 // pred_check_branch
      %214 = sbr.rel (0) target = $region33
    $region32: #{mycnn_forward.2} parent=1 // pred_region
      _
    $region33: #{mycnn_forward.2} parent=1 // pred_fallthru
      _
    %215 = vsyncpa [#allocation3], 1
    %216 = vsyncpa [#allocation5], 1

// kernel: mycnn_forward.3
$region0: #{mycnn_forward.3}
  #allocation0 [shape = 'u32[]', space=smem, size = 0x4, offset = 0x4, fixed_abs, tag = 'smem constant byte address 0x4 - core index']
  #allocation1 [shape = 'u32[144,128]{1,0:T(1,128)}', space=vmem, size = 0x12000, scoped, tag = 'internal scratch']
  #allocation2 [shape = 'f32[2,1024]{1,0:T(2,128)}', space=vmem, size = 0x2000, scoped, tag = 'scratch operand']
  %s0 = inlined_call_operand.vmem [shape: bf16[2,2048], index: 0, kind: input, shape index: {}]
  %s1 = inlined_call_operand.hbm [shape: bf16[1024,2048], index: 1, kind: input, shape index: {}]
  %s2 = inlined_call_operand.hbm [shape: f32[1,1024], index: 2, kind: input, shape index: {}]
  %s3 = inlined_call_operand.hbm [shape: bf16[512,1024], index: 3, kind: input, shape index: {}]
  %s4 = inlined_call_operand.hbm [shape: f32[1,512], index: 4, kind: input, shape index: {}]
  %s5 = inlined_call_operand.hbm [shape: bf16[2,512], index: 5, kind: input, shape index: {}]
  %s6 = inlined_call_operand.hbm [shape: f32[1,2], index: 6, kind: input, shape index: {}]
  %s7 = inlined_call_operand.hbm [shape: f32[2,2], index: 7, kind: output, shape index: {}]
  %s8 = sld [smem:[#allocation0]]
  $region93: #{mycnn_forward.3} parent=0
    _
  %s10 = ssub.s32 1, %s8
  %s11 = scalar_select 0, %s10, %s8
  $region1: #{mycnn_forward.3} parent=0
    #allocation3 [shape = 'u8[4194304]{0}', space=vmem, size = 0x400000, scoped, tag = 'input window, operand 1']
    #allocation4 [shape = 's32[2]{0}', space=sflag, size = 0x8, scoped, tag = 'scoped memory for mycnn_forward.3']
    #allocation5 [shape = 's32[2]{0}', space=sflag, size = 0x8, scoped, tag = 'scoped memory for mycnn_forward.3']
    #allocation6 [shape = 'u8[4096]{0}', space=vmem, size = 0x1000, scoped, tag = 'input window, operand 2, single buffered']
    #allocation7 [shape = 's32[1]{0}', space=sflag, size = 0x4, scoped, tag = 'scoped memory for mycnn_forward.3']
    #allocation8 [shape = 'u8[1048576]{0}', space=vmem, size = 0x100000, scoped, tag = 'input window, operand 3, single buffered']
    #allocation9 [shape = 'u8[2048]{0}', space=vmem, size = 0x800, scoped, tag = 'input window, operand 4, single buffered']
    #allocation10 [shape = 's32[1]{0}', space=sflag, size = 0x4, scoped, tag = 'scoped memory for mycnn_forward.3']
    #allocation11 [shape = 'u8[2048]{0}', space=vmem, size = 0x800, scoped, tag = 'input window, operand 5, single buffered']
    #allocation12 [shape = 'u8[512]{0}', space=vmem, size = 0x400, scoped, tag = 'input window, operand 6, single buffered']
    #allocation13 [shape = 's32[1]{0}', space=sflag, size = 0x4, scoped, tag = 'scoped memory for mycnn_forward.3']
    #allocation14 [shape = 'u8[1024]{0}', space=vmem, size = 0x400, scoped, tag = 'output window, operand 0, single buffered']
    %12 = vsyncpa [#allocation4], 0
    %s13 = scalar_lea.sflag [#allocation4], 1
    %14 = vsyncpa %s13, 0
    %15 = vsyncpa [#allocation7], 0
    %16 = vsyncpa [#allocation10], 0
    %17 = vsyncpa [#allocation13], 0
    %18 = vsyncpa [#allocation5], 0
    loop: start=0, step=1, limit=4
    $region2: #{mycnn_forward.3} parent=1 // loop_pre_header
      _
    $region3: #{mycnn_forward.3} parent=1 // loop_header
      %s20 = sphi 0, %s24
      %p21 = scmp.ge.s32.totalorder %s20, 4
      %s30 = sphi 0, %s32
      %s33 = sphi 0, %s30
      %s34 = sphi 0, %s33
      %s50 = sphi 0, %s34
      %s56 = sphi 0, %s58
      %s59 = sphi 0, %s56
      %s60 = sphi 0, %s59
      %s76 = sphi 0, %s60
      %s80 = sphi 0, %s80
      %s82 = sphi 0, %s80
      %s83 = sphi 0, %s82
      %s97 = sphi 0, %s83
      %s101 = sphi 0, %s101
      %s103 = sphi 0, %s101
      %s104 = sphi 0, %s103
      %s118 = sphi 0, %s104
      %s122 = sphi 0, %s122
      %s124 = sphi 0, %s122
      %s125 = sphi 0, %s124
      %s139 = sphi 0, %s125
      %s143 = sphi 0, %s143
      %s145 = sphi 0, %s143
      %s146 = sphi 0, %s145
      %s160 = sphi 0, %s146
      %s164 = sphi 0, %s164
      %s166 = sphi 0, %s164
      %s167 = sphi 0, %s166
      %s181 = sphi 0, %s167
      %s185 = sphi 0, %s185
      %s187 = sphi 0, %s185
      %s188 = sphi 0, %s187
      %s202 = sphi 0, %s188
    $region4: #{mycnn_forward.3} parent=1 // loop_header_branch
      %23 = sbr.rel (%p21) target = $region8
    $region5: #{mycnn_forward.3} parent=1 // loop_body
      %s25 = ssub.s32 %s20, 1
      %s26 = ssub.s32 %s20, 2
      %s27 = sadd.s32 %s20, 1
      %s28 = ssub.s32 %s20, %s27
      %p29 = scmp.eq.s32.totalorder %s28, 0
      %s31 = sadd.s32 %s30, 1
      %s32 = scalar_select %p29, %s30, %s31
      %p35 = pneg %p29
      %p36 = scmp.eq.s32.totalorder %s20, 1
      %p37 = por %p35, %p36
      %p38 = scmp.ne.s32.totalorder %s30, %s33
      %p39 = scmp.eq.s32.totalorder %s20, 0
      %p40 = por %p38, %p39
      %p41 = scmp.ne.s32.totalorder %s30, %s33
      %p42 = scmp.eq.s32.totalorder %s25, 1
      %p43 = por %p41, %p42
      %p44 = scmp.ne.s32.totalorder %s33, %s34
      %p45 = scmp.eq.s32.totalorder %s25, 0
      %p46 = por %p44, %p45
      %p47 = scmp.ne.s32.totalorder %s33, %s34
      %p48 = scmp.eq.s32.totalorder %s26, 1
      %p49 = por %p47, %p48
      %p51 = scmp.ne.s32.totalorder %s34, %s50
      %p52 = scmp.eq.s32.totalorder %s26, 0
      %p53 = por %p51, %p52
      %s54 = ssub.s32 %s20, %s27
      %p55 = scmp.eq.s32.totalorder %s54, 0
      %s57 = sadd.s32 %s56, 1
      %s58 = scalar_select %p55, %s56, %s57
      %p61 = pneg %p55
      %p62 = scmp.eq.s32.totalorder %s20, 1
      %p63 = por %p61, %p62
      %p64 = scmp.ne.s32.totalorder %s56, %s59
      %p65 = scmp.eq.s32.totalorder %s20, 0
      %p66 = por %p64, %p65
      %p67 = scmp.ne.s32.totalorder %s56, %s59
      %p68 = scmp.eq.s32.totalorder %s25, 1
      %p69 = por %p67, %p68
      %p70 = scmp.ne.s32.totalorder %s59, %s60
      %p71 = scmp.eq.s32.totalorder %s25, 0
      %p72 = por %p70, %p71
      %p73 = scmp.ne.s32.totalorder %s59, %s60
      %p74 = scmp.eq.s32.totalorder %s26, 1
      %p75 = por %p73, %p74
      %p77 = scmp.ne.s32.totalorder %s60, %s76
      %p78 = scmp.eq.s32.totalorder %s26, 0
      %p79 = por %p77, %p78
      %s81 = sadd.s32 %s80, 1
      %p84 = scmp.eq.s32.totalorder %s20, 1
      %p85 = scmp.ne.s32.totalorder %s80, %s82
      %p86 = scmp.eq.s32.totalorder %s20, 0
      %p87 = por %p85, %p86
      %p88 = scmp.ne.s32.totalorder %s80, %s82
      %p89 = scmp.eq.s32.totalorder %s25, 1
      %p90 = por %p88, %p89
      %p91 = scmp.ne.s32.totalorder %s82, %s83
      %p92 = scmp.eq.s32.totalorder %s25, 0
      %p93 = por %p91, %p92
      %p94 = scmp.ne.s32.totalorder %s82, %s83
      %p95 = scmp.eq.s32.totalorder %s26, 1
      %p96 = por %p94, %p95
      %p98 = scmp.ne.s32.totalorder %s83, %s97
      %p99 = scmp.eq.s32.totalorder %s26, 0
      %p100 = por %p98, %p99
      %s102 = sadd.s32 %s101, 1
      %p105 = scmp.eq.s32.totalorder %s20, 1
      %p106 = scmp.ne.s32.totalorder %s101, %s103
      %p107 = scmp.eq.s32.totalorder %s20, 0
      %p108 = por %p106, %p107
      %p109 = scmp.ne.s32.totalorder %s101, %s103
      %p110 = scmp.eq.s32.totalorder %s25, 1
      %p111 = por %p109, %p110
      %p112 = scmp.ne.s32.totalorder %s103, %s104
      %p113 = scmp.eq.s32.totalorder %s25, 0
      %p114 = por %p112, %p113
      %p115 = scmp.ne.s32.totalorder %s103, %s104
      %p116 = scmp.eq.s32.totalorder %s26, 1
      %p117 = por %p115, %p116
      %p119 = scmp.ne.s32.totalorder %s104, %s118
      %p120 = scmp.eq.s32.totalorder %s26, 0
      %p121 = por %p119, %p120
      %s123 = sadd.s32 %s122, 1
      %p126 = scmp.eq.s32.totalorder %s20, 1
      %p127 = scmp.ne.s32.totalorder %s122, %s124
      %p128 = scmp.eq.s32.totalorder %s20, 0
      %p129 = por %p127, %p128
      %p130 = scmp.ne.s32.totalorder %s122, %s124
      %p131 = scmp.eq.s32.totalorder %s25, 1
      %p132 = por %p130, %p131
      %p133 = scmp.ne.s32.totalorder %s124, %s125
      %p134 = scmp.eq.s32.totalorder %s25, 0
      %p135 = por %p133, %p134
      %p136 = scmp.ne.s32.totalorder %s124, %s125
      %p137 = scmp.eq.s32.totalorder %s26, 1
      %p138 = por %p136, %p137
      %p140 = scmp.ne.s32.totalorder %s125, %s139
      %p141 = scmp.eq.s32.totalorder %s26, 0
      %p142 = por %p140, %p141
      %s144 = sadd.s32 %s143, 1
      %p147 = scmp.eq.s32.totalorder %s20, 1
      %p148 = scmp.ne.s32.totalorder %s143, %s145
      %p149 = scmp.eq.s32.totalorder %s20, 0
      %p150 = por %p148, %p149
      %p151 = scmp.ne.s32.totalorder %s143, %s145
      %p152 = scmp.eq.s32.totalorder %s25, 1
      %p153 = por %p151, %p152
      %p154 = scmp.ne.s32.totalorder %s145, %s146
      %p155 = scmp.eq.s32.totalorder %s25, 0
      %p156 = por %p154, %p155
      %p157 = scmp.ne.s32.totalorder %s145, %s146
      %p158 = scmp.eq.s32.totalorder %s26, 1
      %p159 = por %p157, %p158
      %p161 = scmp.ne.s32.totalorder %s146, %s160
      %p162 = scmp.eq.s32.totalorder %s26, 0
      %p163 = por %p161, %p162
      %s165 = sadd.s32 %s164, 1
      %p168 = scmp.eq.s32.totalorder %s20, 1
      %p169 = scmp.ne.s32.totalorder %s164, %s166
      %p170 = scmp.eq.s32.totalorder %s20, 0
      %p171 = por %p169, %p170
      %p172 = scmp.ne.s32.totalorder %s164, %s166
      %p173 = scmp.eq.s32.totalorder %s25, 1
      %p174 = por %p172, %p173
      %p175 = scmp.ne.s32.totalorder %s166, %s167
      %p176 = scmp.eq.s32.totalorder %s25, 0
      %p177 = por %p175, %p176
      %p178 = scmp.ne.s32.totalorder %s166, %s167
      %p179 = scmp.eq.s32.totalorder %s26, 1
      %p180 = por %p178, %p179
      %p182 = scmp.ne.s32.totalorder %s167, %s181
      %p183 = scmp.eq.s32.totalorder %s26, 0
      %p184 = por %p182, %p183
      %s186 = sadd.s32 %s185, 1
      %p189 = scmp.eq.s32.totalorder %s20, 1
      %p190 = scmp.ne.s32.totalorder %s185, %s187
      %p191 = scmp.eq.s32.totalorder %s20, 0
      %p192 = por %p190, %p191
      %p193 = scmp.ne.s32.totalorder %s185, %s187
      %p194 = scmp.eq.s32.totalorder %s25, 1
      %p195 = por %p193, %p194
      %p196 = scmp.ne.s32.totalorder %s187, %s188
      %p197 = scmp.eq.s32.totalorder %s25, 0
      %p198 = por %p196, %p197
      %p199 = scmp.ne.s32.totalorder %s187, %s188
      %p200 = scmp.eq.s32.totalorder %s26, 1
      %p201 = por %p199, %p200
      %p203 = scmp.ne.s32.totalorder %s188, %s202
      %p204 = scmp.eq.s32.totalorder %s26, 0
      %p205 = por %p203, %p204
      %p206 = scmp.le.s32.totalorder 1, %s20
      %p207 = scmp.lt.s32.totalorder %s20, 3
      %p208 = pnand %p206, %p207
      %p209 = pneg %p208
      // Predicated region
      $region9: #{mycnn_forward.3} parent=5 // pred_check
        _
      $region10: #{mycnn_forward.3} parent=5 // pred_check_branch
        %211 = sbr.rel (%p208) target = $region12
      $region11: #{mycnn_forward.3} parent=5 // pred_region
        %s212 = ssub.s32 %s20, 1
        // Predicated region
        $region13: #{mycnn_forward.3} parent=11 // pred_check
          %p213 = pneg %p93
        $region14: #{mycnn_forward.3} parent=11 // pred_check_branch
          %215 = sbr.rel (%p213) target = $region16
        $region15: #{mycnn_forward.3} parent=11 // pred_region
          %s217 = ssub.s32 128, 128
          %218 = vsyncadd [#allocation7], %s217
          %s220 = sshll.u32 [#allocation6], 4
          %s221 = int_to_ptr.vmem [resolvable:$true] %s220
          %223 = dma.hbm_to_vmem [thread:$0]  %s2, 128, %s221, [#allocation7]
        $region16: #{mycnn_forward.3} parent=11 // pred_fallthru
          _
        // Predicated region
        $region17: #{mycnn_forward.3} parent=11 // pred_check
          %p224 = pneg %p114
        $region18: #{mycnn_forward.3} parent=11 // pred_check_branch
          %226 = sbr.rel (%p224) target = $region20
        $region19: #{mycnn_forward.3} parent=11 // pred_region
          %s228 = ssub.s32 32768, 32768
          %229 = vsyncadd [#allocation7], %s228
          %s230 = sshll.u32 [#allocation8], 4
          %s231 = int_to_ptr.vmem [resolvable:$true] %s230
          %236 = dma.hbm_to_vmem [thread:$0]  %s3, 32768, %s231, [#allocation7], 512, 512, 32
        $region20: #{mycnn_forward.3} parent=11 // pred_fallthru
          _
        // Predicated region
        $region21: #{mycnn_forward.3} parent=11 // pred_check
          %p237 = pneg %p135
        $region22: #{mycnn_forward.3} parent=11 // pred_check_branch
          %239 = sbr.rel (%p237) target = $region24
        $region23: #{mycnn_forward.3} parent=11 // pred_region
          %s241 = ssub.s32 64, 64
          %242 = vsyncadd [#allocation10], %s241
          %s244 = sshll.u32 [#allocation9], 4
          %s245 = int_to_ptr.vmem [resolvable:$true] %s244
          %247 = dma.hbm_to_vmem [thread:$0]  %s4, 64, %s245, [#allocation10]
        $region24: #{mycnn_forward.3} parent=11 // pred_fallthru
          _
        // Predicated region
        $region25: #{mycnn_forward.3} parent=11 // pred_check
          %p248 = pneg %p156
        $region26: #{mycnn_forward.3} parent=11 // pred_check_branch
          %250 = sbr.rel (%p248) target = $region28
        $region27: #{mycnn_forward.3} parent=11 // pred_region
          %s252 = ssub.s32 64, 64
          %253 = vsyncadd [#allocation10], %s252
          %s255 = sshll.u32 [#allocation11], 4
          %s256 = int_to_ptr.vmem [resolvable:$true] %s255
          %258 = dma.hbm_to_vmem [thread:$0]  %s5, 64, %s256, [#allocation10]
        $region28: #{mycnn_forward.3} parent=11 // pred_fallthru
          _
        // Predicated region
        $region29: #{mycnn_forward.3} parent=11 // pred_check
          %p259 = pneg %p177
        $region30: #{mycnn_forward.3} parent=11 // pred_check_branch
          %261 = sbr.rel (%p259) target = $region32
        $region31: #{mycnn_forward.3} parent=11 // pred_region
          %s263 = ssub.s32 16, 16
          %264 = vsyncadd [#allocation13], %s263
          %s266 = sshll.u32 [#allocation12], 4
          %s267 = int_to_ptr.vmem [resolvable:$true] %s266
          %269 = dma.hbm_to_vmem [thread:$0]  %s6, 16, %s267, [#allocation13]
        $region32: #{mycnn_forward.3} parent=11 // pred_fallthru
          _
      $region12: #{mycnn_forward.3} parent=5 // pred_fallthru
        _
      %p270 = scmp.lt.s32.totalorder %s20, 2
      // Predicated region
      $region33: #{mycnn_forward.3} parent=5 // pred_check
        %p271 = pneg %p270
      $region34: #{mycnn_forward.3} parent=5 // pred_check_branch
        %273 = sbr.rel (%p271) target = $region36
      $region35: #{mycnn_forward.3} parent=5 // pred_region
        // Predicated region
        $region37: #{mycnn_forward.3} parent=35 // pred_check
          %p274 = pneg %p40
        $region38: #{mycnn_forward.3} parent=35 // pred_check_branch
          %276 = sbr.rel (%p274) target = $region40
        $region39: #{mycnn_forward.3} parent=35 // pred_region
          %s277 = smul.u32 8, %s20
          %p278 = scmp.lt.s32.totalorder %s277, 15
          %s279 = scalar_select %p278, %s277, 15
          %s280 = scalar_lea.vmem %s0, %s279
          %s281 = smul.u32 8, %s20
        $region40: #{mycnn_forward.3} parent=35 // pred_fallthru
          _
        // Predicated region
        $region41: #{mycnn_forward.3} parent=35 // pred_check
          %p282 = pneg %p66
        $region42: #{mycnn_forward.3} parent=35 // pred_check_branch
          %284 = sbr.rel (%p282) target = $region44
        $region43: #{mycnn_forward.3} parent=35 // pred_region
          %s285 = sand.u32 %s56, 1
          %s286 = scalar_lea.sflag [#allocation4], %s285
          %s287 = sand.u32 %s56, 1
          %s288 = smul.addr %s287, 4096
          %s289 = scalar_lea.vmem [#allocation3], %s288
          %s290 = smul.u32 8, %s20
          %s292 = ssub.s32 65536, 65536
          %293 = vsyncadd %s286, %s292
          %s294 = smul.addr %s290, 64
          %s295 = scalar_lea.hbm %s1, %s294
          %s296 = sshll.u32 %s289, 4
          %s297 = int_to_ptr.vmem [resolvable:$true] %s296
          %302 = dma.hbm_to_vmem [thread:$0]  %s295, 65536, %s297, %s286, 1024, 512, 32
        $region44: #{mycnn_forward.3} parent=35 // pred_fallthru
          _
      $region36: #{mycnn_forward.3} parent=5 // pred_fallthru
        _
      %p303 = scmp.le.s32.totalorder 1, %s20
      %p304 = scmp.lt.s32.totalorder %s20, 3
      %p305 = pnand %p303, %p304
      %p306 = pneg %p305
      // Predicated region
      $region45: #{mycnn_forward.3} parent=5 // pred_check
        _
      $region46: #{mycnn_forward.3} parent=5 // pred_check_branch
        %308 = sbr.rel (%p305) target = $region48
      $region47: #{mycnn_forward.3} parent=5 // pred_region
        %s309 = ssub.s32 %s20, 1
        %s310 = sand.u32 %s59, 1
        %s311 = scalar_lea.sflag [#allocation4], %s310
        %s312 = sand.u32 %s59, 1
        %s313 = smul.addr %s312, 4096
        %s314 = scalar_lea.vmem [#allocation3], %s313
        // Predicated region
        $region49: #{mycnn_forward.3} parent=47 // pred_check
          %p315 = pneg %p72
        $region50: #{mycnn_forward.3} parent=47 // pred_check_branch
          %317 = sbr.rel (%p315) target = $region52
        $region51: #{mycnn_forward.3} parent=47 // pred_region
          %318 = dma.done %s311, 65536
        $region52: #{mycnn_forward.3} parent=47 // pred_fallthru
          _
        // Predicated region
        $region53: #{mycnn_forward.3} parent=47 // pred_check
          %p319 = pneg %p93
        $region54: #{mycnn_forward.3} parent=47 // pred_check_branch
          %321 = sbr.rel (%p319) target = $region56
        $region55: #{mycnn_forward.3} parent=47 // pred_region
          %322 = dma.done [#allocation7], 128
        $region56: #{mycnn_forward.3} parent=47 // pred_fallthru
          _
        // Predicated region
        $region57: #{mycnn_forward.3} parent=47 // pred_check
          %p323 = pneg %p114
        $region58: #{mycnn_forward.3} parent=47 // pred_check_branch
          %325 = sbr.rel (%p323) target = $region60
        $region59: #{mycnn_forward.3} parent=47 // pred_region
          %326 = dma.done [#allocation7], 32768
        $region60: #{mycnn_forward.3} parent=47 // pred_fallthru
          _
        // Predicated region
        $region61: #{mycnn_forward.3} parent=47 // pred_check
          %p327 = pneg %p135
        $region62: #{mycnn_forward.3} parent=47 // pred_check_branch
          %329 = sbr.rel (%p327) target = $region64
        $region63: #{mycnn_forward.3} parent=47 // pred_region
          %330 = dma.done [#allocation10], 64
        $region64: #{mycnn_forward.3} parent=47 // pred_fallthru
          _
        // Predicated region
        $region65: #{mycnn_forward.3} parent=47 // pred_check
          %p331 = pneg %p156
        $region66: #{mycnn_forward.3} parent=47 // pred_check_branch
          %333 = sbr.rel (%p331) target = $region68
        $region67: #{mycnn_forward.3} parent=47 // pred_region
          %334 = dma.done [#allocation10], 64
        $region68: #{mycnn_forward.3} parent=47 // pred_fallthru
          _
        // Predicated region
        $region69: #{mycnn_forward.3} parent=47 // pred_check
          %p335 = pneg %p177
        $region70: #{mycnn_forward.3} parent=47 // pred_check_branch
          %337 = sbr.rel (%p335) target = $region72
        $region71: #{mycnn_forward.3} parent=47 // pred_region
          %338 = dma.done [#allocation13], 16
        $region72: #{mycnn_forward.3} parent=47 // pred_fallthru
          _
        %s339 = smul.u32 8, %s25
        %p340 = scmp.lt.s32.totalorder %s339, 15
        %s341 = scalar_select %p340, %s339, 15
        %s342 = scalar_lea.vmem %s0, %s341
        %p343 = pneg %p46
        %p344 = pneg %p43
        %s345 = sand.u32 %s59, 1
        %s346 = scalar_lea.sflag [#allocation4], %s345
        %s347 = sand.u32 %s59, 1
        %s348 = smul.addr %s347, 4096
        %s349 = scalar_lea.vmem [#allocation3], %s348
        %p350 = pneg %p72
        %p351 = pneg %p69
        %p352 = pneg %p93
        %p353 = pneg %p90
        %p354 = pneg %p114
        %p355 = pneg %p111
        %p356 = pneg %p135
        %p357 = pneg %p132
        %p358 = pneg %p156
        %p359 = pneg %p153
        %p360 = pneg %p177
        %p361 = pneg %p174
        %p362 = pneg %p198
        %p363 = pneg %p195
        %s364 = smul.u32 8, %s25
        %p365 = scmp.lt.s32.totalorder %s364, 15
        %s366 = scalar_select %p365, %s364, 15
        %s367 = scalar_lea.vmem %s0, %s366
        %s368 = smul.u32 8, %s25
        %s369 = smul.u32 8, %s25
        %p371 = scmp.eq.s32.totalorder %s25, 0
        // Predicated region
        $region73: #{mycnn_forward.3} parent=47 // pred_check
          %p372 = pneg %p371
        $region74: #{mycnn_forward.3} parent=47 // pred_check_branch
          %374 = sbr.rel (%p372) target = $region76
        $region75: #{mycnn_forward.3} parent=47 // pred_region
          %375 = vst [vmem:[#allocation2] sm:$0xff] 0.0
          %376 = vst [vmem:[#allocation2 + $0x8] sm:$0xff] 0.0
        $region76: #{mycnn_forward.3} parent=47 // pred_fallthru
          _
        %v377 = vld [vmem:[#allocation2] sm:$0xff]
        %v378 = vld [vmem:[#allocation2 + $0x8] sm:$0xff]
        %v379 = vld [vmem:[%s367] sm:$0xff]
        %v380 = vld [vmem:[%s314] sm:$0xff]
        %v381 = vld [vmem:[%s314 + $0x8] sm:$0xff]
        %v382 = vld [vmem:[%s314 + $0x10] sm:$0xff]
        %v383 = vld [vmem:[%s314 + $0x18] sm:$0xff]
        %v384 = vld [vmem:[%s314 + $0x20] sm:$0xff]
        %v385 = vld [vmem:[%s314 + $0x28] sm:$0xff]
        %v386 = vld [vmem:[%s314 + $0x30] sm:$0xff]
        %v387 = vld [vmem:[%s314 + $0x38] sm:$0xff]
        %v388 = vld [vmem:[%s314 + $0x40] sm:$0xff]
        %v389 = vld [vmem:[%s314 + $0x48] sm:$0xff]
        %v390 = vld [vmem:[%s314 + $0x50] sm:$0xff]
        %v391 = vld [vmem:[%s314 + $0x58] sm:$0xff]
        %v392 = vld [vmem:[%s314 + $0x60] sm:$0xff]
        %v393 = vld [vmem:[%s314 + $0x68] sm:$0xff]
        %v394 = vld [vmem:[%s314 + $0x70] sm:$0xff]
        %v395 = vld [vmem:[%s314 + $0x78] sm:$0xff]
        %v396 = vld [vmem:[%s314 + $0x80] sm:$0xff]
        %v397 = vld [vmem:[%s314 + $0x88] sm:$0xff]
        %v398 = vld [vmem:[%s314 + $0x90] sm:$0xff]
        %v399 = vld [vmem:[%s314 + $0x98] sm:$0xff]
        %v400 = vld [vmem:[%s314 + $0xa0] sm:$0xff]
        %v401 = vld [vmem:[%s314 + $0xa8] sm:$0xff]
        %v402 = vld [vmem:[%s314 + $0xb0] sm:$0xff]
        %v403 = vld [vmem:[%s314 + $0xb8] sm:$0xff]
        %v404 = vld [vmem:[%s314 + $0xc0] sm:$0xff]
        %v405 = vld [vmem:[%s314 + $0xc8] sm:$0xff]
        %v406 = vld [vmem:[%s314 + $0xd0] sm:$0xff]
        %v407 = vld [vmem:[%s314 + $0xd8] sm:$0xff]
        %v408 = vld [vmem:[%s314 + $0xe0] sm:$0xff]
        %v409 = vld [vmem:[%s314 + $0xe8] sm:$0xff]
        %v410 = vld [vmem:[%s314 + $0xf0] sm:$0xff]
        %v411 = vld [vmem:[%s314 + $0xf8] sm:$0xff]
        %v412 = vld [vmem:[%s314 + $0x100] sm:$0xff]
        %v413 = vld [vmem:[%s314 + $0x108] sm:$0xff]
        %v414 = vld [vmem:[%s314 + $0x110] sm:$0xff]
        %v415 = vld [vmem:[%s314 + $0x118] sm:$0xff]
        %v416 = vld [vmem:[%s314 + $0x120] sm:$0xff]
        %v417 = vld [vmem:[%s314 + $0x128] sm:$0xff]
        %v418 = vld [vmem:[%s314 + $0x130] sm:$0xff]
        %v419 = vld [vmem:[%s314 + $0x138] sm:$0xff]
        %v420 = vld [vmem:[%s314 + $0x140] sm:$0xff]
        %v421 = vld [vmem:[%s314 + $0x148] sm:$0xff]
        %v422 = vld [vmem:[%s314 + $0x150] sm:$0xff]
        %v423 = vld [vmem:[%s314 + $0x158] sm:$0xff]
        %v424 = vld [vmem:[%s314 + $0x160] sm:$0xff]
        %v425 = vld [vmem:[%s314 + $0x168] sm:$0xff]
        %v426 = vld [vmem:[%s314 + $0x170] sm:$0xff]
        %v427 = vld [vmem:[%s314 + $0x178] sm:$0xff]
        %v428 = vld [vmem:[%s314 + $0x180] sm:$0xff]
        %v429 = vld [vmem:[%s314 + $0x188] sm:$0xff]
        %v430 = vld [vmem:[%s314 + $0x190] sm:$0xff]
        %v431 = vld [vmem:[%s314 + $0x198] sm:$0xff]
        %v432 = vld [vmem:[%s314 + $0x1a0] sm:$0xff]
        %v433 = vld [vmem:[%s314 + $0x1a8] sm:$0xff]
        %v434 = vld [vmem:[%s314 + $0x1b0] sm:$0xff]
        %v435 = vld [vmem:[%s314 + $0x1b8] sm:$0xff]
        %v436 = vld [vmem:[%s314 + $0x1c0] sm:$0xff]
        %v437 = vld [vmem:[%s314 + $0x1c8] sm:$0xff]
        %v438 = vld [vmem:[%s314 + $0x1d0] sm:$0xff]
        %v439 = vld [vmem:[%s314 + $0x1d8] sm:$0xff]
        %v440 = vld [vmem:[%s314 + $0x1e0] sm:$0xff]
        %v441 = vld [vmem:[%s314 + $0x1e8] sm:$0xff]
        %v442 = vld [vmem:[%s314 + $0x1f0] sm:$0xff]
        %v443 = vld [vmem:[%s314 + $0x1f8] sm:$0xff]
        %v444 = vld [vmem:[%s314 + $0x200] sm:$0xff]
        %v445 = vld [vmem:[%s314 + $0x208] sm:$0xff]
        %v446 = vld [vmem:[%s314 + $0x210] sm:$0xff]
        %v447 = vld [vmem:[%s314 + $0x218] sm:$0xff]
        %v448 = vld [vmem:[%s314 + $0x220] sm:$0xff]
        %v449 = vld [vmem:[%s314 + $0x228] sm:$0xff]
        %v450 = vld [vmem:[%s314 + $0x230] sm:$0xff]
        %v451 = vld [vmem:[%s314 + $0x238] sm:$0xff]
        %v452 = vld [vmem:[%s314 + $0x240] sm:$0xff]
        %v453 = vld [vmem:[%s314 + $0x248] sm:$0xff]
        %v454 = vld [vmem:[%s314 + $0x250] sm:$0xff]
        %v455 = vld [vmem:[%s314 + $0x258] sm:$0xff]
        %v456 = vld [vmem:[%s314 + $0x260] sm:$0xff]
        %v457 = vld [vmem:[%s314 + $0x268] sm:$0xff]
        %v458 = vld [vmem:[%s314 + $0x270] sm:$0xff]
        %v459 = vld [vmem:[%s314 + $0x278] sm:$0xff]
        %v460 = vld [vmem:[%s314 + $0x280] sm:$0xff]
        %v461 = vld [vmem:[%s314 + $0x288] sm:$0xff]
        %v462 = vld [vmem:[%s314 + $0x290] sm:$0xff]
        %v463 = vld [vmem:[%s314 + $0x298] sm:$0xff]
        %v464 = vld [vmem:[%s314 + $0x2a0] sm:$0xff]
        %v465 = vld [vmem:[%s314 + $0x2a8] sm:$0xff]
        %v466 = vld [vmem:[%s314 + $0x2b0] sm:$0xff]
        %v467 = vld [vmem:[%s314 + $0x2b8] sm:$0xff]
        %v468 = vld [vmem:[%s314 + $0x2c0] sm:$0xff]
        %v469 = vld [vmem:[%s314 + $0x2c8] sm:$0xff]
        %v470 = vld [vmem:[%s314 + $0x2d0] sm:$0xff]
        %v471 = vld [vmem:[%s314 + $0x2d8] sm:$0xff]
        %v472 = vld [vmem:[%s314 + $0x2e0] sm:$0xff]
        %v473 = vld [vmem:[%s314 + $0x2e8] sm:$0xff]
        %v474 = vld [vmem:[%s314 + $0x2f0] sm:$0xff]
        %v475 = vld [vmem:[%s314 + $0x2f8] sm:$0xff]
        %v476 = vld [vmem:[%s314 + $0x300] sm:$0xff]
        %v477 = vld [vmem:[%s314 + $0x308] sm:$0xff]
        %v478 = vld [vmem:[%s314 + $0x310] sm:$0xff]
        %v479 = vld [vmem:[%s314 + $0x318] sm:$0xff]
        %v480 = vld [vmem:[%s314 + $0x320] sm:$0xff]
        %v481 = vld [vmem:[%s314 + $0x328] sm:$0xff]
        %v482 = vld [vmem:[%s314 + $0x330] sm:$0xff]
        %v483 = vld [vmem:[%s314 + $0x338] sm:$0xff]
        %v484 = vld [vmem:[%s314 + $0x340] sm:$0xff]
        %v485 = vld [vmem:[%s314 + $0x348] sm:$0xff]
        %v486 = vld [vmem:[%s314 + $0x350] sm:$0xff]
        %v487 = vld [vmem:[%s314 + $0x358] sm:$0xff]
        %v488 = vld [vmem:[%s314 + $0x360] sm:$0xff]
        %v489 = vld [vmem:[%s314 + $0x368] sm:$0xff]
        %v490 = vld [vmem:[%s314 + $0x370] sm:$0xff]
        %v491 = vld [vmem:[%s314 + $0x378] sm:$0xff]
        %v492 = vld [vmem:[%s314 + $0x380] sm:$0xff]
        %v493 = vld [vmem:[%s314 + $0x388] sm:$0xff]
        %v494 = vld [vmem:[%s314 + $0x390] sm:$0xff]
        %v495 = vld [vmem:[%s314 + $0x398] sm:$0xff]
        %v496 = vld [vmem:[%s314 + $0x3a0] sm:$0xff]
        %v497 = vld [vmem:[%s314 + $0x3a8] sm:$0xff]
        %v498 = vld [vmem:[%s314 + $0x3b0] sm:$0xff]
        %v499 = vld [vmem:[%s314 + $0x3b8] sm:$0xff]
        %v500 = vld [vmem:[%s314 + $0x3c0] sm:$0xff]
        %v501 = vld [vmem:[%s314 + $0x3c8] sm:$0xff]
        %v502 = vld [vmem:[%s314 + $0x3d0] sm:$0xff]
        %v503 = vld [vmem:[%s314 + $0x3d8] sm:$0xff]
        %v504 = vld [vmem:[%s314 + $0x3e0] sm:$0xff]
        %v505 = vld [vmem:[%s314 + $0x3e8] sm:$0xff]
        %v506 = vld [vmem:[%s314 + $0x3f0] sm:$0xff]
        %v507 = vld [vmem:[%s314 + $0x3f8] sm:$0xff]
        %v508 = vld [vmem:[%s314 + $0x400] sm:$0xff]
        %v509 = vld [vmem:[%s314 + $0x408] sm:$0xff]
        %v510 = vld [vmem:[%s314 + $0x410] sm:$0xff]
        %v511 = vld [vmem:[%s314 + $0x418] sm:$0xff]
        %v512 = vld [vmem:[%s314 + $0x420] sm:$0xff]
        %v513 = vld [vmem:[%s314 + $0x428] sm:$0xff]
        %v514 = vld [vmem:[%s314 + $0x430] sm:$0xff]
        %v515 = vld [vmem:[%s314 + $0x438] sm:$0xff]
        %v516 = vld [vmem:[%s314 + $0x440] sm:$0xff]
        %v517 = vld [vmem:[%s314 + $0x448] sm:$0xff]
        %v518 = vld [vmem:[%s314 + $0x450] sm:$0xff]
        %v519 = vld [vmem:[%s314 + $0x458] sm:$0xff]
        %v520 = vld [vmem:[%s314 + $0x460] sm:$0xff]
        %v521 = vld [vmem:[%s314 + $0x468] sm:$0xff]
        %v522 = vld [vmem:[%s314 + $0x470] sm:$0xff]
        %v523 = vld [vmem:[%s314 + $0x478] sm:$0xff]
        %v524 = vld [vmem:[%s314 + $0x480] sm:$0xff]
        %v525 = vld [vmem:[%s314 + $0x488] sm:$0xff]
        %v526 = vld [vmem:[%s314 + $0x490] sm:$0xff]
        %v527 = vld [vmem:[%s314 + $0x498] sm:$0xff]
        %v528 = vld [vmem:[%s314 + $0x4a0] sm:$0xff]
        %v529 = vld [vmem:[%s314 + $0x4a8] sm:$0xff]
        %v530 = vld [vmem:[%s314 + $0x4b0] sm:$0xff]
        %v531 = vld [vmem:[%s314 + $0x4b8] sm:$0xff]
        %v532 = vld [vmem:[%s314 + $0x4c0] sm:$0xff]
        %v533 = vld [vmem:[%s314 + $0x4c8] sm:$0xff]
        %v534 = vld [vmem:[%s314 + $0x4d0] sm:$0xff]
        %v535 = vld [vmem:[%s314 + $0x4d8] sm:$0xff]
        %v536 = vld [vmem:[%s314 + $0x4e0] sm:$0xff]
        %v537 = vld [vmem:[%s314 + $0x4e8] sm:$0xff]
        %v538 = vld [vmem:[%s314 + $0x4f0] sm:$0xff]
        %v539 = vld [vmem:[%s314 + $0x4f8] sm:$0xff]
        %v540 = vld [vmem:[%s314 + $0x500] sm:$0xff]
        %v541 = vld [vmem:[%s314 + $0x508] sm:$0xff]
        %v542 = vld [vmem:[%s314 + $0x510] sm:$0xff]
        %v543 = vld [vmem:[%s314 + $0x518] sm:$0xff]
        %v544 = vld [vmem:[%s314 + $0x520] sm:$0xff]
        %v545 = vld [vmem:[%s314 + $0x528] sm:$0xff]
        %v546 = vld [vmem:[%s314 + $0x530] sm:$0xff]
        %v547 = vld [vmem:[%s314 + $0x538] sm:$0xff]
        %v548 = vld [vmem:[%s314 + $0x540] sm:$0xff]
        %v549 = vld [vmem:[%s314 + $0x548] sm:$0xff]
        %v550 = vld [vmem:[%s314 + $0x550] sm:$0xff]
        %v551 = vld [vmem:[%s314 + $0x558] sm:$0xff]
        %v552 = vld [vmem:[%s314 + $0x560] sm:$0xff]
        %v553 = vld [vmem:[%s314 + $0x568] sm:$0xff]
        %v554 = vld [vmem:[%s314 + $0x570] sm:$0xff]
        %v555 = vld [vmem:[%s314 + $0x578] sm:$0xff]
        %v556 = vld [vmem:[%s314 + $0x580] sm:$0xff]
        %v557 = vld [vmem:[%s314 + $0x588] sm:$0xff]
        %v558 = vld [vmem:[%s314 + $0x590] sm:$0xff]
        %v559 = vld [vmem:[%s314 + $0x598] sm:$0xff]
        %v560 = vld [vmem:[%s314 + $0x5a0] sm:$0xff]
        %v561 = vld [vmem:[%s314 + $0x5a8] sm:$0xff]
        %v562 = vld [vmem:[%s314 + $0x5b0] sm:$0xff]
        %v563 = vld [vmem:[%s314 + $0x5b8] sm:$0xff]
        %v564 = vld [vmem:[%s314 + $0x5c0] sm:$0xff]
        %v565 = vld [vmem:[%s314 + $0x5c8] sm:$0xff]
        %v566 = vld [vmem:[%s314 + $0x5d0] sm:$0xff]
        %v567 = vld [vmem:[%s314 + $0x5d8] sm:$0xff]
        %v568 = vld [vmem:[%s314 + $0x5e0] sm:$0xff]
        %v569 = vld [vmem:[%s314 + $0x5e8] sm:$0xff]
        %v570 = vld [vmem:[%s314 + $0x5f0] sm:$0xff]
        %v571 = vld [vmem:[%s314 + $0x5f8] sm:$0xff]
        %v572 = vld [vmem:[%s314 + $0x600] sm:$0xff]
        %v573 = vld [vmem:[%s314 + $0x608] sm:$0xff]
        %v574 = vld [vmem:[%s314 + $0x610] sm:$0xff]
        %v575 = vld [vmem:[%s314 + $0x618] sm:$0xff]
        %v576 = vld [vmem:[%s314 + $0x620] sm:$0xff]
        %v577 = vld [vmem:[%s314 + $0x628] sm:$0xff]
        %v578 = vld [vmem:[%s314 + $0x630] sm:$0xff]
        %v579 = vld [vmem:[%s314 + $0x638] sm:$0xff]
        %v580 = vld [vmem:[%s314 + $0x640] sm:$0xff]
        %v581 = vld [vmem:[%s314 + $0x648] sm:$0xff]
        %v582 = vld [vmem:[%s314 + $0x650] sm:$0xff]
        %v583 = vld [vmem:[%s314 + $0x658] sm:$0xff]
        %v584 = vld [vmem:[%s314 + $0x660] sm:$0xff]
        %v585 = vld [vmem:[%s314 + $0x668] sm:$0xff]
        %v586 = vld [vmem:[%s314 + $0x670] sm:$0xff]
        %v587 = vld [vmem:[%s314 + $0x678] sm:$0xff]
        %v588 = vld [vmem:[%s314 + $0x680] sm:$0xff]
        %v589 = vld [vmem:[%s314 + $0x688] sm:$0xff]
        %v590 = vld [vmem:[%s314 + $0x690] sm:$0xff]
        %v591 = vld [vmem:[%s314 + $0x698] sm:$0xff]
        %v592 = vld [vmem:[%s314 + $0x6a0] sm:$0xff]
        %v593 = vld [vmem:[%s314 + $0x6a8] sm:$0xff]
        %v594 = vld [vmem:[%s314 + $0x6b0] sm:$0xff]
        %v595 = vld [vmem:[%s314 + $0x6b8] sm:$0xff]
        %v596 = vld [vmem:[%s314 + $0x6c0] sm:$0xff]
        %v597 = vld [vmem:[%s314 + $0x6c8] sm:$0xff]
        %v598 = vld [vmem:[%s314 + $0x6d0] sm:$0xff]
        %v599 = vld [vmem:[%s314 + $0x6d8] sm:$0xff]
        %v600 = vld [vmem:[%s314 + $0x6e0] sm:$0xff]
        %v601 = vld [vmem:[%s314 + $0x6e8] sm:$0xff]
        %v602 = vld [vmem:[%s314 + $0x6f0] sm:$0xff]
        %v603 = vld [vmem:[%s314 + $0x6f8] sm:$0xff]
        %v604 = vld [vmem:[%s314 + $0x700] sm:$0xff]
        %v605 = vld [vmem:[%s314 + $0x708] sm:$0xff]
        %v606 = vld [vmem:[%s314 + $0x710] sm:$0xff]
        %v607 = vld [vmem:[%s314 + $0x718] sm:$0xff]
        %v608 = vld [vmem:[%s314 + $0x720] sm:$0xff]
        %v609 = vld [vmem:[%s314 + $0x728] sm:$0xff]
        %v610 = vld [vmem:[%s314 + $0x730] sm:$0xff]
        %v611 = vld [vmem:[%s314 + $0x738] sm:$0xff]
        %v612 = vld [vmem:[%s314 + $0x740] sm:$0xff]
        %v613 = vld [vmem:[%s314 + $0x748] sm:$0xff]
        %v614 = vld [vmem:[%s314 + $0x750] sm:$0xff]
        %v615 = vld [vmem:[%s314 + $0x758] sm:$0xff]
        %v616 = vld [vmem:[%s314 + $0x760] sm:$0xff]
        %v617 = vld [vmem:[%s314 + $0x768] sm:$0xff]
        %v618 = vld [vmem:[%s314 + $0x770] sm:$0xff]
        %v619 = vld [vmem:[%s314 + $0x778] sm:$0xff]
        %v620 = vld [vmem:[%s314 + $0x780] sm:$0xff]
        %v621 = vld [vmem:[%s314 + $0x788] sm:$0xff]
        %v622 = vld [vmem:[%s314 + $0x790] sm:$0xff]
        %v623 = vld [vmem:[%s314 + $0x798] sm:$0xff]
        %v624 = vld [vmem:[%s314 + $0x7a0] sm:$0xff]
        %v625 = vld [vmem:[%s314 + $0x7a8] sm:$0xff]
        %v626 = vld [vmem:[%s314 + $0x7b0] sm:$0xff]
        %v627 = vld [vmem:[%s314 + $0x7b8] sm:$0xff]
        %v628 = vld [vmem:[%s314 + $0x7c0] sm:$0xff]
        %v629 = vld [vmem:[%s314 + $0x7c8] sm:$0xff]
        %v630 = vld [vmem:[%s314 + $0x7d0] sm:$0xff]
        %v631 = vld [vmem:[%s314 + $0x7d8] sm:$0xff]
        %v632 = vld [vmem:[%s314 + $0x7e0] sm:$0xff]
        %v633 = vld [vmem:[%s314 + $0x7e8] sm:$0xff]
        %v634 = vld [vmem:[%s314 + $0x7f0] sm:$0xff]
        %v635 = vld [vmem:[%s314 + $0x7f8] sm:$0xff]
        %v636 = vld [vmem:[%s314 + $0x800] sm:$0xff]
        %v637 = vld [vmem:[%s314 + $0x808] sm:$0xff]
        %v638 = vld [vmem:[%s314 + $0x810] sm:$0xff]
        %v639 = vld [vmem:[%s314 + $0x818] sm:$0xff]
        %v640 = vld [vmem:[%s314 + $0x820] sm:$0xff]
        %v641 = vld [vmem:[%s314 + $0x828] sm:$0xff]
        %v642 = vld [vmem:[%s314 + $0x830] sm:$0xff]
        %v643 = vld [vmem:[%s314 + $0x838] sm:$0xff]
        %v644 = vld [vmem:[%s314 + $0x840] sm:$0xff]
        %v645 = vld [vmem:[%s314 + $0x848] sm:$0xff]
        %v646 = vld [vmem:[%s314 + $0x850] sm:$0xff]
        %v647 = vld [vmem:[%s314 + $0x858] sm:$0xff]
        %v648 = vld [vmem:[%s314 + $0x860] sm:$0xff]
        %v649 = vld [vmem:[%s314 + $0x868] sm:$0xff]
        %v650 = vld [vmem:[%s314 + $0x870] sm:$0xff]
        %v651 = vld [vmem:[%s314 + $0x878] sm:$0xff]
        %v652 = vld [vmem:[%s314 + $0x880] sm:$0xff]
        %v653 = vld [vmem:[%s314 + $0x888] sm:$0xff]
        %v654 = vld [vmem:[%s314 + $0x890] sm:$0xff]
        %v655 = vld [vmem:[%s314 + $0x898] sm:$0xff]
        %v656 = vld [vmem:[%s314 + $0x8a0] sm:$0xff]
        %v657 = vld [vmem:[%s314 + $0x8a8] sm:$0xff]
        %v658 = vld [vmem:[%s314 + $0x8b0] sm:$0xff]
        %v659 = vld [vmem:[%s314 + $0x8b8] sm:$0xff]
        %v660 = vld [vmem:[%s314 + $0x8c0] sm:$0xff]
        %v661 = vld [vmem:[%s314 + $0x8c8] sm:$0xff]
        %v662 = vld [vmem:[%s314 + $0x8d0] sm:$0xff]
        %v663 = vld [vmem:[%s314 + $0x8d8] sm:$0xff]
        %v664 = vld [vmem:[%s314 + $0x8e0] sm:$0xff]
        %v665 = vld [vmem:[%s314 + $0x8e8] sm:$0xff]
        %v666 = vld [vmem:[%s314 + $0x8f0] sm:$0xff]
        %v667 = vld [vmem:[%s314 + $0x8f8] sm:$0xff]
        %v668 = vld [vmem:[%s314 + $0x900] sm:$0xff]
        %v669 = vld [vmem:[%s314 + $0x908] sm:$0xff]
        %v670 = vld [vmem:[%s314 + $0x910] sm:$0xff]
        %v671 = vld [vmem:[%s314 + $0x918] sm:$0xff]
        %v672 = vld [vmem:[%s314 + $0x920] sm:$0xff]
        %v673 = vld [vmem:[%s314 + $0x928] sm:$0xff]
        %v674 = vld [vmem:[%s314 + $0x930] sm:$0xff]
        %v675 = vld [vmem:[%s314 + $0x938] sm:$0xff]
        %v676 = vld [vmem:[%s314 + $0x940] sm:$0xff]
        %v677 = vld [vmem:[%s314 + $0x948] sm:$0xff]
        %v678 = vld [vmem:[%s314 + $0x950] sm:$0xff]
        %v679 = vld [vmem:[%s314 + $0x958] sm:$0xff]
        %v680 = vld [vmem:[%s314 + $0x960] sm:$0xff]
        %v681 = vld [vmem:[%s314 + $0x968] sm:$0xff]
        %v682 = vld [vmem:[%s314 + $0x970] sm:$0xff]
        %v683 = vld [vmem:[%s314 + $0x978] sm:$0xff]
        %v684 = vld [vmem:[%s314 + $0x980] sm:$0xff]
        %v685 = vld [vmem:[%s314 + $0x988] sm:$0xff]
        %v686 = vld [vmem:[%s314 + $0x990] sm:$0xff]
        %v687 = vld [vmem:[%s314 + $0x998] sm:$0xff]
        %v688 = vld [vmem:[%s314 + $0x9a0] sm:$0xff]
        %v689 = vld [vmem:[%s314 + $0x9a8] sm:$0xff]
        %v690 = vld [vmem:[%s314 + $0x9b0] sm:$0xff]
        %v691 = vld [vmem:[%s314 + $0x9b8] sm:$0xff]
        %v692 = vld [vmem:[%s314 + $0x9c0] sm:$0xff]
        %v693 = vld [vmem:[%s314 + $0x9c8] sm:$0xff]
        %v694 = vld [vmem:[%s314 + $0x9d0] sm:$0xff]
        %v695 = vld [vmem:[%s314 + $0x9d8] sm:$0xff]
        %v696 = vld [vmem:[%s314 + $0x9e0] sm:$0xff]
        %v697 = vld [vmem:[%s314 + $0x9e8] sm:$0xff]
        %v698 = vld [vmem:[%s314 + $0x9f0] sm:$0xff]
        %v699 = vld [vmem:[%s314 + $0x9f8] sm:$0xff]
        %v700 = vld [vmem:[%s314 + $0xa00] sm:$0xff]
        %v701 = vld [vmem:[%s314 + $0xa08] sm:$0xff]
        %v702 = vld [vmem:[%s314 + $0xa10] sm:$0xff]
        %v703 = vld [vmem:[%s314 + $0xa18] sm:$0xff]
        %v704 = vld [vmem:[%s314 + $0xa20] sm:$0xff]
        %v705 = vld [vmem:[%s314 + $0xa28] sm:$0xff]
        %v706 = vld [vmem:[%s314 + $0xa30] sm:$0xff]
        %v707 = vld [vmem:[%s314 + $0xa38] sm:$0xff]
        %v708 = vld [vmem:[%s314 + $0xa40] sm:$0xff]
        %v709 = vld [vmem:[%s314 + $0xa48] sm:$0xff]
        %v710 = vld [vmem:[%s314 + $0xa50] sm:$0xff]
        %v711 = vld [vmem:[%s314 + $0xa58] sm:$0xff]
        %v712 = vld [vmem:[%s314 + $0xa60] sm:$0xff]
        %v713 = vld [vmem:[%s314 + $0xa68] sm:$0xff]
        %v714 = vld [vmem:[%s314 + $0xa70] sm:$0xff]
        %v715 = vld [vmem:[%s314 + $0xa78] sm:$0xff]
        %v716 = vld [vmem:[%s314 + $0xa80] sm:$0xff]
        %v717 = vld [vmem:[%s314 + $0xa88] sm:$0xff]
        %v718 = vld [vmem:[%s314 + $0xa90] sm:$0xff]
        %v719 = vld [vmem:[%s314 + $0xa98] sm:$0xff]
        %v720 = vld [vmem:[%s314 + $0xaa0] sm:$0xff]
        %v721 = vld [vmem:[%s314 + $0xaa8] sm:$0xff]
        %v722 = vld [vmem:[%s314 + $0xab0] sm:$0xff]
        %v723 = vld [vmem:[%s314 + $0xab8] sm:$0xff]
        %v724 = vld [vmem:[%s314 + $0xac0] sm:$0xff]
        %v725 = vld [vmem:[%s314 + $0xac8] sm:$0xff]
        %v726 = vld [vmem:[%s314 + $0xad0] sm:$0xff]
        %v727 = vld [vmem:[%s314 + $0xad8] sm:$0xff]
        %v728 = vld [vmem:[%s314 + $0xae0] sm:$0xff]
        %v729 = vld [vmem:[%s314 + $0xae8] sm:$0xff]
        %v730 = vld [vmem:[%s314 + $0xaf0] sm:$0xff]
        %v731 = vld [vmem:[%s314 + $0xaf8] sm:$0xff]
        %v732 = vld [vmem:[%s314 + $0xb00] sm:$0xff]
        %v733 = vld [vmem:[%s314 + $0xb08] sm:$0xff]
        %v734 = vld [vmem:[%s314 + $0xb10] sm:$0xff]
        %v735 = vld [vmem:[%s314 + $0xb18] sm:$0xff]
        %v736 = vld [vmem:[%s314 + $0xb20] sm:$0xff]
        %v737 = vld [vmem:[%s314 + $0xb28] sm:$0xff]
        %v738 = vld [vmem:[%s314 + $0xb30] sm:$0xff]
        %v739 = vld [vmem:[%s314 + $0xb38] sm:$0xff]
        %v740 = vld [vmem:[%s314 + $0xb40] sm:$0xff]
        %v741 = vld [vmem:[%s314 + $0xb48] sm:$0xff]
        %v742 = vld [vmem:[%s314 + $0xb50] sm:$0xff]
        %v743 = vld [vmem:[%s314 + $0xb58] sm:$0xff]
        %v744 = vld [vmem:[%s314 + $0xb60] sm:$0xff]
        %v745 = vld [vmem:[%s314 + $0xb68] sm:$0xff]
        %v746 = vld [vmem:[%s314 + $0xb70] sm:$0xff]
        %v747 = vld [vmem:[%s314 + $0xb78] sm:$0xff]
        %v748 = vld [vmem:[%s314 + $0xb80] sm:$0xff]
        %v749 = vld [vmem:[%s314 + $0xb88] sm:$0xff]
        %v750 = vld [vmem:[%s314 + $0xb90] sm:$0xff]
        %v751 = vld [vmem:[%s314 + $0xb98] sm:$0xff]
        %v752 = vld [vmem:[%s314 + $0xba0] sm:$0xff]
        %v753 = vld [vmem:[%s314 + $0xba8] sm:$0xff]
        %v754 = vld [vmem:[%s314 + $0xbb0] sm:$0xff]
        %v755 = vld [vmem:[%s314 + $0xbb8] sm:$0xff]
        %v756 = vld [vmem:[%s314 + $0xbc0] sm:$0xff]
        %v757 = vld [vmem:[%s314 + $0xbc8] sm:$0xff]
        %v758 = vld [vmem:[%s314 + $0xbd0] sm:$0xff]
        %v759 = vld [vmem:[%s314 + $0xbd8] sm:$0xff]
        %v760 = vld [vmem:[%s314 + $0xbe0] sm:$0xff]
        %v761 = vld [vmem:[%s314 + $0xbe8] sm:$0xff]
        %v762 = vld [vmem:[%s314 + $0xbf0] sm:$0xff]
        %v763 = vld [vmem:[%s314 + $0xbf8] sm:$0xff]
        %v764 = vld [vmem:[%s314 + $0xc00] sm:$0xff]
        %v765 = vld [vmem:[%s314 + $0xc08] sm:$0xff]
        %v766 = vld [vmem:[%s314 + $0xc10] sm:$0xff]
        %v767 = vld [vmem:[%s314 + $0xc18] sm:$0xff]
        %v768 = vld [vmem:[%s314 + $0xc20] sm:$0xff]
        %v769 = vld [vmem:[%s314 + $0xc28] sm:$0xff]
        %v770 = vld [vmem:[%s314 + $0xc30] sm:$0xff]
        %v771 = vld [vmem:[%s314 + $0xc38] sm:$0xff]
        %v772 = vld [vmem:[%s314 + $0xc40] sm:$0xff]
        %v773 = vld [vmem:[%s314 + $0xc48] sm:$0xff]
        %v774 = vld [vmem:[%s314 + $0xc50] sm:$0xff]
        %v775 = vld [vmem:[%s314 + $0xc58] sm:$0xff]
        %v776 = vld [vmem:[%s314 + $0xc60] sm:$0xff]
        %v777 = vld [vmem:[%s314 + $0xc68] sm:$0xff]
        %v778 = vld [vmem:[%s314 + $0xc70] sm:$0xff]
        %v779 = vld [vmem:[%s314 + $0xc78] sm:$0xff]
        %v780 = vld [vmem:[%s314 + $0xc80] sm:$0xff]
        %v781 = vld [vmem:[%s314 + $0xc88] sm:$0xff]
        %v782 = vld [vmem:[%s314 + $0xc90] sm:$0xff]
        %v783 = vld [vmem:[%s314 + $0xc98] sm:$0xff]
        %v784 = vld [vmem:[%s314 + $0xca0] sm:$0xff]
        %v785 = vld [vmem:[%s314 + $0xca8] sm:$0xff]
        %v786 = vld [vmem:[%s314 + $0xcb0] sm:$0xff]
        %v787 = vld [vmem:[%s314 + $0xcb8] sm:$0xff]
        %v788 = vld [vmem:[%s314 + $0xcc0] sm:$0xff]
        %v789 = vld [vmem:[%s314 + $0xcc8] sm:$0xff]
        %v790 = vld [vmem:[%s314 + $0xcd0] sm:$0xff]
        %v791 = vld [vmem:[%s314 + $0xcd8] sm:$0xff]
        %v792 = vld [vmem:[%s314 + $0xce0] sm:$0xff]
        %v793 = vld [vmem:[%s314 + $0xce8] sm:$0xff]
        %v794 = vld [vmem:[%s314 + $0xcf0] sm:$0xff]
        %v795 = vld [vmem:[%s314 + $0xcf8] sm:$0xff]
        %v796 = vld [vmem:[%s314 + $0xd00] sm:$0xff]
        %v797 = vld [vmem:[%s314 + $0xd08] sm:$0xff]
        %v798 = vld [vmem:[%s314 + $0xd10] sm:$0xff]
        %v799 = vld [vmem:[%s314 + $0xd18] sm:$0xff]
        %v800 = vld [vmem:[%s314 + $0xd20] sm:$0xff]
        %v801 = vld [vmem:[%s314 + $0xd28] sm:$0xff]
        %v802 = vld [vmem:[%s314 + $0xd30] sm:$0xff]
        %v803 = vld [vmem:[%s314 + $0xd38] sm:$0xff]
        %v804 = vld [vmem:[%s314 + $0xd40] sm:$0xff]
        %v805 = vld [vmem:[%s314 + $0xd48] sm:$0xff]
        %v806 = vld [vmem:[%s314 + $0xd50] sm:$0xff]
        %v807 = vld [vmem:[%s314 + $0xd58] sm:$0xff]
        %v808 = vld [vmem:[%s314 + $0xd60] sm:$0xff]
        %v809 = vld [vmem:[%s314 + $0xd68] sm:$0xff]
        %v810 = vld [vmem:[%s314 + $0xd70] sm:$0xff]
        %v811 = vld [vmem:[%s314 + $0xd78] sm:$0xff]
        %v812 = vld [vmem:[%s314 + $0xd80] sm:$0xff]
        %v813 = vld [vmem:[%s314 + $0xd88] sm:$0xff]
        %v814 = vld [vmem:[%s314 + $0xd90] sm:$0xff]
        %v815 = vld [vmem:[%s314 + $0xd98] sm:$0xff]
        %v816 = vld [vmem:[%s314 + $0xda0] sm:$0xff]
        %v817 = vld [vmem:[%s314 + $0xda8] sm:$0xff]
        %v818 = vld [vmem:[%s314 + $0xdb0] sm:$0xff]
        %v819 = vld [vmem:[%s314 + $0xdb8] sm:$0xff]
        %v820 = vld [vmem:[%s314 + $0xdc0] sm:$0xff]
        %v821 = vld [vmem:[%s314 + $0xdc8] sm:$0xff]
        %v822 = vld [vmem:[%s314 + $0xdd0] sm:$0xff]
        %v823 = vld [vmem:[%s314 + $0xdd8] sm:$0xff]
        %v824 = vld [vmem:[%s314 + $0xde0] sm:$0xff]
        %v825 = vld [vmem:[%s314 + $0xde8] sm:$0xff]
        %v826 = vld [vmem:[%s314 + $0xdf0] sm:$0xff]
        %v827 = vld [vmem:[%s314 + $0xdf8] sm:$0xff]
        %v828 = vld [vmem:[%s314 + $0xe00] sm:$0xff]
        %v829 = vld [vmem:[%s314 + $0xe08] sm:$0xff]
        %v830 = vld [vmem:[%s314 + $0xe10] sm:$0xff]
        %v831 = vld [vmem:[%s314 + $0xe18] sm:$0xff]
        %v832 = vld [vmem:[%s314 + $0xe20] sm:$0xff]
        %v833 = vld [vmem:[%s314 + $0xe28] sm:$0xff]
        %v834 = vld [vmem:[%s314 + $0xe30] sm:$0xff]
        %v835 = vld [vmem:[%s314 + $0xe38] sm:$0xff]
        %v836 = vld [vmem:[%s314 + $0xe40] sm:$0xff]
        %v837 = vld [vmem:[%s314 + $0xe48] sm:$0xff]
        %v838 = vld [vmem:[%s314 + $0xe50] sm:$0xff]
        %v839 = vld [vmem:[%s314 + $0xe58] sm:$0xff]
        %v840 = vld [vmem:[%s314 + $0xe60] sm:$0xff]
        %v841 = vld [vmem:[%s314 + $0xe68] sm:$0xff]
        %v842 = vld [vmem:[%s314 + $0xe70] sm:$0xff]
        %v843 = vld [vmem:[%s314 + $0xe78] sm:$0xff]
        %v844 = vld [vmem:[%s314 + $0xe80] sm:$0xff]
        %v845 = vld [vmem:[%s314 + $0xe88] sm:$0xff]
        %v846 = vld [vmem:[%s314 + $0xe90] sm:$0xff]
        %v847 = vld [vmem:[%s314 + $0xe98] sm:$0xff]
        %v848 = vld [vmem:[%s314 + $0xea0] sm:$0xff]
        %v849 = vld [vmem:[%s314 + $0xea8] sm:$0xff]
        %v850 = vld [vmem:[%s314 + $0xeb0] sm:$0xff]
        %v851 = vld [vmem:[%s314 + $0xeb8] sm:$0xff]
        %v852 = vld [vmem:[%s314 + $0xec0] sm:$0xff]
        %v853 = vld [vmem:[%s314 + $0xec8] sm:$0xff]
        %v854 = vld [vmem:[%s314 + $0xed0] sm:$0xff]
        %v855 = vld [vmem:[%s314 + $0xed8] sm:$0xff]
        %v856 = vld [vmem:[%s314 + $0xee0] sm:$0xff]
        %v857 = vld [vmem:[%s314 + $0xee8] sm:$0xff]
        %v858 = vld [vmem:[%s314 + $0xef0] sm:$0xff]
        %v859 = vld [vmem:[%s314 + $0xef8] sm:$0xff]
        %v860 = vld [vmem:[%s314 + $0xf00] sm:$0xff]
        %v861 = vld [vmem:[%s314 + $0xf08] sm:$0xff]
        %v862 = vld [vmem:[%s314 + $0xf10] sm:$0xff]
        %v863 = vld [vmem:[%s314 + $0xf18] sm:$0xff]
        %v864 = vld [vmem:[%s314 + $0xf20] sm:$0xff]
        %v865 = vld [vmem:[%s314 + $0xf28] sm:$0xff]
        %v866 = vld [vmem:[%s314 + $0xf30] sm:$0xff]
        %v867 = vld [vmem:[%s314 + $0xf38] sm:$0xff]
        %v868 = vld [vmem:[%s314 + $0xf40] sm:$0xff]
        %v869 = vld [vmem:[%s314 + $0xf48] sm:$0xff]
        %v870 = vld [vmem:[%s314 + $0xf50] sm:$0xff]
        %v871 = vld [vmem:[%s314 + $0xf58] sm:$0xff]
        %v872 = vld [vmem:[%s314 + $0xf60] sm:$0xff]
        %v873 = vld [vmem:[%s314 + $0xf68] sm:$0xff]
        %v874 = vld [vmem:[%s314 + $0xf70] sm:$0xff]
        %v875 = vld [vmem:[%s314 + $0xf78] sm:$0xff]
        %v876 = vld [vmem:[%s314 + $0xf80] sm:$0xff]
        %v877 = vld [vmem:[%s314 + $0xf88] sm:$0xff]
        %v878 = vld [vmem:[%s314 + $0xf90] sm:$0xff]
        %v879 = vld [vmem:[%s314 + $0xf98] sm:$0xff]
        %v880 = vld [vmem:[%s314 + $0xfa0] sm:$0xff]
        %v881 = vld [vmem:[%s314 + $0xfa8] sm:$0xff]
        %v882 = vld [vmem:[%s314 + $0xfb0] sm:$0xff]
        %v883 = vld [vmem:[%s314 + $0xfb8] sm:$0xff]
        %v884 = vld [vmem:[%s314 + $0xfc0] sm:$0xff]
        %v885 = vld [vmem:[%s314 + $0xfc8] sm:$0xff]
        %v886 = vld [vmem:[%s314 + $0xfd0] sm:$0xff]
        %v887 = vld [vmem:[%s314 + $0xfd8] sm:$0xff]
        %v888 = vld [vmem:[%s314 + $0xfe0] sm:$0xff]
        %v889 = vld [vmem:[%s314 + $0xfe8] sm:$0xff]
        %v890 = vld [vmem:[%s314 + $0xff0] sm:$0xff]
        %v891 = vld [vmem:[%s314 + $0xff8] sm:$0xff]
        %v893 = vcombine.high %v379, %v379
        %v895 = vunpack.c.l.s4 1966171168
        %v896 = vunpack.c.0.s8 %v895
        %v897 = vlaneseq
        %v898 = vshrl.u32 %v897, 7
        %v899 = vsub.s32 %v896, %v898
        %v900 = vrot.slane %v379, %v899
        %v902 = vunpack.c.l.s4 1966171168
        %v903 = vunpack.c.0.s8 %v902
        %v904 = vlaneseq
        %v905 = vshrl.u32 %v904, 7
        %v906 = vsub.s32 %v903, %v905
        %v907 = vrot.slane %v893, %v906
        %v908 = vcombine.high %v900, %v900
        %v909 = vcombine.high %v907, %v907
        %v911 = vunpack.c.l.s4 1966171168
        %v912 = vunpack.c.0.s8 %v911
        %v913 = vlaneseq
        %v914 = vshrl.u32 %v913, 7
        %v915 = vsub.s32 %v912, %v914
        %v916 = vrot.slane %v900, %v915
        %v918 = vunpack.c.l.s4 1966171168
        %v919 = vunpack.c.0.s8 %v918
        %v920 = vlaneseq
        %v921 = vshrl.u32 %v920, 7
        %v922 = vsub.s32 %v919, %v921
        %v923 = vrot.slane %v907, %v922
        %v925 = vunpack.c.l.s4 1966171168
        %v926 = vunpack.c.0.s8 %v925
        %v927 = vlaneseq
        %v928 = vshrl.u32 %v927, 7
        %v929 = vsub.s32 %v926, %v928
        %v930 = vrot.slane %v908, %v929
        %v932 = vunpack.c.l.s4 1966171168
        %v933 = vunpack.c.0.s8 %v932
        %v934 = vlaneseq
        %v935 = vshrl.u32 %v934, 7
        %v936 = vsub.s32 %v933, %v935
        %v937 = vrot.slane %v909, %v936
        %v938 = vcombine.high %v916, %v916
        %v939 = vcombine.high %v923, %v923
        %v940 = vcombine.high %v930, %v930
        %v941 = vcombine.high %v937, %v937
        %v1462 = vunpack.c.l.b16 %v380
        %v1463 = vunpack.c.h.b16 %v380
        %v1464 = vunpack.c.l.b16 %v381
        %v1465 = vunpack.c.h.b16 %v381
        %v1466 = vunpack.c.l.b16 %v382
        %v1467 = vunpack.c.h.b16 %v382
        %v1468 = vunpack.c.l.b16 %v383
        %v1469 = vunpack.c.h.b16 %v383
        %v1470 = vunpack.c.l.b16 %v384
        %v1471 = vunpack.c.h.b16 %v384
        %v1472 = vunpack.c.l.b16 %v385
        %v1473 = vunpack.c.h.b16 %v385
        %v1474 = vunpack.c.l.b16 %v386
        %v1475 = vunpack.c.h.b16 %v386
        %v1476 = vunpack.c.l.b16 %v387
        %v1477 = vunpack.c.h.b16 %v387
        %v1478 = vunpack.c.l.b16 %v388
        %v1479 = vunpack.c.h.b16 %v388
        %v1480 = vunpack.c.l.b16 %v389
        %v1481 = vunpack.c.h.b16 %v389
        %v1482 = vunpack.c.l.b16 %v390
        %v1483 = vunpack.c.h.b16 %v390
        %v1484 = vunpack.c.l.b16 %v391
        %v1485 = vunpack.c.h.b16 %v391
        %v1486 = vunpack.c.l.b16 %v392
        %v1487 = vunpack.c.h.b16 %v392
        %v1488 = vunpack.c.l.b16 %v393
        %v1489 = vunpack.c.h.b16 %v393
        %v1490 = vunpack.c.l.b16 %v394
        %v1491 = vunpack.c.h.b16 %v394
        %v1492 = vunpack.c.l.b16 %v395
        %v1493 = vunpack.c.h.b16 %v395
        %v1494 = vunpack.c.l.b16 %v396
        %v1495 = vunpack.c.h.b16 %v396
        %v1496 = vunpack.c.l.b16 %v397
        %v1497 = vunpack.c.h.b16 %v397
        %v1498 = vunpack.c.l.b16 %v398
        %v1499 = vunpack.c.h.b16 %v398
        %v1500 = vunpack.c.l.b16 %v399
        %v1501 = vunpack.c.h.b16 %v399
        %v1502 = vunpack.c.l.b16 %v400
        %v1503 = vunpack.c.h.b16 %v400
        %v1504 = vunpack.c.l.b16 %v401
        %v1505 = vunpack.c.h.b16 %v401
        %v1506 = vunpack.c.l.b16 %v402
        %v1507 = vunpack.c.h.b16 %v402
        %v1508 = vunpack.c.l.b16 %v403
        %v1509 = vunpack.c.h.b16 %v403
        %v1510 = vunpack.c.l.b16 %v404
        %v1511 = vunpack.c.h.b16 %v404
        %v1512 = vunpack.c.l.b16 %v405
        %v1513 = vunpack.c.h.b16 %v405
        %v1514 = vunpack.c.l.b16 %v406
        %v1515 = vunpack.c.h.b16 %v406
        %v1516 = vunpack.c.l.b16 %v407
        %v1517 = vunpack.c.h.b16 %v407
        %v1518 = vunpack.c.l.b16 %v408
        %v1519 = vunpack.c.h.b16 %v408
        %v1520 = vunpack.c.l.b16 %v409
        %v1521 = vunpack.c.h.b16 %v409
        %v1522 = vunpack.c.l.b16 %v410
        %v1523 = vunpack.c.h.b16 %v410
        %v1524 = vunpack.c.l.b16 %v411
        %v1525 = vunpack.c.h.b16 %v411
        %v1526 = vunpack.c.l.b16 %v412
        %v1527 = vunpack.c.h.b16 %v412
        %v1528 = vunpack.c.l.b16 %v413
        %v1529 = vunpack.c.h.b16 %v413
        %v1530 = vunpack.c.l.b16 %v414
        %v1531 = vunpack.c.h.b16 %v414
        %v1532 = vunpack.c.l.b16 %v415
        %v1533 = vunpack.c.h.b16 %v415
        %v1534 = vunpack.c.l.b16 %v416
        %v1535 = vunpack.c.h.b16 %v416
        %v1536 = vunpack.c.l.b16 %v417
        %v1537 = vunpack.c.h.b16 %v417
        %v1538 = vunpack.c.l.b16 %v418
        %v1539 = vunpack.c.h.b16 %v418
        %v1540 = vunpack.c.l.b16 %v419
        %v1541 = vunpack.c.h.b16 %v419
        %v1542 = vunpack.c.l.b16 %v420
        %v1543 = vunpack.c.h.b16 %v420
        %v1544 = vunpack.c.l.b16 %v421
        %v1545 = vunpack.c.h.b16 %v421
        %v1546 = vunpack.c.l.b16 %v422
        %v1547 = vunpack.c.h.b16 %v422
        %v1548 = vunpack.c.l.b16 %v423
        %v1549 = vunpack.c.h.b16 %v423
        %v1550 = vunpack.c.l.b16 %v424
        %v1551 = vunpack.c.h.b16 %v424
        %v1552 = vunpack.c.l.b16 %v425
        %v1553 = vunpack.c.h.b16 %v425
        %v1554 = vunpack.c.l.b16 %v426
        %v1555 = vunpack.c.h.b16 %v426
        %v1556 = vunpack.c.l.b16 %v427
        %v1557 = vunpack.c.h.b16 %v427
        %v1558 = vunpack.c.l.b16 %v428
        %v1559 = vunpack.c.h.b16 %v428
        %v1560 = vunpack.c.l.b16 %v429
        %v1561 = vunpack.c.h.b16 %v429
        %v1562 = vunpack.c.l.b16 %v430
        %v1563 = vunpack.c.h.b16 %v430
        %v1564 = vunpack.c.l.b16 %v431
        %v1565 = vunpack.c.h.b16 %v431
        %v1566 = vunpack.c.l.b16 %v432
        %v1567 = vunpack.c.h.b16 %v432
        %v1568 = vunpack.c.l.b16 %v433
        %v1569 = vunpack.c.h.b16 %v433
        %v1570 = vunpack.c.l.b16 %v434
        %v1571 = vunpack.c.h.b16 %v434
        %v1572 = vunpack.c.l.b16 %v435
        %v1573 = vunpack.c.h.b16 %v435
        %v1574 = vunpack.c.l.b16 %v436
        %v1575 = vunpack.c.h.b16 %v436
        %v1576 = vunpack.c.l.b16 %v437
        %v1577 = vunpack.c.h.b16 %v437
        %v1578 = vunpack.c.l.b16 %v438
        %v1579 = vunpack.c.h.b16 %v438
        %v1580 = vunpack.c.l.b16 %v439
        %v1581 = vunpack.c.h.b16 %v439
        %v1582 = vunpack.c.l.b16 %v440
        %v1583 = vunpack.c.h.b16 %v440
        %v1584 = vunpack.c.l.b16 %v441
        %v1585 = vunpack.c.h.b16 %v441
        %v1586 = vunpack.c.l.b16 %v442
        %v1587 = vunpack.c.h.b16 %v442
        %v1588 = vunpack.c.l.b16 %v443
        %v1589 = vunpack.c.h.b16 %v443
        %v1590 = vunpack.c.l.b16 %v444
        %v1591 = vunpack.c.h.b16 %v444
        %v1592 = vunpack.c.l.b16 %v445
        %v1593 = vunpack.c.h.b16 %v445
        %v1594 = vunpack.c.l.b16 %v446
        %v1595 = vunpack.c.h.b16 %v446
        %v1596 = vunpack.c.l.b16 %v447
        %v1597 = vunpack.c.h.b16 %v447
        %v1598 = vunpack.c.l.b16 %v448
        %v1599 = vunpack.c.h.b16 %v448
        %v1600 = vunpack.c.l.b16 %v449
        %v1601 = vunpack.c.h.b16 %v449
        %v1602 = vunpack.c.l.b16 %v450
        %v1603 = vunpack.c.h.b16 %v450
        %v1604 = vunpack.c.l.b16 %v451
        %v1605 = vunpack.c.h.b16 %v451
        %v1606 = vunpack.c.l.b16 %v452
        %v1607 = vunpack.c.h.b16 %v452
        %v1608 = vunpack.c.l.b16 %v453
        %v1609 = vunpack.c.h.b16 %v453
        %v1610 = vunpack.c.l.b16 %v454
        %v1611 = vunpack.c.h.b16 %v454
        %v1612 = vunpack.c.l.b16 %v455
        %v1613 = vunpack.c.h.b16 %v455
        %v1614 = vunpack.c.l.b16 %v456
        %v1615 = vunpack.c.h.b16 %v456
        %v1616 = vunpack.c.l.b16 %v457
        %v1617 = vunpack.c.h.b16 %v457
        %v1618 = vunpack.c.l.b16 %v458
        %v1619 = vunpack.c.h.b16 %v458
        %v1620 = vunpack.c.l.b16 %v459
        %v1621 = vunpack.c.h.b16 %v459
        %v1622 = vunpack.c.l.b16 %v460
        %v1623 = vunpack.c.h.b16 %v460
        %v1624 = vunpack.c.l.b16 %v461
        %v1625 = vunpack.c.h.b16 %v461
        %v1626 = vunpack.c.l.b16 %v462
        %v1627 = vunpack.c.h.b16 %v462
        %v1628 = vunpack.c.l.b16 %v463
        %v1629 = vunpack.c.h.b16 %v463
        %v1630 = vunpack.c.l.b16 %v464
        %v1631 = vunpack.c.h.b16 %v464
        %v1632 = vunpack.c.l.b16 %v465
        %v1633 = vunpack.c.h.b16 %v465
        %v1634 = vunpack.c.l.b16 %v466
        %v1635 = vunpack.c.h.b16 %v466
        %v1636 = vunpack.c.l.b16 %v467
        %v1637 = vunpack.c.h.b16 %v467
        %v1638 = vunpack.c.l.b16 %v468
        %v1639 = vunpack.c.h.b16 %v468
        %v1640 = vunpack.c.l.b16 %v469
        %v1641 = vunpack.c.h.b16 %v469
        %v1642 = vunpack.c.l.b16 %v470
        %v1643 = vunpack.c.h.b16 %v470
        %v1644 = vunpack.c.l.b16 %v471
        %v1645 = vunpack.c.h.b16 %v471
        %v1646 = vunpack.c.l.b16 %v472
        %v1647 = vunpack.c.h.b16 %v472
        %v1648 = vunpack.c.l.b16 %v473
        %v1649 = vunpack.c.h.b16 %v473
        %v1650 = vunpack.c.l.b16 %v474
        %v1651 = vunpack.c.h.b16 %v474
        %v1652 = vunpack.c.l.b16 %v475
        %v1653 = vunpack.c.h.b16 %v475
        %v1654 = vunpack.c.l.b16 %v476
        %v1655 = vunpack.c.h.b16 %v476
        %v1656 = vunpack.c.l.b16 %v477
        %v1657 = vunpack.c.h.b16 %v477
        %v1658 = vunpack.c.l.b16 %v478
        %v1659 = vunpack.c.h.b16 %v478
        %v1660 = vunpack.c.l.b16 %v479
        %v1661 = vunpack.c.h.b16 %v479
        %v1662 = vunpack.c.l.b16 %v480
        %v1663 = vunpack.c.h.b16 %v480
        %v1664 = vunpack.c.l.b16 %v481
        %v1665 = vunpack.c.h.b16 %v481
        %v1666 = vunpack.c.l.b16 %v482
        %v1667 = vunpack.c.h.b16 %v482
        %v1668 = vunpack.c.l.b16 %v483
        %v1669 = vunpack.c.h.b16 %v483
        %v1670 = vunpack.c.l.b16 %v484
        %v1671 = vunpack.c.h.b16 %v484
        %v1672 = vunpack.c.l.b16 %v485
        %v1673 = vunpack.c.h.b16 %v485
        %v1674 = vunpack.c.l.b16 %v486
        %v1675 = vunpack.c.h.b16 %v486
        %v1676 = vunpack.c.l.b16 %v487
        %v1677 = vunpack.c.h.b16 %v487
        %v1678 = vunpack.c.l.b16 %v488
        %v1679 = vunpack.c.h.b16 %v488
        %v1680 = vunpack.c.l.b16 %v489
        %v1681 = vunpack.c.h.b16 %v489
        %v1682 = vunpack.c.l.b16 %v490
        %v1683 = vunpack.c.h.b16 %v490
        %v1684 = vunpack.c.l.b16 %v491
        %v1685 = vunpack.c.h.b16 %v491
        %v1686 = vunpack.c.l.b16 %v492
        %v1687 = vunpack.c.h.b16 %v492
        %v1688 = vunpack.c.l.b16 %v493
        %v1689 = vunpack.c.h.b16 %v493
        %v1690 = vunpack.c.l.b16 %v494
        %v1691 = vunpack.c.h.b16 %v494
        %v1692 = vunpack.c.l.b16 %v495
        %v1693 = vunpack.c.h.b16 %v495
        %v1694 = vunpack.c.l.b16 %v496
        %v1695 = vunpack.c.h.b16 %v496
        %v1696 = vunpack.c.l.b16 %v497
        %v1697 = vunpack.c.h.b16 %v497
        %v1698 = vunpack.c.l.b16 %v498
        %v1699 = vunpack.c.h.b16 %v498
        %v1700 = vunpack.c.l.b16 %v499
        %v1701 = vunpack.c.h.b16 %v499
        %v1702 = vunpack.c.l.b16 %v500
        %v1703 = vunpack.c.h.b16 %v500
        %v1704 = vunpack.c.l.b16 %v501
        %v1705 = vunpack.c.h.b16 %v501
        %v1706 = vunpack.c.l.b16 %v502
        %v1707 = vunpack.c.h.b16 %v502
        %v1708 = vunpack.c.l.b16 %v503
        %v1709 = vunpack.c.h.b16 %v503
        %v1710 = vunpack.c.l.b16 %v504
        %v1711 = vunpack.c.h.b16 %v504
        %v1712 = vunpack.c.l.b16 %v505
        %v1713 = vunpack.c.h.b16 %v505
        %v1714 = vunpack.c.l.b16 %v506
        %v1715 = vunpack.c.h.b16 %v506
        %v1716 = vunpack.c.l.b16 %v507
        %v1717 = vunpack.c.h.b16 %v507
        %v1718 = vunpack.c.l.b16 %v508
        %v1719 = vunpack.c.h.b16 %v508
        %v1720 = vunpack.c.l.b16 %v509
        %v1721 = vunpack.c.h.b16 %v509
        %v1722 = vunpack.c.l.b16 %v510
        %v1723 = vunpack.c.h.b16 %v510
        %v1724 = vunpack.c.l.b16 %v511
        %v1725 = vunpack.c.h.b16 %v511
        %v1726 = vunpack.c.l.b16 %v512
        %v1727 = vunpack.c.h.b16 %v512
        %v1728 = vunpack.c.l.b16 %v513
        %v1729 = vunpack.c.h.b16 %v513
        %v1730 = vunpack.c.l.b16 %v514
        %v1731 = vunpack.c.h.b16 %v514
        %v1732 = vunpack.c.l.b16 %v515
        %v1733 = vunpack.c.h.b16 %v515
        %v1734 = vunpack.c.l.b16 %v516
        %v1735 = vunpack.c.h.b16 %v516
        %v1736 = vunpack.c.l.b16 %v517
        %v1737 = vunpack.c.h.b16 %v517
        %v1738 = vunpack.c.l.b16 %v518
        %v1739 = vunpack.c.h.b16 %v518
        %v1740 = vunpack.c.l.b16 %v519
        %v1741 = vunpack.c.h.b16 %v519
        %v1742 = vunpack.c.l.b16 %v520
        %v1743 = vunpack.c.h.b16 %v520
        %v1744 = vunpack.c.l.b16 %v521
        %v1745 = vunpack.c.h.b16 %v521
        %v1746 = vunpack.c.l.b16 %v522
        %v1747 = vunpack.c.h.b16 %v522
        %v1748 = vunpack.c.l.b16 %v523
        %v1749 = vunpack.c.h.b16 %v523
        %v1750 = vunpack.c.l.b16 %v524
        %v1751 = vunpack.c.h.b16 %v524
        %v1752 = vunpack.c.l.b16 %v525
        %v1753 = vunpack.c.h.b16 %v525
        %v1754 = vunpack.c.l.b16 %v526
        %v1755 = vunpack.c.h.b16 %v526
        %v1756 = vunpack.c.l.b16 %v527
        %v1757 = vunpack.c.h.b16 %v527
        %v1758 = vunpack.c.l.b16 %v528
        %v1759 = vunpack.c.h.b16 %v528
        %v1760 = vunpack.c.l.b16 %v529
        %v1761 = vunpack.c.h.b16 %v529
        %v1762 = vunpack.c.l.b16 %v530
        %v1763 = vunpack.c.h.b16 %v530
        %v1764 = vunpack.c.l.b16 %v531
        %v1765 = vunpack.c.h.b16 %v531
        %v1766 = vunpack.c.l.b16 %v532
        %v1767 = vunpack.c.h.b16 %v532
        %v1768 = vunpack.c.l.b16 %v533
        %v1769 = vunpack.c.h.b16 %v533
        %v1770 = vunpack.c.l.b16 %v534
        %v1771 = vunpack.c.h.b16 %v534
        %v1772 = vunpack.c.l.b16 %v535
        %v1773 = vunpack.c.h.b16 %v535
        %v1774 = vunpack.c.l.b16 %v536
        %v1775 = vunpack.c.h.b16 %v536
        %v1776 = vunpack.c.l.b16 %v537
        %v1777 = vunpack.c.h.b16 %v537
        %v1778 = vunpack.c.l.b16 %v538
        %v1779 = vunpack.c.h.b16 %v538
        %v1780 = vunpack.c.l.b16 %v539
        %v1781 = vunpack.c.h.b16 %v539
        %v1782 = vunpack.c.l.b16 %v540
        %v1783 = vunpack.c.h.b16 %v540
        %v1784 = vunpack.c.l.b16 %v541
        %v1785 = vunpack.c.h.b16 %v541
        %v1786 = vunpack.c.l.b16 %v542
        %v1787 = vunpack.c.h.b16 %v542
        %v1788 = vunpack.c.l.b16 %v543
        %v1789 = vunpack.c.h.b16 %v543
        %v1790 = vunpack.c.l.b16 %v544
        %v1791 = vunpack.c.h.b16 %v544
        %v1792 = vunpack.c.l.b16 %v545
        %v1793 = vunpack.c.h.b16 %v545
        %v1794 = vunpack.c.l.b16 %v546
        %v1795 = vunpack.c.h.b16 %v546
        %v1796 = vunpack.c.l.b16 %v547
        %v1797 = vunpack.c.h.b16 %v547
        %v1798 = vunpack.c.l.b16 %v548
        %v1799 = vunpack.c.h.b16 %v548
        %v1800 = vunpack.c.l.b16 %v549
        %v1801 = vunpack.c.h.b16 %v549
        %v1802 = vunpack.c.l.b16 %v550
        %v1803 = vunpack.c.h.b16 %v550
        %v1804 = vunpack.c.l.b16 %v551
        %v1805 = vunpack.c.h.b16 %v551
        %v1806 = vunpack.c.l.b16 %v552
        %v1807 = vunpack.c.h.b16 %v552
        %v1808 = vunpack.c.l.b16 %v553
        %v1809 = vunpack.c.h.b16 %v553
        %v1810 = vunpack.c.l.b16 %v554
        %v1811 = vunpack.c.h.b16 %v554
        %v1812 = vunpack.c.l.b16 %v555
        %v1813 = vunpack.c.h.b16 %v555
        %v1814 = vunpack.c.l.b16 %v556
        %v1815 = vunpack.c.h.b16 %v556
        %v1816 = vunpack.c.l.b16 %v557
        %v1817 = vunpack.c.h.b16 %v557
        %v1818 = vunpack.c.l.b16 %v558
        %v1819 = vunpack.c.h.b16 %v558
        %v1820 = vunpack.c.l.b16 %v559
        %v1821 = vunpack.c.h.b16 %v559
        %v1822 = vunpack.c.l.b16 %v560
        %v1823 = vunpack.c.h.b16 %v560
        %v1824 = vunpack.c.l.b16 %v561
        %v1825 = vunpack.c.h.b16 %v561
        %v1826 = vunpack.c.l.b16 %v562
        %v1827 = vunpack.c.h.b16 %v562
        %v1828 = vunpack.c.l.b16 %v563
        %v1829 = vunpack.c.h.b16 %v563
        %v1830 = vunpack.c.l.b16 %v564
        %v1831 = vunpack.c.h.b16 %v564
        %v1832 = vunpack.c.l.b16 %v565
        %v1833 = vunpack.c.h.b16 %v565
        %v1834 = vunpack.c.l.b16 %v566
        %v1835 = vunpack.c.h.b16 %v566
        %v1836 = vunpack.c.l.b16 %v567
        %v1837 = vunpack.c.h.b16 %v567
        %v1838 = vunpack.c.l.b16 %v568
        %v1839 = vunpack.c.h.b16 %v568
        %v1840 = vunpack.c.l.b16 %v569
        %v1841 = vunpack.c.h.b16 %v569
        %v1842 = vunpack.c.l.b16 %v570
        %v1843 = vunpack.c.h.b16 %v570
        %v1844 = vunpack.c.l.b16 %v571
        %v1845 = vunpack.c.h.b16 %v571
        %v1846 = vunpack.c.l.b16 %v572
        %v1847 = vunpack.c.h.b16 %v572
        %v1848 = vunpack.c.l.b16 %v573
        %v1849 = vunpack.c.h.b16 %v573
        %v1850 = vunpack.c.l.b16 %v574
        %v1851 = vunpack.c.h.b16 %v574
        %v1852 = vunpack.c.l.b16 %v575
        %v1853 = vunpack.c.h.b16 %v575
        %v1854 = vunpack.c.l.b16 %v576
        %v1855 = vunpack.c.h.b16 %v576
        %v1856 = vunpack.c.l.b16 %v577
        %v1857 = vunpack.c.h.b16 %v577
        %v1858 = vunpack.c.l.b16 %v578
        %v1859 = vunpack.c.h.b16 %v578
        %v1860 = vunpack.c.l.b16 %v579
        %v1861 = vunpack.c.h.b16 %v579
        %v1862 = vunpack.c.l.b16 %v580
        %v1863 = vunpack.c.h.b16 %v580
        %v1864 = vunpack.c.l.b16 %v581
        %v1865 = vunpack.c.h.b16 %v581
        %v1866 = vunpack.c.l.b16 %v582
        %v1867 = vunpack.c.h.b16 %v582
        %v1868 = vunpack.c.l.b16 %v583
        %v1869 = vunpack.c.h.b16 %v583
        %v1870 = vunpack.c.l.b16 %v584
        %v1871 = vunpack.c.h.b16 %v584
        %v1872 = vunpack.c.l.b16 %v585
        %v1873 = vunpack.c.h.b16 %v585
        %v1874 = vunpack.c.l.b16 %v586
        %v1875 = vunpack.c.h.b16 %v586
        %v1876 = vunpack.c.l.b16 %v587
        %v1877 = vunpack.c.h.b16 %v587
        %v1878 = vunpack.c.l.b16 %v588
        %v1879 = vunpack.c.h.b16 %v588
        %v1880 = vunpack.c.l.b16 %v589
        %v1881 = vunpack.c.h.b16 %v589
        %v1882 = vunpack.c.l.b16 %v590
        %v1883 = vunpack.c.h.b16 %v590
        %v1884 = vunpack.c.l.b16 %v591
        %v1885 = vunpack.c.h.b16 %v591
        %v1886 = vunpack.c.l.b16 %v592
        %v1887 = vunpack.c.h.b16 %v592
        %v1888 = vunpack.c.l.b16 %v593
        %v1889 = vunpack.c.h.b16 %v593
        %v1890 = vunpack.c.l.b16 %v594
        %v1891 = vunpack.c.h.b16 %v594
        %v1892 = vunpack.c.l.b16 %v595
        %v1893 = vunpack.c.h.b16 %v595
        %v1894 = vunpack.c.l.b16 %v596
        %v1895 = vunpack.c.h.b16 %v596
        %v1896 = vunpack.c.l.b16 %v597
        %v1897 = vunpack.c.h.b16 %v597
        %v1898 = vunpack.c.l.b16 %v598
        %v1899 = vunpack.c.h.b16 %v598
        %v1900 = vunpack.c.l.b16 %v599
        %v1901 = vunpack.c.h.b16 %v599
        %v1902 = vunpack.c.l.b16 %v600
        %v1903 = vunpack.c.h.b16 %v600
        %v1904 = vunpack.c.l.b16 %v601
        %v1905 = vunpack.c.h.b16 %v601
        %v1906 = vunpack.c.l.b16 %v602
        %v1907 = vunpack.c.h.b16 %v602
        %v1908 = vunpack.c.l.b16 %v603
        %v1909 = vunpack.c.h.b16 %v603
        %v1910 = vunpack.c.l.b16 %v604
        %v1911 = vunpack.c.h.b16 %v604
        %v1912 = vunpack.c.l.b16 %v605
        %v1913 = vunpack.c.h.b16 %v605
        %v1914 = vunpack.c.l.b16 %v606
        %v1915 = vunpack.c.h.b16 %v606
        %v1916 = vunpack.c.l.b16 %v607
        %v1917 = vunpack.c.h.b16 %v607
        %v1918 = vunpack.c.l.b16 %v608
        %v1919 = vunpack.c.h.b16 %v608
        %v1920 = vunpack.c.l.b16 %v609
        %v1921 = vunpack.c.h.b16 %v609
        %v1922 = vunpack.c.l.b16 %v610
        %v1923 = vunpack.c.h.b16 %v610
        %v1924 = vunpack.c.l.b16 %v611
        %v1925 = vunpack.c.h.b16 %v611
        %v1926 = vunpack.c.l.b16 %v612
        %v1927 = vunpack.c.h.b16 %v612
        %v1928 = vunpack.c.l.b16 %v613
        %v1929 = vunpack.c.h.b16 %v613
        %v1930 = vunpack.c.l.b16 %v614
        %v1931 = vunpack.c.h.b16 %v614
        %v1932 = vunpack.c.l.b16 %v615
        %v1933 = vunpack.c.h.b16 %v615
        %v1934 = vunpack.c.l.b16 %v616
        %v1935 = vunpack.c.h.b16 %v616
        %v1936 = vunpack.c.l.b16 %v617
        %v1937 = vunpack.c.h.b16 %v617
        %v1938 = vunpack.c.l.b16 %v618
        %v1939 = vunpack.c.h.b16 %v618
        %v1940 = vunpack.c.l.b16 %v619
        %v1941 = vunpack.c.h.b16 %v619
        %v1942 = vunpack.c.l.b16 %v620
        %v1943 = vunpack.c.h.b16 %v620
        %v1944 = vunpack.c.l.b16 %v621
        %v1945 = vunpack.c.h.b16 %v621
        %v1946 = vunpack.c.l.b16 %v622
        %v1947 = vunpack.c.h.b16 %v622
        %v1948 = vunpack.c.l.b16 %v623
        %v1949 = vunpack.c.h.b16 %v623
        %v1950 = vunpack.c.l.b16 %v624
        %v1951 = vunpack.c.h.b16 %v624
        %v1952 = vunpack.c.l.b16 %v625
        %v1953 = vunpack.c.h.b16 %v625
        %v1954 = vunpack.c.l.b16 %v626
        %v1955 = vunpack.c.h.b16 %v626
        %v1956 = vunpack.c.l.b16 %v627
        %v1957 = vunpack.c.h.b16 %v627
        %v1958 = vunpack.c.l.b16 %v628
        %v1959 = vunpack.c.h.b16 %v628
        %v1960 = vunpack.c.l.b16 %v629
        %v1961 = vunpack.c.h.b16 %v629
        %v1962 = vunpack.c.l.b16 %v630
        %v1963 = vunpack.c.h.b16 %v630
        %v1964 = vunpack.c.l.b16 %v631
        %v1965 = vunpack.c.h.b16 %v631
        %v1966 = vunpack.c.l.b16 %v632
        %v1967 = vunpack.c.h.b16 %v632
        %v1968 = vunpack.c.l.b16 %v633
        %v1969 = vunpack.c.h.b16 %v633
        %v1970 = vunpack.c.l.b16 %v634
        %v1971 = vunpack.c.h.b16 %v634
        %v1972 = vunpack.c.l.b16 %v635
        %v1973 = vunpack.c.h.b16 %v635
        %v1974 = vunpack.c.l.b16 %v636
        %v1975 = vunpack.c.h.b16 %v636
        %v1976 = vunpack.c.l.b16 %v637
        %v1977 = vunpack.c.h.b16 %v637
        %v1978 = vunpack.c.l.b16 %v638
        %v1979 = vunpack.c.h.b16 %v638
        %v1980 = vunpack.c.l.b16 %v639
        %v1981 = vunpack.c.h.b16 %v639
        %v1982 = vunpack.c.l.b16 %v640
        %v1983 = vunpack.c.h.b16 %v640
        %v1984 = vunpack.c.l.b16 %v641
        %v1985 = vunpack.c.h.b16 %v641
        %v1986 = vunpack.c.l.b16 %v642
        %v1987 = vunpack.c.h.b16 %v642
        %v1988 = vunpack.c.l.b16 %v643
        %v1989 = vunpack.c.h.b16 %v643
        %v1990 = vunpack.c.l.b16 %v644
        %v1991 = vunpack.c.h.b16 %v644
        %v1992 = vunpack.c.l.b16 %v645
        %v1993 = vunpack.c.h.b16 %v645
        %v1994 = vunpack.c.l.b16 %v646
        %v1995 = vunpack.c.h.b16 %v646
        %v1996 = vunpack.c.l.b16 %v647
        %v1997 = vunpack.c.h.b16 %v647
        %v1998 = vunpack.c.l.b16 %v648
        %v1999 = vunpack.c.h.b16 %v648
        %v2000 = vunpack.c.l.b16 %v649
        %v2001 = vunpack.c.h.b16 %v649
        %v2002 = vunpack.c.l.b16 %v650
        %v2003 = vunpack.c.h.b16 %v650
        %v2004 = vunpack.c.l.b16 %v651
        %v2005 = vunpack.c.h.b16 %v651
        %v2006 = vunpack.c.l.b16 %v652
        %v2007 = vunpack.c.h.b16 %v652
        %v2008 = vunpack.c.l.b16 %v653
        %v2009 = vunpack.c.h.b16 %v653
        %v2010 = vunpack.c.l.b16 %v654
        %v2011 = vunpack.c.h.b16 %v654
        %v2012 = vunpack.c.l.b16 %v655
        %v2013 = vunpack.c.h.b16 %v655
        %v2014 = vunpack.c.l.b16 %v656
        %v2015 = vunpack.c.h.b16 %v656
        %v2016 = vunpack.c.l.b16 %v657
        %v2017 = vunpack.c.h.b16 %v657
        %v2018 = vunpack.c.l.b16 %v658
        %v2019 = vunpack.c.h.b16 %v658
        %v2020 = vunpack.c.l.b16 %v659
        %v2021 = vunpack.c.h.b16 %v659
        %v2022 = vunpack.c.l.b16 %v660
        %v2023 = vunpack.c.h.b16 %v660
        %v2024 = vunpack.c.l.b16 %v661
        %v2025 = vunpack.c.h.b16 %v661
        %v2026 = vunpack.c.l.b16 %v662
        %v2027 = vunpack.c.h.b16 %v662
        %v2028 = vunpack.c.l.b16 %v663
        %v2029 = vunpack.c.h.b16 %v663
        %v2030 = vunpack.c.l.b16 %v664
        %v2031 = vunpack.c.h.b16 %v664
        %v2032 = vunpack.c.l.b16 %v665
        %v2033 = vunpack.c.h.b16 %v665
        %v2034 = vunpack.c.l.b16 %v666
        %v2035 = vunpack.c.h.b16 %v666
        %v2036 = vunpack.c.l.b16 %v667
        %v2037 = vunpack.c.h.b16 %v667
        %v2038 = vunpack.c.l.b16 %v668
        %v2039 = vunpack.c.h.b16 %v668
        %v2040 = vunpack.c.l.b16 %v669
        %v2041 = vunpack.c.h.b16 %v669
        %v2042 = vunpack.c.l.b16 %v670
        %v2043 = vunpack.c.h.b16 %v670
        %v2044 = vunpack.c.l.b16 %v671
        %v2045 = vunpack.c.h.b16 %v671
        %v2046 = vunpack.c.l.b16 %v672
        %v2047 = vunpack.c.h.b16 %v672
        %v2048 = vunpack.c.l.b16 %v673
        %v2049 = vunpack.c.h.b16 %v673
        %v2050 = vunpack.c.l.b16 %v674
        %v2051 = vunpack.c.h.b16 %v674
        %v2052 = vunpack.c.l.b16 %v675
        %v2053 = vunpack.c.h.b16 %v675
        %v2054 = vunpack.c.l.b16 %v676
        %v2055 = vunpack.c.h.b16 %v676
        %v2056 = vunpack.c.l.b16 %v677
        %v2057 = vunpack.c.h.b16 %v677
        %v2058 = vunpack.c.l.b16 %v678
        %v2059 = vunpack.c.h.b16 %v678
        %v2060 = vunpack.c.l.b16 %v679
        %v2061 = vunpack.c.h.b16 %v679
        %v2062 = vunpack.c.l.b16 %v680
        %v2063 = vunpack.c.h.b16 %v680
        %v2064 = vunpack.c.l.b16 %v681
        %v2065 = vunpack.c.h.b16 %v681
        %v2066 = vunpack.c.l.b16 %v682
        %v2067 = vunpack.c.h.b16 %v682
        %v2068 = vunpack.c.l.b16 %v683
        %v2069 = vunpack.c.h.b16 %v683
        %v2070 = vunpack.c.l.b16 %v684
        %v2071 = vunpack.c.h.b16 %v684
        %v2072 = vunpack.c.l.b16 %v685
        %v2073 = vunpack.c.h.b16 %v685
        %v2074 = vunpack.c.l.b16 %v686
        %v2075 = vunpack.c.h.b16 %v686
        %v2076 = vunpack.c.l.b16 %v687
        %v2077 = vunpack.c.h.b16 %v687
        %v2078 = vunpack.c.l.b16 %v688
        %v2079 = vunpack.c.h.b16 %v688
        %v2080 = vunpack.c.l.b16 %v689
        %v2081 = vunpack.c.h.b16 %v689
        %v2082 = vunpack.c.l.b16 %v690
        %v2083 = vunpack.c.h.b16 %v690
        %v2084 = vunpack.c.l.b16 %v691
        %v2085 = vunpack.c.h.b16 %v691
        %v2086 = vunpack.c.l.b16 %v692
        %v2087 = vunpack.c.h.b16 %v692
        %v2088 = vunpack.c.l.b16 %v693
        %v2089 = vunpack.c.h.b16 %v693
        %v2090 = vunpack.c.l.b16 %v694
        %v2091 = vunpack.c.h.b16 %v694
        %v2092 = vunpack.c.l.b16 %v695
        %v2093 = vunpack.c.h.b16 %v695
        %v2094 = vunpack.c.l.b16 %v696
        %v2095 = vunpack.c.h.b16 %v696
        %v2096 = vunpack.c.l.b16 %v697
        %v2097 = vunpack.c.h.b16 %v697
        %v2098 = vunpack.c.l.b16 %v698
        %v2099 = vunpack.c.h.b16 %v698
        %v2100 = vunpack.c.l.b16 %v699
        %v2101 = vunpack.c.h.b16 %v699
        %v2102 = vunpack.c.l.b16 %v700
        %v2103 = vunpack.c.h.b16 %v700
        %v2104 = vunpack.c.l.b16 %v701
        %v2105 = vunpack.c.h.b16 %v701
        %v2106 = vunpack.c.l.b16 %v702
        %v2107 = vunpack.c.h.b16 %v702
        %v2108 = vunpack.c.l.b16 %v703
        %v2109 = vunpack.c.h.b16 %v703
        %v2110 = vunpack.c.l.b16 %v704
        %v2111 = vunpack.c.h.b16 %v704
        %v2112 = vunpack.c.l.b16 %v705
        %v2113 = vunpack.c.h.b16 %v705
        %v2114 = vunpack.c.l.b16 %v706
        %v2115 = vunpack.c.h.b16 %v706
        %v2116 = vunpack.c.l.b16 %v707
        %v2117 = vunpack.c.h.b16 %v707
        %v2118 = vunpack.c.l.b16 %v708
        %v2119 = vunpack.c.h.b16 %v708
        %v2120 = vunpack.c.l.b16 %v709
        %v2121 = vunpack.c.h.b16 %v709
        %v2122 = vunpack.c.l.b16 %v710
        %v2123 = vunpack.c.h.b16 %v710
        %v2124 = vunpack.c.l.b16 %v711
        %v2125 = vunpack.c.h.b16 %v711
        %v2126 = vunpack.c.l.b16 %v712
        %v2127 = vunpack.c.h.b16 %v712
        %v2128 = vunpack.c.l.b16 %v713
        %v2129 = vunpack.c.h.b16 %v713
        %v2130 = vunpack.c.l.b16 %v714
        %v2131 = vunpack.c.h.b16 %v714
        %v2132 = vunpack.c.l.b16 %v715
        %v2133 = vunpack.c.h.b16 %v715
        %v2134 = vunpack.c.l.b16 %v716
        %v2135 = vunpack.c.h.b16 %v716
        %v2136 = vunpack.c.l.b16 %v717
        %v2137 = vunpack.c.h.b16 %v717
        %v2138 = vunpack.c.l.b16 %v718
        %v2139 = vunpack.c.h.b16 %v718
        %v2140 = vunpack.c.l.b16 %v719
        %v2141 = vunpack.c.h.b16 %v719
        %v2142 = vunpack.c.l.b16 %v720
        %v2143 = vunpack.c.h.b16 %v720
        %v2144 = vunpack.c.l.b16 %v721
        %v2145 = vunpack.c.h.b16 %v721
        %v2146 = vunpack.c.l.b16 %v722
        %v2147 = vunpack.c.h.b16 %v722
        %v2148 = vunpack.c.l.b16 %v723
        %v2149 = vunpack.c.h.b16 %v723
        %v2150 = vunpack.c.l.b16 %v724
        %v2151 = vunpack.c.h.b16 %v724
        %v2152 = vunpack.c.l.b16 %v725
        %v2153 = vunpack.c.h.b16 %v725
        %v2154 = vunpack.c.l.b16 %v726
        %v2155 = vunpack.c.h.b16 %v726
        %v2156 = vunpack.c.l.b16 %v727
        %v2157 = vunpack.c.h.b16 %v727
        %v2158 = vunpack.c.l.b16 %v728
        %v2159 = vunpack.c.h.b16 %v728
        %v2160 = vunpack.c.l.b16 %v729
        %v2161 = vunpack.c.h.b16 %v729
        %v2162 = vunpack.c.l.b16 %v730
        %v2163 = vunpack.c.h.b16 %v730
        %v2164 = vunpack.c.l.b16 %v731
        %v2165 = vunpack.c.h.b16 %v731
        %v2166 = vunpack.c.l.b16 %v732
        %v2167 = vunpack.c.h.b16 %v732
        %v2168 = vunpack.c.l.b16 %v733
        %v2169 = vunpack.c.h.b16 %v733
        %v2170 = vunpack.c.l.b16 %v734
        %v2171 = vunpack.c.h.b16 %v734
        %v2172 = vunpack.c.l.b16 %v735
        %v2173 = vunpack.c.h.b16 %v735
        %v2174 = vunpack.c.l.b16 %v736
        %v2175 = vunpack.c.h.b16 %v736
        %v2176 = vunpack.c.l.b16 %v737
        %v2177 = vunpack.c.h.b16 %v737
        %v2178 = vunpack.c.l.b16 %v738
        %v2179 = vunpack.c.h.b16 %v738
        %v2180 = vunpack.c.l.b16 %v739
        %v2181 = vunpack.c.h.b16 %v739
        %v2182 = vunpack.c.l.b16 %v740
        %v2183 = vunpack.c.h.b16 %v740
        %v2184 = vunpack.c.l.b16 %v741
        %v2185 = vunpack.c.h.b16 %v741
        %v2186 = vunpack.c.l.b16 %v742
        %v2187 = vunpack.c.h.b16 %v742
        %v2188 = vunpack.c.l.b16 %v743
        %v2189 = vunpack.c.h.b16 %v743
        %v2190 = vunpack.c.l.b16 %v744
        %v2191 = vunpack.c.h.b16 %v744
        %v2192 = vunpack.c.l.b16 %v745
        %v2193 = vunpack.c.h.b16 %v745
        %v2194 = vunpack.c.l.b16 %v746
        %v2195 = vunpack.c.h.b16 %v746
        %v2196 = vunpack.c.l.b16 %v747
        %v2197 = vunpack.c.h.b16 %v747
        %v2198 = vunpack.c.l.b16 %v748
        %v2199 = vunpack.c.h.b16 %v748
        %v2200 = vunpack.c.l.b16 %v749
        %v2201 = vunpack.c.h.b16 %v749
        %v2202 = vunpack.c.l.b16 %v750
        %v2203 = vunpack.c.h.b16 %v750
        %v2204 = vunpack.c.l.b16 %v751
        %v2205 = vunpack.c.h.b16 %v751
        %v2206 = vunpack.c.l.b16 %v752
        %v2207 = vunpack.c.h.b16 %v752
        %v2208 = vunpack.c.l.b16 %v753
        %v2209 = vunpack.c.h.b16 %v753
        %v2210 = vunpack.c.l.b16 %v754
        %v2211 = vunpack.c.h.b16 %v754
        %v2212 = vunpack.c.l.b16 %v755
        %v2213 = vunpack.c.h.b16 %v755
        %v2214 = vunpack.c.l.b16 %v756
        %v2215 = vunpack.c.h.b16 %v756
        %v2216 = vunpack.c.l.b16 %v757
        %v2217 = vunpack.c.h.b16 %v757
        %v2218 = vunpack.c.l.b16 %v758
        %v2219 = vunpack.c.h.b16 %v758
        %v2220 = vunpack.c.l.b16 %v759
        %v2221 = vunpack.c.h.b16 %v759
        %v2222 = vunpack.c.l.b16 %v760
        %v2223 = vunpack.c.h.b16 %v760
        %v2224 = vunpack.c.l.b16 %v761
        %v2225 = vunpack.c.h.b16 %v761
        %v2226 = vunpack.c.l.b16 %v762
        %v2227 = vunpack.c.h.b16 %v762
        %v2228 = vunpack.c.l.b16 %v763
        %v2229 = vunpack.c.h.b16 %v763
        %v2230 = vunpack.c.l.b16 %v764
        %v2231 = vunpack.c.h.b16 %v764
        %v2232 = vunpack.c.l.b16 %v765
        %v2233 = vunpack.c.h.b16 %v765
        %v2234 = vunpack.c.l.b16 %v766
        %v2235 = vunpack.c.h.b16 %v766
        %v2236 = vunpack.c.l.b16 %v767
        %v2237 = vunpack.c.h.b16 %v767
        %v2238 = vunpack.c.l.b16 %v768
        %v2239 = vunpack.c.h.b16 %v768
        %v2240 = vunpack.c.l.b16 %v769
        %v2241 = vunpack.c.h.b16 %v769
        %v2242 = vunpack.c.l.b16 %v770
        %v2243 = vunpack.c.h.b16 %v770
        %v2244 = vunpack.c.l.b16 %v771
        %v2245 = vunpack.c.h.b16 %v771
        %v2246 = vunpack.c.l.b16 %v772
        %v2247 = vunpack.c.h.b16 %v772
        %v2248 = vunpack.c.l.b16 %v773
        %v2249 = vunpack.c.h.b16 %v773
        %v2250 = vunpack.c.l.b16 %v774
        %v2251 = vunpack.c.h.b16 %v774
        %v2252 = vunpack.c.l.b16 %v775
        %v2253 = vunpack.c.h.b16 %v775
        %v2254 = vunpack.c.l.b16 %v776
        %v2255 = vunpack.c.h.b16 %v776
        %v2256 = vunpack.c.l.b16 %v777
        %v2257 = vunpack.c.h.b16 %v777
        %v2258 = vunpack.c.l.b16 %v778
        %v2259 = vunpack.c.h.b16 %v778
        %v2260 = vunpack.c.l.b16 %v779
        %v2261 = vunpack.c.h.b16 %v779
        %v2262 = vunpack.c.l.b16 %v780
        %v2263 = vunpack.c.h.b16 %v780
        %v2264 = vunpack.c.l.b16 %v781
        %v2265 = vunpack.c.h.b16 %v781
        %v2266 = vunpack.c.l.b16 %v782
        %v2267 = vunpack.c.h.b16 %v782
        %v2268 = vunpack.c.l.b16 %v783
        %v2269 = vunpack.c.h.b16 %v783
        %v2270 = vunpack.c.l.b16 %v784
        %v2271 = vunpack.c.h.b16 %v784
        %v2272 = vunpack.c.l.b16 %v785
        %v2273 = vunpack.c.h.b16 %v785
        %v2274 = vunpack.c.l.b16 %v786
        %v2275 = vunpack.c.h.b16 %v786
        %v2276 = vunpack.c.l.b16 %v787
        %v2277 = vunpack.c.h.b16 %v787
        %v2278 = vunpack.c.l.b16 %v788
        %v2279 = vunpack.c.h.b16 %v788
        %v2280 = vunpack.c.l.b16 %v789
        %v2281 = vunpack.c.h.b16 %v789
        %v2282 = vunpack.c.l.b16 %v790
        %v2283 = vunpack.c.h.b16 %v790
        %v2284 = vunpack.c.l.b16 %v791
        %v2285 = vunpack.c.h.b16 %v791
        %v2286 = vunpack.c.l.b16 %v792
        %v2287 = vunpack.c.h.b16 %v792
        %v2288 = vunpack.c.l.b16 %v793
        %v2289 = vunpack.c.h.b16 %v793
        %v2290 = vunpack.c.l.b16 %v794
        %v2291 = vunpack.c.h.b16 %v794
        %v2292 = vunpack.c.l.b16 %v795
        %v2293 = vunpack.c.h.b16 %v795
        %v2294 = vunpack.c.l.b16 %v796
        %v2295 = vunpack.c.h.b16 %v796
        %v2296 = vunpack.c.l.b16 %v797
        %v2297 = vunpack.c.h.b16 %v797
        %v2298 = vunpack.c.l.b16 %v798
        %v2299 = vunpack.c.h.b16 %v798
        %v2300 = vunpack.c.l.b16 %v799
        %v2301 = vunpack.c.h.b16 %v799
        %v2302 = vunpack.c.l.b16 %v800
        %v2303 = vunpack.c.h.b16 %v800
        %v2304 = vunpack.c.l.b16 %v801
        %v2305 = vunpack.c.h.b16 %v801
        %v2306 = vunpack.c.l.b16 %v802
        %v2307 = vunpack.c.h.b16 %v802
        %v2308 = vunpack.c.l.b16 %v803
        %v2309 = vunpack.c.h.b16 %v803
        %v2310 = vunpack.c.l.b16 %v804
        %v2311 = vunpack.c.h.b16 %v804
        %v2312 = vunpack.c.l.b16 %v805
        %v2313 = vunpack.c.h.b16 %v805
        %v2314 = vunpack.c.l.b16 %v806
        %v2315 = vunpack.c.h.b16 %v806
        %v2316 = vunpack.c.l.b16 %v807
        %v2317 = vunpack.c.h.b16 %v807
        %v2318 = vunpack.c.l.b16 %v808
        %v2319 = vunpack.c.h.b16 %v808
        %v2320 = vunpack.c.l.b16 %v809
        %v2321 = vunpack.c.h.b16 %v809
        %v2322 = vunpack.c.l.b16 %v810
        %v2323 = vunpack.c.h.b16 %v810
        %v2324 = vunpack.c.l.b16 %v811
        %v2325 = vunpack.c.h.b16 %v811
        %v2326 = vunpack.c.l.b16 %v812
        %v2327 = vunpack.c.h.b16 %v812
        %v2328 = vunpack.c.l.b16 %v813
        %v2329 = vunpack.c.h.b16 %v813
        %v2330 = vunpack.c.l.b16 %v814
        %v2331 = vunpack.c.h.b16 %v814
        %v2332 = vunpack.c.l.b16 %v815
        %v2333 = vunpack.c.h.b16 %v815
        %v2334 = vunpack.c.l.b16 %v816
        %v2335 = vunpack.c.h.b16 %v816
        %v2336 = vunpack.c.l.b16 %v817
        %v2337 = vunpack.c.h.b16 %v817
        %v2338 = vunpack.c.l.b16 %v818
        %v2339 = vunpack.c.h.b16 %v818
        %v2340 = vunpack.c.l.b16 %v819
        %v2341 = vunpack.c.h.b16 %v819
        %v2342 = vunpack.c.l.b16 %v820
        %v2343 = vunpack.c.h.b16 %v820
        %v2344 = vunpack.c.l.b16 %v821
        %v2345 = vunpack.c.h.b16 %v821
        %v2346 = vunpack.c.l.b16 %v822
        %v2347 = vunpack.c.h.b16 %v822
        %v2348 = vunpack.c.l.b16 %v823
        %v2349 = vunpack.c.h.b16 %v823
        %v2350 = vunpack.c.l.b16 %v824
        %v2351 = vunpack.c.h.b16 %v824
        %v2352 = vunpack.c.l.b16 %v825
        %v2353 = vunpack.c.h.b16 %v825
        %v2354 = vunpack.c.l.b16 %v826
        %v2355 = vunpack.c.h.b16 %v826
        %v2356 = vunpack.c.l.b16 %v827
        %v2357 = vunpack.c.h.b16 %v827
        %v2358 = vunpack.c.l.b16 %v828
        %v2359 = vunpack.c.h.b16 %v828
        %v2360 = vunpack.c.l.b16 %v829
        %v2361 = vunpack.c.h.b16 %v829
        %v2362 = vunpack.c.l.b16 %v830
        %v2363 = vunpack.c.h.b16 %v830
        %v2364 = vunpack.c.l.b16 %v831
        %v2365 = vunpack.c.h.b16 %v831
        %v2366 = vunpack.c.l.b16 %v832
        %v2367 = vunpack.c.h.b16 %v832
        %v2368 = vunpack.c.l.b16 %v833
        %v2369 = vunpack.c.h.b16 %v833
        %v2370 = vunpack.c.l.b16 %v834
        %v2371 = vunpack.c.h.b16 %v834
        %v2372 = vunpack.c.l.b16 %v835
        %v2373 = vunpack.c.h.b16 %v835
        %v2374 = vunpack.c.l.b16 %v836
        %v2375 = vunpack.c.h.b16 %v836
        %v2376 = vunpack.c.l.b16 %v837
        %v2377 = vunpack.c.h.b16 %v837
        %v2378 = vunpack.c.l.b16 %v838
        %v2379 = vunpack.c.h.b16 %v838
        %v2380 = vunpack.c.l.b16 %v839
        %v2381 = vunpack.c.h.b16 %v839
        %v2382 = vunpack.c.l.b16 %v840
        %v2383 = vunpack.c.h.b16 %v840
        %v2384 = vunpack.c.l.b16 %v841
        %v2385 = vunpack.c.h.b16 %v841
        %v2386 = vunpack.c.l.b16 %v842
        %v2387 = vunpack.c.h.b16 %v842
        %v2388 = vunpack.c.l.b16 %v843
        %v2389 = vunpack.c.h.b16 %v843
        %v2390 = vunpack.c.l.b16 %v844
        %v2391 = vunpack.c.h.b16 %v844
        %v2392 = vunpack.c.l.b16 %v845
        %v2393 = vunpack.c.h.b16 %v845
        %v2394 = vunpack.c.l.b16 %v846
        %v2395 = vunpack.c.h.b16 %v846
        %v2396 = vunpack.c.l.b16 %v847
        %v2397 = vunpack.c.h.b16 %v847
        %v2398 = vunpack.c.l.b16 %v848
        %v2399 = vunpack.c.h.b16 %v848
        %v2400 = vunpack.c.l.b16 %v849
        %v2401 = vunpack.c.h.b16 %v849
        %v2402 = vunpack.c.l.b16 %v850
        %v2403 = vunpack.c.h.b16 %v850
        %v2404 = vunpack.c.l.b16 %v851
        %v2405 = vunpack.c.h.b16 %v851
        %v2406 = vunpack.c.l.b16 %v852
        %v2407 = vunpack.c.h.b16 %v852
        %v2408 = vunpack.c.l.b16 %v853
        %v2409 = vunpack.c.h.b16 %v853
        %v2410 = vunpack.c.l.b16 %v854
        %v2411 = vunpack.c.h.b16 %v854
        %v2412 = vunpack.c.l.b16 %v855
        %v2413 = vunpack.c.h.b16 %v855
        %v2414 = vunpack.c.l.b16 %v856
        %v2415 = vunpack.c.h.b16 %v856
        %v2416 = vunpack.c.l.b16 %v857
        %v2417 = vunpack.c.h.b16 %v857
        %v2418 = vunpack.c.l.b16 %v858
        %v2419 = vunpack.c.h.b16 %v858
        %v2420 = vunpack.c.l.b16 %v859
        %v2421 = vunpack.c.h.b16 %v859
        %v2422 = vunpack.c.l.b16 %v860
        %v2423 = vunpack.c.h.b16 %v860
        %v2424 = vunpack.c.l.b16 %v861
        %v2425 = vunpack.c.h.b16 %v861
        %v2426 = vunpack.c.l.b16 %v862
        %v2427 = vunpack.c.h.b16 %v862
        %v2428 = vunpack.c.l.b16 %v863
        %v2429 = vunpack.c.h.b16 %v863
        %v2430 = vunpack.c.l.b16 %v864
        %v2431 = vunpack.c.h.b16 %v864
        %v2432 = vunpack.c.l.b16 %v865
        %v2433 = vunpack.c.h.b16 %v865
        %v2434 = vunpack.c.l.b16 %v866
        %v2435 = vunpack.c.h.b16 %v866
        %v2436 = vunpack.c.l.b16 %v867
        %v2437 = vunpack.c.h.b16 %v867
        %v2438 = vunpack.c.l.b16 %v868
        %v2439 = vunpack.c.h.b16 %v868
        %v2440 = vunpack.c.l.b16 %v869
        %v2441 = vunpack.c.h.b16 %v869
        %v2442 = vunpack.c.l.b16 %v870
        %v2443 = vunpack.c.h.b16 %v870
        %v2444 = vunpack.c.l.b16 %v871
        %v2445 = vunpack.c.h.b16 %v871
        %v2446 = vunpack.c.l.b16 %v872
        %v2447 = vunpack.c.h.b16 %v872
        %v2448 = vunpack.c.l.b16 %v873
        %v2449 = vunpack.c.h.b16 %v873
        %v2450 = vunpack.c.l.b16 %v874
        %v2451 = vunpack.c.h.b16 %v874
        %v2452 = vunpack.c.l.b16 %v875
        %v2453 = vunpack.c.h.b16 %v875
        %v2454 = vunpack.c.l.b16 %v876
        %v2455 = vunpack.c.h.b16 %v876
        %v2456 = vunpack.c.l.b16 %v877
        %v2457 = vunpack.c.h.b16 %v877
        %v2458 = vunpack.c.l.b16 %v878
        %v2459 = vunpack.c.h.b16 %v878
        %v2460 = vunpack.c.l.b16 %v879
        %v2461 = vunpack.c.h.b16 %v879
        %v2462 = vunpack.c.l.b16 %v880
        %v2463 = vunpack.c.h.b16 %v880
        %v2464 = vunpack.c.l.b16 %v881
        %v2465 = vunpack.c.h.b16 %v881
        %v2466 = vunpack.c.l.b16 %v882
        %v2467 = vunpack.c.h.b16 %v882
        %v2468 = vunpack.c.l.b16 %v883
        %v2469 = vunpack.c.h.b16 %v883
        %v2470 = vunpack.c.l.b16 %v884
        %v2471 = vunpack.c.h.b16 %v884
        %v2472 = vunpack.c.l.b16 %v885
        %v2473 = vunpack.c.h.b16 %v885
        %v2474 = vunpack.c.l.b16 %v886
        %v2475 = vunpack.c.h.b16 %v886
        %v2476 = vunpack.c.l.b16 %v887
        %v2477 = vunpack.c.h.b16 %v887
        %v2478 = vunpack.c.l.b16 %v888
        %v2479 = vunpack.c.h.b16 %v888
        %v2480 = vunpack.c.l.b16 %v889
        %v2481 = vunpack.c.h.b16 %v889
        %v2482 = vunpack.c.l.b16 %v890
        %v2483 = vunpack.c.h.b16 %v890
        %v2484 = vunpack.c.l.b16 %v891
        %v2485 = vunpack.c.h.b16 %v891
        %v2486 = vpack.c.b16 %v1470, %v1462
        %v2487 = vpack.c.b16 %v1471, %v1463
        %v2488 = vpack.c.b16 %v1472, %v1464
        %v2489 = vpack.c.b16 %v1473, %v1465
        %v2490 = vpack.c.b16 %v1474, %v1466
        %v2491 = vpack.c.b16 %v1475, %v1467
        %v2492 = vpack.c.b16 %v1476, %v1468
        %v2493 = vpack.c.b16 %v1477, %v1469
        %v2494 = vpack.c.b16 %v1486, %v1478
        %v2495 = vpack.c.b16 %v1487, %v1479
        %v2496 = vpack.c.b16 %v1488, %v1480
        %v2497 = vpack.c.b16 %v1489, %v1481
        %v2498 = vpack.c.b16 %v1490, %v1482
        %v2499 = vpack.c.b16 %v1491, %v1483
        %v2500 = vpack.c.b16 %v1492, %v1484
        %v2501 = vpack.c.b16 %v1493, %v1485
        %v2502 = vpack.c.b16 %v1502, %v1494
        %v2503 = vpack.c.b16 %v1503, %v1495
        %v2504 = vpack.c.b16 %v1504, %v1496
        %v2505 = vpack.c.b16 %v1505, %v1497
        %v2506 = vpack.c.b16 %v1506, %v1498
        %v2507 = vpack.c.b16 %v1507, %v1499
        %v2508 = vpack.c.b16 %v1508, %v1500
        %v2509 = vpack.c.b16 %v1509, %v1501
        %v2510 = vpack.c.b16 %v1518, %v1510
        %v2511 = vpack.c.b16 %v1519, %v1511
        %v2512 = vpack.c.b16 %v1520, %v1512
        %v2513 = vpack.c.b16 %v1521, %v1513
        %v2514 = vpack.c.b16 %v1522, %v1514
        %v2515 = vpack.c.b16 %v1523, %v1515
        %v2516 = vpack.c.b16 %v1524, %v1516
        %v2517 = vpack.c.b16 %v1525, %v1517
        %v2518 = vpack.c.b16 %v1534, %v1526
        %v2519 = vpack.c.b16 %v1535, %v1527
        %v2520 = vpack.c.b16 %v1536, %v1528
        %v2521 = vpack.c.b16 %v1537, %v1529
        %v2522 = vpack.c.b16 %v1538, %v1530
        %v2523 = vpack.c.b16 %v1539, %v1531
        %v2524 = vpack.c.b16 %v1540, %v1532
        %v2525 = vpack.c.b16 %v1541, %v1533
        %v2526 = vpack.c.b16 %v1550, %v1542
        %v2527 = vpack.c.b16 %v1551, %v1543
        %v2528 = vpack.c.b16 %v1552, %v1544
        %v2529 = vpack.c.b16 %v1553, %v1545
        %v2530 = vpack.c.b16 %v1554, %v1546
        %v2531 = vpack.c.b16 %v1555, %v1547
        %v2532 = vpack.c.b16 %v1556, %v1548
        %v2533 = vpack.c.b16 %v1557, %v1549
        %v2534 = vpack.c.b16 %v1566, %v1558
        %v2535 = vpack.c.b16 %v1567, %v1559
        %v2536 = vpack.c.b16 %v1568, %v1560
        %v2537 = vpack.c.b16 %v1569, %v1561
        %v2538 = vpack.c.b16 %v1570, %v1562
        %v2539 = vpack.c.b16 %v1571, %v1563
        %v2540 = vpack.c.b16 %v1572, %v1564
        %v2541 = vpack.c.b16 %v1573, %v1565
        %v2542 = vpack.c.b16 %v1582, %v1574
        %v2543 = vpack.c.b16 %v1583, %v1575
        %v2544 = vpack.c.b16 %v1584, %v1576
        %v2545 = vpack.c.b16 %v1585, %v1577
        %v2546 = vpack.c.b16 %v1586, %v1578
        %v2547 = vpack.c.b16 %v1587, %v1579
        %v2548 = vpack.c.b16 %v1588, %v1580
        %v2549 = vpack.c.b16 %v1589, %v1581
        %v2550 = vpack.c.b16 %v1598, %v1590
        %v2551 = vpack.c.b16 %v1599, %v1591
        %v2552 = vpack.c.b16 %v1600, %v1592
        %v2553 = vpack.c.b16 %v1601, %v1593
        %v2554 = vpack.c.b16 %v1602, %v1594
        %v2555 = vpack.c.b16 %v1603, %v1595
        %v2556 = vpack.c.b16 %v1604, %v1596
        %v2557 = vpack.c.b16 %v1605, %v1597
        %v2558 = vpack.c.b16 %v1614, %v1606
        %v2559 = vpack.c.b16 %v1615, %v1607
        %v2560 = vpack.c.b16 %v1616, %v1608
        %v2561 = vpack.c.b16 %v1617, %v1609
        %v2562 = vpack.c.b16 %v1618, %v1610
        %v2563 = vpack.c.b16 %v1619, %v1611
        %v2564 = vpack.c.b16 %v1620, %v1612
        %v2565 = vpack.c.b16 %v1621, %v1613
        %v2566 = vpack.c.b16 %v1630, %v1622
        %v2567 = vpack.c.b16 %v1631, %v1623
        %v2568 = vpack.c.b16 %v1632, %v1624
        %v2569 = vpack.c.b16 %v1633, %v1625
        %v2570 = vpack.c.b16 %v1634, %v1626
        %v2571 = vpack.c.b16 %v1635, %v1627
        %v2572 = vpack.c.b16 %v1636, %v1628
        %v2573 = vpack.c.b16 %v1637, %v1629
        %v2574 = vpack.c.b16 %v1646, %v1638
        %v2575 = vpack.c.b16 %v1647, %v1639
        %v2576 = vpack.c.b16 %v1648, %v1640
        %v2577 = vpack.c.b16 %v1649, %v1641
        %v2578 = vpack.c.b16 %v1650, %v1642
        %v2579 = vpack.c.b16 %v1651, %v1643
        %v2580 = vpack.c.b16 %v1652, %v1644
        %v2581 = vpack.c.b16 %v1653, %v1645
        %v2582 = vpack.c.b16 %v1662, %v1654
        %v2583 = vpack.c.b16 %v1663, %v1655
        %v2584 = vpack.c.b16 %v1664, %v1656
        %v2585 = vpack.c.b16 %v1665, %v1657
        %v2586 = vpack.c.b16 %v1666, %v1658
        %v2587 = vpack.c.b16 %v1667, %v1659
        %v2588 = vpack.c.b16 %v1668, %v1660
        %v2589 = vpack.c.b16 %v1669, %v1661
        %v2590 = vpack.c.b16 %v1678, %v1670
        %v2591 = vpack.c.b16 %v1679, %v1671
        %v2592 = vpack.c.b16 %v1680, %v1672
        %v2593 = vpack.c.b16 %v1681, %v1673
        %v2594 = vpack.c.b16 %v1682, %v1674
        %v2595 = vpack.c.b16 %v1683, %v1675
        %v2596 = vpack.c.b16 %v1684, %v1676
        %v2597 = vpack.c.b16 %v1685, %v1677
        %v2598 = vpack.c.b16 %v1694, %v1686
        %v2599 = vpack.c.b16 %v1695, %v1687
        %v2600 = vpack.c.b16 %v1696, %v1688
        %v2601 = vpack.c.b16 %v1697, %v1689
        %v2602 = vpack.c.b16 %v1698, %v1690
        %v2603 = vpack.c.b16 %v1699, %v1691
        %v2604 = vpack.c.b16 %v1700, %v1692
        %v2605 = vpack.c.b16 %v1701, %v1693
        %v2606 = vpack.c.b16 %v1710, %v1702
        %v2607 = vpack.c.b16 %v1711, %v1703
        %v2608 = vpack.c.b16 %v1712, %v1704
        %v2609 = vpack.c.b16 %v1713, %v1705
        %v2610 = vpack.c.b16 %v1714, %v1706
        %v2611 = vpack.c.b16 %v1715, %v1707
        %v2612 = vpack.c.b16 %v1716, %v1708
        %v2613 = vpack.c.b16 %v1717, %v1709
        %v2614 = vpack.c.b16 %v1726, %v1718
        %v2615 = vpack.c.b16 %v1727, %v1719
        %v2616 = vpack.c.b16 %v1728, %v1720
        %v2617 = vpack.c.b16 %v1729, %v1721
        %v2618 = vpack.c.b16 %v1730, %v1722
        %v2619 = vpack.c.b16 %v1731, %v1723
        %v2620 = vpack.c.b16 %v1732, %v1724
        %v2621 = vpack.c.b16 %v1733, %v1725
        %v2622 = vpack.c.b16 %v1742, %v1734
        %v2623 = vpack.c.b16 %v1743, %v1735
        %v2624 = vpack.c.b16 %v1744, %v1736
        %v2625 = vpack.c.b16 %v1745, %v1737
        %v2626 = vpack.c.b16 %v1746, %v1738
        %v2627 = vpack.c.b16 %v1747, %v1739
        %v2628 = vpack.c.b16 %v1748, %v1740
        %v2629 = vpack.c.b16 %v1749, %v1741
        %v2630 = vpack.c.b16 %v1758, %v1750
        %v2631 = vpack.c.b16 %v1759, %v1751
        %v2632 = vpack.c.b16 %v1760, %v1752
        %v2633 = vpack.c.b16 %v1761, %v1753
        %v2634 = vpack.c.b16 %v1762, %v1754
        %v2635 = vpack.c.b16 %v1763, %v1755
        %v2636 = vpack.c.b16 %v1764, %v1756
        %v2637 = vpack.c.b16 %v1765, %v1757
        %v2638 = vpack.c.b16 %v1774, %v1766
        %v2639 = vpack.c.b16 %v1775, %v1767
        %v2640 = vpack.c.b16 %v1776, %v1768
        %v2641 = vpack.c.b16 %v1777, %v1769
        %v2642 = vpack.c.b16 %v1778, %v1770
        %v2643 = vpack.c.b16 %v1779, %v1771
        %v2644 = vpack.c.b16 %v1780, %v1772
        %v2645 = vpack.c.b16 %v1781, %v1773
        %v2646 = vpack.c.b16 %v1790, %v1782
        %v2647 = vpack.c.b16 %v1791, %v1783
        %v2648 = vpack.c.b16 %v1792, %v1784
        %v2649 = vpack.c.b16 %v1793, %v1785
        %v2650 = vpack.c.b16 %v1794, %v1786
        %v2651 = vpack.c.b16 %v1795, %v1787
        %v2652 = vpack.c.b16 %v1796, %v1788
        %v2653 = vpack.c.b16 %v1797, %v1789
        %v2654 = vpack.c.b16 %v1806, %v1798
        %v2655 = vpack.c.b16 %v1807, %v1799
        %v2656 = vpack.c.b16 %v1808, %v1800
        %v2657 = vpack.c.b16 %v1809, %v1801
        %v2658 = vpack.c.b16 %v1810, %v1802
        %v2659 = vpack.c.b16 %v1811, %v1803
        %v2660 = vpack.c.b16 %v1812, %v1804
        %v2661 = vpack.c.b16 %v1813, %v1805
        %v2662 = vpack.c.b16 %v1822, %v1814
        %v2663 = vpack.c.b16 %v1823, %v1815
        %v2664 = vpack.c.b16 %v1824, %v1816
        %v2665 = vpack.c.b16 %v1825, %v1817
        %v2666 = vpack.c.b16 %v1826, %v1818
        %v2667 = vpack.c.b16 %v1827, %v1819
        %v2668 = vpack.c.b16 %v1828, %v1820
        %v2669 = vpack.c.b16 %v1829, %v1821
        %v2670 = vpack.c.b16 %v1838, %v1830
        %v2671 = vpack.c.b16 %v1839, %v1831
        %v2672 = vpack.c.b16 %v1840, %v1832
        %v2673 = vpack.c.b16 %v1841, %v1833
        %v2674 = vpack.c.b16 %v1842, %v1834
        %v2675 = vpack.c.b16 %v1843, %v1835
        %v2676 = vpack.c.b16 %v1844, %v1836
        %v2677 = vpack.c.b16 %v1845, %v1837
        %v2678 = vpack.c.b16 %v1854, %v1846
        %v2679 = vpack.c.b16 %v1855, %v1847
        %v2680 = vpack.c.b16 %v1856, %v1848
        %v2681 = vpack.c.b16 %v1857, %v1849
        %v2682 = vpack.c.b16 %v1858, %v1850
        %v2683 = vpack.c.b16 %v1859, %v1851
        %v2684 = vpack.c.b16 %v1860, %v1852
        %v2685 = vpack.c.b16 %v1861, %v1853
        %v2686 = vpack.c.b16 %v1870, %v1862
        %v2687 = vpack.c.b16 %v1871, %v1863
        %v2688 = vpack.c.b16 %v1872, %v1864
        %v2689 = vpack.c.b16 %v1873, %v1865
        %v2690 = vpack.c.b16 %v1874, %v1866
        %v2691 = vpack.c.b16 %v1875, %v1867
        %v2692 = vpack.c.b16 %v1876, %v1868
        %v2693 = vpack.c.b16 %v1877, %v1869
        %v2694 = vpack.c.b16 %v1886, %v1878
        %v2695 = vpack.c.b16 %v1887, %v1879
        %v2696 = vpack.c.b16 %v1888, %v1880
        %v2697 = vpack.c.b16 %v1889, %v1881
        %v2698 = vpack.c.b16 %v1890, %v1882
        %v2699 = vpack.c.b16 %v1891, %v1883
        %v2700 = vpack.c.b16 %v1892, %v1884
        %v2701 = vpack.c.b16 %v1893, %v1885
        %v2702 = vpack.c.b16 %v1902, %v1894
        %v2703 = vpack.c.b16 %v1903, %v1895
        %v2704 = vpack.c.b16 %v1904, %v1896
        %v2705 = vpack.c.b16 %v1905, %v1897
        %v2706 = vpack.c.b16 %v1906, %v1898
        %v2707 = vpack.c.b16 %v1907, %v1899
        %v2708 = vpack.c.b16 %v1908, %v1900
        %v2709 = vpack.c.b16 %v1909, %v1901
        %v2710 = vpack.c.b16 %v1918, %v1910
        %v2711 = vpack.c.b16 %v1919, %v1911
        %v2712 = vpack.c.b16 %v1920, %v1912
        %v2713 = vpack.c.b16 %v1921, %v1913
        %v2714 = vpack.c.b16 %v1922, %v1914
        %v2715 = vpack.c.b16 %v1923, %v1915
        %v2716 = vpack.c.b16 %v1924, %v1916
        %v2717 = vpack.c.b16 %v1925, %v1917
        %v2718 = vpack.c.b16 %v1934, %v1926
        %v2719 = vpack.c.b16 %v1935, %v1927
        %v2720 = vpack.c.b16 %v1936, %v1928
        %v2721 = vpack.c.b16 %v1937, %v1929
        %v2722 = vpack.c.b16 %v1938, %v1930
        %v2723 = vpack.c.b16 %v1939, %v1931
        %v2724 = vpack.c.b16 %v1940, %v1932
        %v2725 = vpack.c.b16 %v1941, %v1933
        %v2726 = vpack.c.b16 %v1950, %v1942
        %v2727 = vpack.c.b16 %v1951, %v1943
        %v2728 = vpack.c.b16 %v1952, %v1944
        %v2729 = vpack.c.b16 %v1953, %v1945
        %v2730 = vpack.c.b16 %v1954, %v1946
        %v2731 = vpack.c.b16 %v1955, %v1947
        %v2732 = vpack.c.b16 %v1956, %v1948
        %v2733 = vpack.c.b16 %v1957, %v1949
        %v2734 = vpack.c.b16 %v1966, %v1958
        %v2735 = vpack.c.b16 %v1967, %v1959
        %v2736 = vpack.c.b16 %v1968, %v1960
        %v2737 = vpack.c.b16 %v1969, %v1961
        %v2738 = vpack.c.b16 %v1970, %v1962
        %v2739 = vpack.c.b16 %v1971, %v1963
        %v2740 = vpack.c.b16 %v1972, %v1964
        %v2741 = vpack.c.b16 %v1973, %v1965
        %v2742 = vpack.c.b16 %v1982, %v1974
        %v2743 = vpack.c.b16 %v1983, %v1975
        %v2744 = vpack.c.b16 %v1984, %v1976
        %v2745 = vpack.c.b16 %v1985, %v1977
        %v2746 = vpack.c.b16 %v1986, %v1978
        %v2747 = vpack.c.b16 %v1987, %v1979
        %v2748 = vpack.c.b16 %v1988, %v1980
        %v2749 = vpack.c.b16 %v1989, %v1981
        %v2750 = vpack.c.b16 %v1998, %v1990
        %v2751 = vpack.c.b16 %v1999, %v1991
        %v2752 = vpack.c.b16 %v2000, %v1992
        %v2753 = vpack.c.b16 %v2001, %v1993
        %v2754 = vpack.c.b16 %v2002, %v1994
        %v2755 = vpack.c.b16 %v2003, %v1995
        %v2756 = vpack.c.b16 %v2004, %v1996
        %v2757 = vpack.c.b16 %v2005, %v1997
        %v2758 = vpack.c.b16 %v2014, %v2006
        %v2759 = vpack.c.b16 %v2015, %v2007
        %v2760 = vpack.c.b16 %v2016, %v2008
        %v2761 = vpack.c.b16 %v2017, %v2009
        %v2762 = vpack.c.b16 %v2018, %v2010
        %v2763 = vpack.c.b16 %v2019, %v2011
        %v2764 = vpack.c.b16 %v2020, %v2012
        %v2765 = vpack.c.b16 %v2021, %v2013
        %v2766 = vpack.c.b16 %v2030, %v2022
        %v2767 = vpack.c.b16 %v2031, %v2023
        %v2768 = vpack.c.b16 %v2032, %v2024
        %v2769 = vpack.c.b16 %v2033, %v2025
        %v2770 = vpack.c.b16 %v2034, %v2026
        %v2771 = vpack.c.b16 %v2035, %v2027
        %v2772 = vpack.c.b16 %v2036, %v2028
        %v2773 = vpack.c.b16 %v2037, %v2029
        %v2774 = vpack.c.b16 %v2046, %v2038
        %v2775 = vpack.c.b16 %v2047, %v2039
        %v2776 = vpack.c.b16 %v2048, %v2040
        %v2777 = vpack.c.b16 %v2049, %v2041
        %v2778 = vpack.c.b16 %v2050, %v2042
        %v2779 = vpack.c.b16 %v2051, %v2043
        %v2780 = vpack.c.b16 %v2052, %v2044
        %v2781 = vpack.c.b16 %v2053, %v2045
        %v2782 = vpack.c.b16 %v2062, %v2054
        %v2783 = vpack.c.b16 %v2063, %v2055
        %v2784 = vpack.c.b16 %v2064, %v2056
        %v2785 = vpack.c.b16 %v2065, %v2057
        %v2786 = vpack.c.b16 %v2066, %v2058
        %v2787 = vpack.c.b16 %v2067, %v2059
        %v2788 = vpack.c.b16 %v2068, %v2060
        %v2789 = vpack.c.b16 %v2069, %v2061
        %v2790 = vpack.c.b16 %v2078, %v2070
        %v2791 = vpack.c.b16 %v2079, %v2071
        %v2792 = vpack.c.b16 %v2080, %v2072
        %v2793 = vpack.c.b16 %v2081, %v2073
        %v2794 = vpack.c.b16 %v2082, %v2074
        %v2795 = vpack.c.b16 %v2083, %v2075
        %v2796 = vpack.c.b16 %v2084, %v2076
        %v2797 = vpack.c.b16 %v2085, %v2077
        %v2798 = vpack.c.b16 %v2094, %v2086
        %v2799 = vpack.c.b16 %v2095, %v2087
        %v2800 = vpack.c.b16 %v2096, %v2088
        %v2801 = vpack.c.b16 %v2097, %v2089
        %v2802 = vpack.c.b16 %v2098, %v2090
        %v2803 = vpack.c.b16 %v2099, %v2091
        %v2804 = vpack.c.b16 %v2100, %v2092
        %v2805 = vpack.c.b16 %v2101, %v2093
        %v2806 = vpack.c.b16 %v2110, %v2102
        %v2807 = vpack.c.b16 %v2111, %v2103
        %v2808 = vpack.c.b16 %v2112, %v2104
        %v2809 = vpack.c.b16 %v2113, %v2105
        %v2810 = vpack.c.b16 %v2114, %v2106
        %v2811 = vpack.c.b16 %v2115, %v2107
        %v2812 = vpack.c.b16 %v2116, %v2108
        %v2813 = vpack.c.b16 %v2117, %v2109
        %v2814 = vpack.c.b16 %v2126, %v2118
        %v2815 = vpack.c.b16 %v2127, %v2119
        %v2816 = vpack.c.b16 %v2128, %v2120
        %v2817 = vpack.c.b16 %v2129, %v2121
        %v2818 = vpack.c.b16 %v2130, %v2122
        %v2819 = vpack.c.b16 %v2131, %v2123
        %v2820 = vpack.c.b16 %v2132, %v2124
        %v2821 = vpack.c.b16 %v2133, %v2125
        %v2822 = vpack.c.b16 %v2142, %v2134
        %v2823 = vpack.c.b16 %v2143, %v2135
        %v2824 = vpack.c.b16 %v2144, %v2136
        %v2825 = vpack.c.b16 %v2145, %v2137
        %v2826 = vpack.c.b16 %v2146, %v2138
        %v2827 = vpack.c.b16 %v2147, %v2139
        %v2828 = vpack.c.b16 %v2148, %v2140
        %v2829 = vpack.c.b16 %v2149, %v2141
        %v2830 = vpack.c.b16 %v2158, %v2150
        %v2831 = vpack.c.b16 %v2159, %v2151
        %v2832 = vpack.c.b16 %v2160, %v2152
        %v2833 = vpack.c.b16 %v2161, %v2153
        %v2834 = vpack.c.b16 %v2162, %v2154
        %v2835 = vpack.c.b16 %v2163, %v2155
        %v2836 = vpack.c.b16 %v2164, %v2156
        %v2837 = vpack.c.b16 %v2165, %v2157
        %v2838 = vpack.c.b16 %v2174, %v2166
        %v2839 = vpack.c.b16 %v2175, %v2167
        %v2840 = vpack.c.b16 %v2176, %v2168
        %v2841 = vpack.c.b16 %v2177, %v2169
        %v2842 = vpack.c.b16 %v2178, %v2170
        %v2843 = vpack.c.b16 %v2179, %v2171
        %v2844 = vpack.c.b16 %v2180, %v2172
        %v2845 = vpack.c.b16 %v2181, %v2173
        %v2846 = vpack.c.b16 %v2190, %v2182
        %v2847 = vpack.c.b16 %v2191, %v2183
        %v2848 = vpack.c.b16 %v2192, %v2184
        %v2849 = vpack.c.b16 %v2193, %v2185
        %v2850 = vpack.c.b16 %v2194, %v2186
        %v2851 = vpack.c.b16 %v2195, %v2187
        %v2852 = vpack.c.b16 %v2196, %v2188
        %v2853 = vpack.c.b16 %v2197, %v2189
        %v2854 = vpack.c.b16 %v2206, %v2198
        %v2855 = vpack.c.b16 %v2207, %v2199
        %v2856 = vpack.c.b16 %v2208, %v2200
        %v2857 = vpack.c.b16 %v2209, %v2201
        %v2858 = vpack.c.b16 %v2210, %v2202
        %v2859 = vpack.c.b16 %v2211, %v2203
        %v2860 = vpack.c.b16 %v2212, %v2204
        %v2861 = vpack.c.b16 %v2213, %v2205
        %v2862 = vpack.c.b16 %v2222, %v2214
        %v2863 = vpack.c.b16 %v2223, %v2215
        %v2864 = vpack.c.b16 %v2224, %v2216
        %v2865 = vpack.c.b16 %v2225, %v2217
        %v2866 = vpack.c.b16 %v2226, %v2218
        %v2867 = vpack.c.b16 %v2227, %v2219
        %v2868 = vpack.c.b16 %v2228, %v2220
        %v2869 = vpack.c.b16 %v2229, %v2221
        %v2870 = vpack.c.b16 %v2238, %v2230
        %v2871 = vpack.c.b16 %v2239, %v2231
        %v2872 = vpack.c.b16 %v2240, %v2232
        %v2873 = vpack.c.b16 %v2241, %v2233
        %v2874 = vpack.c.b16 %v2242, %v2234
        %v2875 = vpack.c.b16 %v2243, %v2235
        %v2876 = vpack.c.b16 %v2244, %v2236
        %v2877 = vpack.c.b16 %v2245, %v2237
        %v2878 = vpack.c.b16 %v2254, %v2246
        %v2879 = vpack.c.b16 %v2255, %v2247
        %v2880 = vpack.c.b16 %v2256, %v2248
        %v2881 = vpack.c.b16 %v2257, %v2249
        %v2882 = vpack.c.b16 %v2258, %v2250
        %v2883 = vpack.c.b16 %v2259, %v2251
        %v2884 = vpack.c.b16 %v2260, %v2252
        %v2885 = vpack.c.b16 %v2261, %v2253
        %v2886 = vpack.c.b16 %v2270, %v2262
        %v2887 = vpack.c.b16 %v2271, %v2263
        %v2888 = vpack.c.b16 %v2272, %v2264
        %v2889 = vpack.c.b16 %v2273, %v2265
        %v2890 = vpack.c.b16 %v2274, %v2266
        %v2891 = vpack.c.b16 %v2275, %v2267
        %v2892 = vpack.c.b16 %v2276, %v2268
        %v2893 = vpack.c.b16 %v2277, %v2269
        %v2894 = vpack.c.b16 %v2286, %v2278
        %v2895 = vpack.c.b16 %v2287, %v2279
        %v2896 = vpack.c.b16 %v2288, %v2280
        %v2897 = vpack.c.b16 %v2289, %v2281
        %v2898 = vpack.c.b16 %v2290, %v2282
        %v2899 = vpack.c.b16 %v2291, %v2283
        %v2900 = vpack.c.b16 %v2292, %v2284
        %v2901 = vpack.c.b16 %v2293, %v2285
        %v2902 = vpack.c.b16 %v2302, %v2294
        %v2903 = vpack.c.b16 %v2303, %v2295
        %v2904 = vpack.c.b16 %v2304, %v2296
        %v2905 = vpack.c.b16 %v2305, %v2297
        %v2906 = vpack.c.b16 %v2306, %v2298
        %v2907 = vpack.c.b16 %v2307, %v2299
        %v2908 = vpack.c.b16 %v2308, %v2300
        %v2909 = vpack.c.b16 %v2309, %v2301
        %v2910 = vpack.c.b16 %v2318, %v2310
        %v2911 = vpack.c.b16 %v2319, %v2311
        %v2912 = vpack.c.b16 %v2320, %v2312
        %v2913 = vpack.c.b16 %v2321, %v2313
        %v2914 = vpack.c.b16 %v2322, %v2314
        %v2915 = vpack.c.b16 %v2323, %v2315
        %v2916 = vpack.c.b16 %v2324, %v2316
        %v2917 = vpack.c.b16 %v2325, %v2317
        %v2918 = vpack.c.b16 %v2334, %v2326
        %v2919 = vpack.c.b16 %v2335, %v2327
        %v2920 = vpack.c.b16 %v2336, %v2328
        %v2921 = vpack.c.b16 %v2337, %v2329
        %v2922 = vpack.c.b16 %v2338, %v2330
        %v2923 = vpack.c.b16 %v2339, %v2331
        %v2924 = vpack.c.b16 %v2340, %v2332
        %v2925 = vpack.c.b16 %v2341, %v2333
        %v2926 = vpack.c.b16 %v2350, %v2342
        %v2927 = vpack.c.b16 %v2351, %v2343
        %v2928 = vpack.c.b16 %v2352, %v2344
        %v2929 = vpack.c.b16 %v2353, %v2345
        %v2930 = vpack.c.b16 %v2354, %v2346
        %v2931 = vpack.c.b16 %v2355, %v2347
        %v2932 = vpack.c.b16 %v2356, %v2348
        %v2933 = vpack.c.b16 %v2357, %v2349
        %v2934 = vpack.c.b16 %v2366, %v2358
        %v2935 = vpack.c.b16 %v2367, %v2359
        %v2936 = vpack.c.b16 %v2368, %v2360
        %v2937 = vpack.c.b16 %v2369, %v2361
        %v2938 = vpack.c.b16 %v2370, %v2362
        %v2939 = vpack.c.b16 %v2371, %v2363
        %v2940 = vpack.c.b16 %v2372, %v2364
        %v2941 = vpack.c.b16 %v2373, %v2365
        %v2942 = vpack.c.b16 %v2382, %v2374
        %v2943 = vpack.c.b16 %v2383, %v2375
        %v2944 = vpack.c.b16 %v2384, %v2376
        %v2945 = vpack.c.b16 %v2385, %v2377
        %v2946 = vpack.c.b16 %v2386, %v2378
        %v2947 = vpack.c.b16 %v2387, %v2379
        %v2948 = vpack.c.b16 %v2388, %v2380
        %v2949 = vpack.c.b16 %v2389, %v2381
        %v2950 = vpack.c.b16 %v2398, %v2390
        %v2951 = vpack.c.b16 %v2399, %v2391
        %v2952 = vpack.c.b16 %v2400, %v2392
        %v2953 = vpack.c.b16 %v2401, %v2393
        %v2954 = vpack.c.b16 %v2402, %v2394
        %v2955 = vpack.c.b16 %v2403, %v2395
        %v2956 = vpack.c.b16 %v2404, %v2396
        %v2957 = vpack.c.b16 %v2405, %v2397
        %v2958 = vpack.c.b16 %v2414, %v2406
        %v2959 = vpack.c.b16 %v2415, %v2407
        %v2960 = vpack.c.b16 %v2416, %v2408
        %v2961 = vpack.c.b16 %v2417, %v2409
        %v2962 = vpack.c.b16 %v2418, %v2410
        %v2963 = vpack.c.b16 %v2419, %v2411
        %v2964 = vpack.c.b16 %v2420, %v2412
        %v2965 = vpack.c.b16 %v2421, %v2413
        %v2966 = vpack.c.b16 %v2430, %v2422
        %v2967 = vpack.c.b16 %v2431, %v2423
        %v2968 = vpack.c.b16 %v2432, %v2424
        %v2969 = vpack.c.b16 %v2433, %v2425
        %v2970 = vpack.c.b16 %v2434, %v2426
        %v2971 = vpack.c.b16 %v2435, %v2427
        %v2972 = vpack.c.b16 %v2436, %v2428
        %v2973 = vpack.c.b16 %v2437, %v2429
        %v2974 = vpack.c.b16 %v2446, %v2438
        %v2975 = vpack.c.b16 %v2447, %v2439
        %v2976 = vpack.c.b16 %v2448, %v2440
        %v2977 = vpack.c.b16 %v2449, %v2441
        %v2978 = vpack.c.b16 %v2450, %v2442
        %v2979 = vpack.c.b16 %v2451, %v2443
        %v2980 = vpack.c.b16 %v2452, %v2444
        %v2981 = vpack.c.b16 %v2453, %v2445
        %v2982 = vpack.c.b16 %v2462, %v2454
        %v2983 = vpack.c.b16 %v2463, %v2455
        %v2984 = vpack.c.b16 %v2464, %v2456
        %v2985 = vpack.c.b16 %v2465, %v2457
        %v2986 = vpack.c.b16 %v2466, %v2458
        %v2987 = vpack.c.b16 %v2467, %v2459
        %v2988 = vpack.c.b16 %v2468, %v2460
        %v2989 = vpack.c.b16 %v2469, %v2461
        %v2990 = vpack.c.b16 %v2478, %v2470
        %v2991 = vpack.c.b16 %v2479, %v2471
        %v2992 = vpack.c.b16 %v2480, %v2472
        %v2993 = vpack.c.b16 %v2481, %v2473
        %v2994 = vpack.c.b16 %v2482, %v2474
        %v2995 = vpack.c.b16 %v2483, %v2475
        %v2996 = vpack.c.b16 %v2484, %v2476
        %v2997 = vpack.c.b16 %v2485, %v2477
        %3510 = vmatprep.subr.bf16.mxu0 %v2543
        %3511 = vmatpush1.bf16.xpose.msra.mxu0 %v2542
        %3512 = vmatprep.subr.bf16.mxu0 %v2535
        %3513 = vmatpush1.bf16.xpose.msra.mxu0 %v2534
        %3514 = vmatprep.subr.bf16.mxu0 %v2527
        %3515 = vmatpush1.bf16.xpose.msra.mxu0 %v2526
        %3516 = vmatprep.subr.bf16.mxu0 %v2519
        %3517 = vmatpush1.bf16.xpose.msra.mxu0 %v2518
        %3518 = vmatprep.subr.bf16.mxu0 %v2511
        %3519 = vmatpush1.bf16.xpose.msra.mxu0 %v2510
        %3520 = vmatprep.subr.bf16.mxu0 %v2503
        %3521 = vmatpush1.bf16.xpose.msra.mxu0 %v2502
        %3522 = vmatprep.subr.bf16.mxu0 %v2495
        %3523 = vmatpush1.bf16.xpose.msra.mxu0 %v2494
        %3524 = vmatprep.subr.bf16.mxu0 %v2487
        %3525 = vmatpush1.bf16.xpose.msra.mxu0 %v2486
        %3526 = vmatprep.subr.bf16.mxu0 %v2607
        %3527 = vmatpush2.bf16.xpose.msra.mxu0 %v2606
        %3528 = vmatprep.subr.bf16.mxu0 %v2599
        %3529 = vmatpush2.bf16.xpose.msra.mxu0 %v2598
        %3530 = vmatprep.subr.bf16.mxu0 %v2591
        %3531 = vmatpush2.bf16.xpose.msra.mxu0 %v2590
        %3532 = vmatprep.subr.bf16.mxu0 %v2583
        %3533 = vmatpush2.bf16.xpose.msra.mxu0 %v2582
        %3534 = vmatprep.subr.bf16.mxu0 %v2575
        %3535 = vmatpush2.bf16.xpose.msra.mxu0 %v2574
        %3536 = vmatprep.subr.bf16.mxu0 %v2567
        %3537 = vmatpush2.bf16.xpose.msra.mxu0 %v2566
        %3538 = vmatprep.subr.bf16.mxu0 %v2559
        %3539 = vmatpush2.bf16.xpose.msra.mxu0 %v2558
        %3540 = vmatprep.subr.bf16.mxu0 %v2551
        %3541 = vmatpush2.bf16.xpose.msra.mxu0 %v2550
        %3542 = vmatprep.mubr.bf16.mxu0 %v930
        %3543 = vmatmul.mubr.bf16.gmra.mxu0 %v916
        %v3544 = vpop.f32.mrf.mxu0
        %v3545 = vadd.f32 0.0, %v3544
        %v3546 = vpop.f32.mrf.mxu0
        %v3547 = vadd.f32 0.0, %v3546
        %v3548 = vpop.f32.mrf.mxu0
        %v3549 = vpop.f32.mrf.mxu0
        %3550 = vdwg.mxu0
        %3551 = vmatprep.subr.bf16.mxu0 %v2545
        %3552 = vmatpush1.bf16.xpose.msra.mxu0 %v2544
        %3553 = vmatprep.subr.bf16.mxu0 %v2537
        %3554 = vmatpush1.bf16.xpose.msra.mxu0 %v2536
        %3555 = vmatprep.subr.bf16.mxu0 %v2529
        %3556 = vmatpush1.bf16.xpose.msra.mxu0 %v2528
        %3557 = vmatprep.subr.bf16.mxu0 %v2521
        %3558 = vmatpush1.bf16.xpose.msra.mxu0 %v2520
        %3559 = vmatprep.subr.bf16.mxu0 %v2513
        %3560 = vmatpush1.bf16.xpose.msra.mxu0 %v2512
        %3561 = vmatprep.subr.bf16.mxu0 %v2505
        %3562 = vmatpush1.bf16.xpose.msra.mxu0 %v2504
        %3563 = vmatprep.subr.bf16.mxu0 %v2497
        %3564 = vmatpush1.bf16.xpose.msra.mxu0 %v2496
        %3565 = vmatprep.subr.bf16.mxu0 %v2489
        %3566 = vmatpush1.bf16.xpose.msra.mxu0 %v2488
        %3567 = vmatprep.subr.bf16.mxu0 %v2609
        %3568 = vmatpush2.bf16.xpose.msra.mxu0 %v2608
        %3569 = vmatprep.subr.bf16.mxu0 %v2601
        %3570 = vmatpush2.bf16.xpose.msra.mxu0 %v2600
        %3571 = vmatprep.subr.bf16.mxu0 %v2593
        %3572 = vmatpush2.bf16.xpose.msra.mxu0 %v2592
        %3573 = vmatprep.subr.bf16.mxu0 %v2585
        %3574 = vmatpush2.bf16.xpose.msra.mxu0 %v2584
        %3575 = vmatprep.subr.bf16.mxu0 %v2577
        %3576 = vmatpush2.bf16.xpose.msra.mxu0 %v2576
        %3577 = vmatprep.subr.bf16.mxu0 %v2569
        %3578 = vmatpush2.bf16.xpose.msra.mxu0 %v2568
        %3579 = vmatprep.subr.bf16.mxu0 %v2561
        %3580 = vmatpush2.bf16.xpose.msra.mxu0 %v2560
        %3581 = vmatprep.subr.bf16.mxu0 %v2553
        %3582 = vmatpush2.bf16.xpose.msra.mxu0 %v2552
        %3583 = vmatprep.mubr.bf16.mxu0 %v940
        %3584 = vmatmul.mubr.bf16.gmra.mxu0 %v938
        %v3585 = vpop.f32.mrf.mxu0
        %v3586 = vadd.f32 %v3545, %v3585
        %v3587 = vpop.f32.mrf.mxu0
        %v3588 = vadd.f32 %v3547, %v3587
        %v3589 = vpop.f32.mrf.mxu0
        %v3590 = vpop.f32.mrf.mxu0
        %3591 = vdwg.mxu0
        %3592 = vmatprep.subr.bf16.mxu0 %v2547
        %3593 = vmatpush1.bf16.xpose.msra.mxu0 %v2546
        %3594 = vmatprep.subr.bf16.mxu0 %v2539
        %3595 = vmatpush1.bf16.xpose.msra.mxu0 %v2538
        %3596 = vmatprep.subr.bf16.mxu0 %v2531
        %3597 = vmatpush1.bf16.xpose.msra.mxu0 %v2530
        %3598 = vmatprep.subr.bf16.mxu0 %v2523
        %3599 = vmatpush1.bf16.xpose.msra.mxu0 %v2522
        %3600 = vmatprep.subr.bf16.mxu0 %v2515
        %3601 = vmatpush1.bf16.xpose.msra.mxu0 %v2514
        %3602 = vmatprep.subr.bf16.mxu0 %v2507
        %3603 = vmatpush1.bf16.xpose.msra.mxu0 %v2506
        %3604 = vmatprep.subr.bf16.mxu0 %v2499
        %3605 = vmatpush1.bf16.xpose.msra.mxu0 %v2498
        %3606 = vmatprep.subr.bf16.mxu0 %v2491
        %3607 = vmatpush1.bf16.xpose.msra.mxu0 %v2490
        %3608 = vmatprep.subr.bf16.mxu0 %v2611
        %3609 = vmatpush2.bf16.xpose.msra.mxu0 %v2610
        %3610 = vmatprep.subr.bf16.mxu0 %v2603
        %3611 = vmatpush2.bf16.xpose.msra.mxu0 %v2602
        %3612 = vmatprep.subr.bf16.mxu0 %v2595
        %3613 = vmatpush2.bf16.xpose.msra.mxu0 %v2594
        %3614 = vmatprep.subr.bf16.mxu0 %v2587
        %3615 = vmatpush2.bf16.xpose.msra.mxu0 %v2586
        %3616 = vmatprep.subr.bf16.mxu0 %v2579
        %3617 = vmatpush2.bf16.xpose.msra.mxu0 %v2578
        %3618 = vmatprep.subr.bf16.mxu0 %v2571
        %3619 = vmatpush2.bf16.xpose.msra.mxu0 %v2570
        %3620 = vmatprep.subr.bf16.mxu0 %v2563
        %3621 = vmatpush2.bf16.xpose.msra.mxu0 %v2562
        %3622 = vmatprep.subr.bf16.mxu0 %v2555
        %3623 = vmatpush2.bf16.xpose.msra.mxu0 %v2554
        %3624 = vmatprep.mubr.bf16.mxu0 %v937
        %3625 = vmatmul.mubr.bf16.gmra.mxu0 %v923
        %v3626 = vpop.f32.mrf.mxu0
        %v3627 = vadd.f32 %v3586, %v3626
        %v3628 = vpop.f32.mrf.mxu0
        %v3629 = vadd.f32 %v3588, %v3628
        %v3630 = vpop.f32.mrf.mxu0
        %v3631 = vpop.f32.mrf.mxu0
        %3632 = vdwg.mxu0
        %3633 = vmatprep.subr.bf16.mxu0 %v2549
        %3634 = vmatpush1.bf16.xpose.msra.mxu0 %v2548
        %3635 = vmatprep.subr.bf16.mxu0 %v2541
        %3636 = vmatpush1.bf16.xpose.msra.mxu0 %v2540
        %3637 = vmatprep.subr.bf16.mxu0 %v2533
        %3638 = vmatpush1.bf16.xpose.msra.mxu0 %v2532
        %3639 = vmatprep.subr.bf16.mxu0 %v2525
        %3640 = vmatpush1.bf16.xpose.msra.mxu0 %v2524
        %3641 = vmatprep.subr.bf16.mxu0 %v2517
        %3642 = vmatpush1.bf16.xpose.msra.mxu0 %v2516
        %3643 = vmatprep.subr.bf16.mxu0 %v2509
        %3644 = vmatpush1.bf16.xpose.msra.mxu0 %v2508
        %3645 = vmatprep.subr.bf16.mxu0 %v2501
        %3646 = vmatpush1.bf16.xpose.msra.mxu0 %v2500
        %3647 = vmatprep.subr.bf16.mxu0 %v2493
        %3648 = vmatpush1.bf16.xpose.msra.mxu0 %v2492
        %3649 = vmatprep.subr.bf16.mxu0 %v2613
        %3650 = vmatpush2.bf16.xpose.msra.mxu0 %v2612
        %3651 = vmatprep.subr.bf16.mxu0 %v2605
        %3652 = vmatpush2.bf16.xpose.msra.mxu0 %v2604
        %3653 = vmatprep.subr.bf16.mxu0 %v2597
        %3654 = vmatpush2.bf16.xpose.msra.mxu0 %v2596
        %3655 = vmatprep.subr.bf16.mxu0 %v2589
        %3656 = vmatpush2.bf16.xpose.msra.mxu0 %v2588
        %3657 = vmatprep.subr.bf16.mxu0 %v2581
        %3658 = vmatpush2.bf16.xpose.msra.mxu0 %v2580
        %3659 = vmatprep.subr.bf16.mxu0 %v2573
        %3660 = vmatpush2.bf16.xpose.msra.mxu0 %v2572
        %3661 = vmatprep.subr.bf16.mxu0 %v2565
        %3662 = vmatpush2.bf16.xpose.msra.mxu0 %v2564
        %3663 = vmatprep.subr.bf16.mxu0 %v2557
        %3664 = vmatpush2.bf16.xpose.msra.mxu0 %v2556
        %3665 = vmatprep.mubr.bf16.mxu0 %v941
        %3666 = vmatmul.mubr.bf16.gmra.mxu0 %v939
        %v3667 = vpop.f32.mrf.mxu0
        %v3668 = vadd.f32 %v3627, %v3667
        %v3669 = vpop.f32.mrf.mxu0
        %v3670 = vadd.f32 %v3629, %v3669
        %v3671 = vpop.f32.mrf.mxu0
        %v3672 = vpop.f32.mrf.mxu0
        %3673 = vdwg.mxu0
        %3674 = vmatprep.subr.bf16.mxu0 %v2671
        %3675 = vmatpush1.bf16.xpose.msra.mxu0 %v2670
        %3676 = vmatprep.subr.bf16.mxu0 %v2663
        %3677 = vmatpush1.bf16.xpose.msra.mxu0 %v2662
        %3678 = vmatprep.subr.bf16.mxu0 %v2655
        %3679 = vmatpush1.bf16.xpose.msra.mxu0 %v2654
        %3680 = vmatprep.subr.bf16.mxu0 %v2647
        %3681 = vmatpush1.bf16.xpose.msra.mxu0 %v2646
        %3682 = vmatprep.subr.bf16.mxu0 %v2639
        %3683 = vmatpush1.bf16.xpose.msra.mxu0 %v2638
        %3684 = vmatprep.subr.bf16.mxu0 %v2631
        %3685 = vmatpush1.bf16.xpose.msra.mxu0 %v2630
        %3686 = vmatprep.subr.bf16.mxu0 %v2623
        %3687 = vmatpush1.bf16.xpose.msra.mxu0 %v2622
        %3688 = vmatprep.subr.bf16.mxu0 %v2615
        %3689 = vmatpush1.bf16.xpose.msra.mxu0 %v2614
        %3690 = vmatprep.subr.bf16.mxu0 %v2735
        %3691 = vmatpush2.bf16.xpose.msra.mxu0 %v2734
        %3692 = vmatprep.subr.bf16.mxu0 %v2727
        %3693 = vmatpush2.bf16.xpose.msra.mxu0 %v2726
        %3694 = vmatprep.subr.bf16.mxu0 %v2719
        %3695 = vmatpush2.bf16.xpose.msra.mxu0 %v2718
        %3696 = vmatprep.subr.bf16.mxu0 %v2711
        %3697 = vmatpush2.bf16.xpose.msra.mxu0 %v2710
        %3698 = vmatprep.subr.bf16.mxu0 %v2703
        %3699 = vmatpush2.bf16.xpose.msra.mxu0 %v2702
        %3700 = vmatprep.subr.bf16.mxu0 %v2695
        %3701 = vmatpush2.bf16.xpose.msra.mxu0 %v2694
        %3702 = vmatprep.subr.bf16.mxu0 %v2687
        %3703 = vmatpush2.bf16.xpose.msra.mxu0 %v2686
        %3704 = vmatprep.subr.bf16.mxu0 %v2679
        %3705 = vmatpush2.bf16.xpose.msra.mxu0 %v2678
        %3706 = vmatprep.mubr.bf16.mxu0 %v930
        %3707 = vmatmul.mubr.bf16.gmra.mxu0 %v916
        %v3708 = vpop.f32.mrf.mxu0
        %v3709 = vadd.f32 0.0, %v3708
        %v3710 = vpop.f32.mrf.mxu0
        %v3711 = vadd.f32 0.0, %v3710
        %v3712 = vpop.f32.mrf.mxu0
        %v3713 = vpop.f32.mrf.mxu0
        %3714 = vdwg.mxu0
        %3715 = vmatprep.subr.bf16.mxu0 %v2673
        %3716 = vmatpush1.bf16.xpose.msra.mxu0 %v2672
        %3717 = vmatprep.subr.bf16.mxu0 %v2665
        %3718 = vmatpush1.bf16.xpose.msra.mxu0 %v2664
        %3719 = vmatprep.subr.bf16.mxu0 %v2657
        %3720 = vmatpush1.bf16.xpose.msra.mxu0 %v2656
        %3721 = vmatprep.subr.bf16.mxu0 %v2649
        %3722 = vmatpush1.bf16.xpose.msra.mxu0 %v2648
        %3723 = vmatprep.subr.bf16.mxu0 %v2641
        %3724 = vmatpush1.bf16.xpose.msra.mxu0 %v2640
        %3725 = vmatprep.subr.bf16.mxu0 %v2633
        %3726 = vmatpush1.bf16.xpose.msra.mxu0 %v2632
        %3727 = vmatprep.subr.bf16.mxu0 %v2625
        %3728 = vmatpush1.bf16.xpose.msra.mxu0 %v2624
        %3729 = vmatprep.subr.bf16.mxu0 %v2617
        %3730 = vmatpush1.bf16.xpose.msra.mxu0 %v2616
        %3731 = vmatprep.subr.bf16.mxu0 %v2737
        %3732 = vmatpush2.bf16.xpose.msra.mxu0 %v2736
        %3733 = vmatprep.subr.bf16.mxu0 %v2729
        %3734 = vmatpush2.bf16.xpose.msra.mxu0 %v2728
        %3735 = vmatprep.subr.bf16.mxu0 %v2721
        %3736 = vmatpush2.bf16.xpose.msra.mxu0 %v2720
        %3737 = vmatprep.subr.bf16.mxu0 %v2713
        %3738 = vmatpush2.bf16.xpose.msra.mxu0 %v2712
        %3739 = vmatprep.subr.bf16.mxu0 %v2705
        %3740 = vmatpush2.bf16.xpose.msra.mxu0 %v2704
        %3741 = vmatprep.subr.bf16.mxu0 %v2697
        %3742 = vmatpush2.bf16.xpose.msra.mxu0 %v2696
        %3743 = vmatprep.subr.bf16.mxu0 %v2689
        %3744 = vmatpush2.bf16.xpose.msra.mxu0 %v2688
        %3745 = vmatprep.subr.bf16.mxu0 %v2681
        %3746 = vmatpush2.bf16.xpose.msra.mxu0 %v2680
        %3747 = vmatprep.mubr.bf16.mxu0 %v940
        %3748 = vmatmul.mubr.bf16.gmra.mxu0 %v938
        %v3749 = vpop.f32.mrf.mxu0
        %v3750 = vadd.f32 %v3709, %v3749
        %v3751 = vpop.f32.mrf.mxu0
        %v3752 = vadd.f32 %v3711, %v3751
        %v3753 = vpop.f32.mrf.mxu0
        %v3754 = vpop.f32.mrf.mxu0
        %3755 = vdwg.mxu0
        %3756 = vmatprep.subr.bf16.mxu0 %v2675
        %3757 = vmatpush1.bf16.xpose.msra.mxu0 %v2674
        %3758 = vmatprep.subr.bf16.mxu0 %v2667
        %3759 = vmatpush1.bf16.xpose.msra.mxu0 %v2666
        %3760 = vmatprep.subr.bf16.mxu0 %v2659
        %3761 = vmatpush1.bf16.xpose.msra.mxu0 %v2658
        %3762 = vmatprep.subr.bf16.mxu0 %v2651
        %3763 = vmatpush1.bf16.xpose.msra.mxu0 %v2650
        %3764 = vmatprep.subr.bf16.mxu0 %v2643
        %3765 = vmatpush1.bf16.xpose.msra.mxu0 %v2642
        %3766 = vmatprep.subr.bf16.mxu0 %v2635
        %3767 = vmatpush1.bf16.xpose.msra.mxu0 %v2634
        %3768 = vmatprep.subr.bf16.mxu0 %v2627
        %3769 = vmatpush1.bf16.xpose.msra.mxu0 %v2626
        %3770 = vmatprep.subr.bf16.mxu0 %v2619
        %3771 = vmatpush1.bf16.xpose.msra.mxu0 %v2618
        %3772 = vmatprep.subr.bf16.mxu0 %v2739
        %3773 = vmatpush2.bf16.xpose.msra.mxu0 %v2738
        %3774 = vmatprep.subr.bf16.mxu0 %v2731
        %3775 = vmatpush2.bf16.xpose.msra.mxu0 %v2730
        %3776 = vmatprep.subr.bf16.mxu0 %v2723
        %3777 = vmatpush2.bf16.xpose.msra.mxu0 %v2722
        %3778 = vmatprep.subr.bf16.mxu0 %v2715
        %3779 = vmatpush2.bf16.xpose.msra.mxu0 %v2714
        %3780 = vmatprep.subr.bf16.mxu0 %v2707
        %3781 = vmatpush2.bf16.xpose.msra.mxu0 %v2706
        %3782 = vmatprep.subr.bf16.mxu0 %v2699
        %3783 = vmatpush2.bf16.xpose.msra.mxu0 %v2698
        %3784 = vmatprep.subr.bf16.mxu0 %v2691
        %3785 = vmatpush2.bf16.xpose.msra.mxu0 %v2690
        %3786 = vmatprep.subr.bf16.mxu0 %v2683
        %3787 = vmatpush2.bf16.xpose.msra.mxu0 %v2682
        %3788 = vmatprep.mubr.bf16.mxu0 %v937
        %3789 = vmatmul.mubr.bf16.gmra.mxu0 %v923
        %v3790 = vpop.f32.mrf.mxu0
        %v3791 = vadd.f32 %v3750, %v3790
        %v3792 = vpop.f32.mrf.mxu0
        %v3793 = vadd.f32 %v3752, %v3792
        %v3794 = vpop.f32.mrf.mxu0
        %v3795 = vpop.f32.mrf.mxu0
        %3796 = vdwg.mxu0
        %3797 = vmatprep.subr.bf16.mxu0 %v2677
        %3798 = vmatpush1.bf16.xpose.msra.mxu0 %v2676
        %3799 = vmatprep.subr.bf16.mxu0 %v2669
        %3800 = vmatpush1.bf16.xpose.msra.mxu0 %v2668
        %3801 = vmatprep.subr.bf16.mxu0 %v2661
        %3802 = vmatpush1.bf16.xpose.msra.mxu0 %v2660
        %3803 = vmatprep.subr.bf16.mxu0 %v2653
        %3804 = vmatpush1.bf16.xpose.msra.mxu0 %v2652
        %3805 = vmatprep.subr.bf16.mxu0 %v2645
        %3806 = vmatpush1.bf16.xpose.msra.mxu0 %v2644
        %3807 = vmatprep.subr.bf16.mxu0 %v2637
        %3808 = vmatpush1.bf16.xpose.msra.mxu0 %v2636
        %3809 = vmatprep.subr.bf16.mxu0 %v2629
        %3810 = vmatpush1.bf16.xpose.msra.mxu0 %v2628
        %3811 = vmatprep.subr.bf16.mxu0 %v2621
        %3812 = vmatpush1.bf16.xpose.msra.mxu0 %v2620
        %3813 = vmatprep.subr.bf16.mxu0 %v2741
        %3814 = vmatpush2.bf16.xpose.msra.mxu0 %v2740
        %3815 = vmatprep.subr.bf16.mxu0 %v2733
        %3816 = vmatpush2.bf16.xpose.msra.mxu0 %v2732
        %3817 = vmatprep.subr.bf16.mxu0 %v2725
        %3818 = vmatpush2.bf16.xpose.msra.mxu0 %v2724
        %3819 = vmatprep.subr.bf16.mxu0 %v2717
        %3820 = vmatpush2.bf16.xpose.msra.mxu0 %v2716
        %3821 = vmatprep.subr.bf16.mxu0 %v2709
        %3822 = vmatpush2.bf16.xpose.msra.mxu0 %v2708
        %3823 = vmatprep.subr.bf16.mxu0 %v2701
        %3824 = vmatpush2.bf16.xpose.msra.mxu0 %v2700
        %3825 = vmatprep.subr.bf16.mxu0 %v2693
        %3826 = vmatpush2.bf16.xpose.msra.mxu0 %v2692
        %3827 = vmatprep.subr.bf16.mxu0 %v2685
        %3828 = vmatpush2.bf16.xpose.msra.mxu0 %v2684
        %3829 = vmatprep.mubr.bf16.mxu0 %v941
        %3830 = vmatmul.mubr.bf16.gmra.mxu0 %v939
        %v3831 = vpop.f32.mrf.mxu0
        %v3832 = vadd.f32 %v3791, %v3831
        %v3833 = vpop.f32.mrf.mxu0
        %v3834 = vadd.f32 %v3793, %v3833
        %v3835 = vpop.f32.mrf.mxu0
        %v3836 = vpop.f32.mrf.mxu0
        %3837 = vdwg.mxu0
        %3838 = vmatprep.subr.bf16.mxu0 %v2799
        %3839 = vmatpush1.bf16.xpose.msra.mxu0 %v2798
        %3840 = vmatprep.subr.bf16.mxu0 %v2791
        %3841 = vmatpush1.bf16.xpose.msra.mxu0 %v2790
        %3842 = vmatprep.subr.bf16.mxu0 %v2783
        %3843 = vmatpush1.bf16.xpose.msra.mxu0 %v2782
        %3844 = vmatprep.subr.bf16.mxu0 %v2775
        %3845 = vmatpush1.bf16.xpose.msra.mxu0 %v2774
        %3846 = vmatprep.subr.bf16.mxu0 %v2767
        %3847 = vmatpush1.bf16.xpose.msra.mxu0 %v2766
        %3848 = vmatprep.subr.bf16.mxu0 %v2759
        %3849 = vmatpush1.bf16.xpose.msra.mxu0 %v2758
        %3850 = vmatprep.subr.bf16.mxu0 %v2751
        %3851 = vmatpush1.bf16.xpose.msra.mxu0 %v2750
        %3852 = vmatprep.subr.bf16.mxu0 %v2743
        %3853 = vmatpush1.bf16.xpose.msra.mxu0 %v2742
        %3854 = vmatprep.subr.bf16.mxu0 %v2863
        %3855 = vmatpush2.bf16.xpose.msra.mxu0 %v2862
        %3856 = vmatprep.subr.bf16.mxu0 %v2855
        %3857 = vmatpush2.bf16.xpose.msra.mxu0 %v2854
        %3858 = vmatprep.subr.bf16.mxu0 %v2847
        %3859 = vmatpush2.bf16.xpose.msra.mxu0 %v2846
        %3860 = vmatprep.subr.bf16.mxu0 %v2839
        %3861 = vmatpush2.bf16.xpose.msra.mxu0 %v2838
        %3862 = vmatprep.subr.bf16.mxu0 %v2831
        %3863 = vmatpush2.bf16.xpose.msra.mxu0 %v2830
        %3864 = vmatprep.subr.bf16.mxu0 %v2823
        %3865 = vmatpush2.bf16.xpose.msra.mxu0 %v2822
        %3866 = vmatprep.subr.bf16.mxu0 %v2815
        %3867 = vmatpush2.bf16.xpose.msra.mxu0 %v2814
        %3868 = vmatprep.subr.bf16.mxu0 %v2807
        %3869 = vmatpush2.bf16.xpose.msra.mxu0 %v2806
        %3870 = vmatprep.mubr.bf16.mxu0 %v930
        %3871 = vmatmul.mubr.bf16.gmra.mxu0 %v916
        %v3872 = vpop.f32.mrf.mxu0
        %v3873 = vadd.f32 0.0, %v3872
        %v3874 = vpop.f32.mrf.mxu0
        %v3875 = vadd.f32 0.0, %v3874
        %v3876 = vpop.f32.mrf.mxu0
        %v3877 = vpop.f32.mrf.mxu0
        %3878 = vdwg.mxu0
        %3879 = vmatprep.subr.bf16.mxu0 %v2801
        %3880 = vmatpush1.bf16.xpose.msra.mxu0 %v2800
        %3881 = vmatprep.subr.bf16.mxu0 %v2793
        %3882 = vmatpush1.bf16.xpose.msra.mxu0 %v2792
        %3883 = vmatprep.subr.bf16.mxu0 %v2785
        %3884 = vmatpush1.bf16.xpose.msra.mxu0 %v2784
        %3885 = vmatprep.subr.bf16.mxu0 %v2777
        %3886 = vmatpush1.bf16.xpose.msra.mxu0 %v2776
        %3887 = vmatprep.subr.bf16.mxu0 %v2769
        %3888 = vmatpush1.bf16.xpose.msra.mxu0 %v2768
        %3889 = vmatprep.subr.bf16.mxu0 %v2761
        %3890 = vmatpush1.bf16.xpose.msra.mxu0 %v2760
        %3891 = vmatprep.subr.bf16.mxu0 %v2753
        %3892 = vmatpush1.bf16.xpose.msra.mxu0 %v2752
        %3893 = vmatprep.subr.bf16.mxu0 %v2745
        %3894 = vmatpush1.bf16.xpose.msra.mxu0 %v2744
        %3895 = vmatprep.subr.bf16.mxu0 %v2865
        %3896 = vmatpush2.bf16.xpose.msra.mxu0 %v2864
        %3897 = vmatprep.subr.bf16.mxu0 %v2857
        %3898 = vmatpush2.bf16.xpose.msra.mxu0 %v2856
        %3899 = vmatprep.subr.bf16.mxu0 %v2849
        %3900 = vmatpush2.bf16.xpose.msra.mxu0 %v2848
        %3901 = vmatprep.subr.bf16.mxu0 %v2841
        %3902 = vmatpush2.bf16.xpose.msra.mxu0 %v2840
        %3903 = vmatprep.subr.bf16.mxu0 %v2833
        %3904 = vmatpush2.bf16.xpose.msra.mxu0 %v2832
        %3905 = vmatprep.subr.bf16.mxu0 %v2825
        %3906 = vmatpush2.bf16.xpose.msra.mxu0 %v2824
        %3907 = vmatprep.subr.bf16.mxu0 %v2817
        %3908 = vmatpush2.bf16.xpose.msra.mxu0 %v2816
        %3909 = vmatprep.subr.bf16.mxu0 %v2809
        %3910 = vmatpush2.bf16.xpose.msra.mxu0 %v2808
        %3911 = vmatprep.mubr.bf16.mxu0 %v940
        %3912 = vmatmul.mubr.bf16.gmra.mxu0 %v938
        %v3913 = vpop.f32.mrf.mxu0
        %v3914 = vadd.f32 %v3873, %v3913
        %v3915 = vpop.f32.mrf.mxu0
        %v3916 = vadd.f32 %v3875, %v3915
        %v3917 = vpop.f32.mrf.mxu0
        %v3918 = vpop.f32.mrf.mxu0
        %3919 = vdwg.mxu0
        %3920 = vmatprep.subr.bf16.mxu0 %v2803
        %3921 = vmatpush1.bf16.xpose.msra.mxu0 %v2802
        %3922 = vmatprep.subr.bf16.mxu0 %v2795
        %3923 = vmatpush1.bf16.xpose.msra.mxu0 %v2794
        %3924 = vmatprep.subr.bf16.mxu0 %v2787
        %3925 = vmatpush1.bf16.xpose.msra.mxu0 %v2786
        %3926 = vmatprep.subr.bf16.mxu0 %v2779
        %3927 = vmatpush1.bf16.xpose.msra.mxu0 %v2778
        %3928 = vmatprep.subr.bf16.mxu0 %v2771
        %3929 = vmatpush1.bf16.xpose.msra.mxu0 %v2770
        %3930 = vmatprep.subr.bf16.mxu0 %v2763
        %3931 = vmatpush1.bf16.xpose.msra.mxu0 %v2762
        %3932 = vmatprep.subr.bf16.mxu0 %v2755
        %3933 = vmatpush1.bf16.xpose.msra.mxu0 %v2754
        %3934 = vmatprep.subr.bf16.mxu0 %v2747
        %3935 = vmatpush1.bf16.xpose.msra.mxu0 %v2746
        %3936 = vmatprep.subr.bf16.mxu0 %v2867
        %3937 = vmatpush2.bf16.xpose.msra.mxu0 %v2866
        %3938 = vmatprep.subr.bf16.mxu0 %v2859
        %3939 = vmatpush2.bf16.xpose.msra.mxu0 %v2858
        %3940 = vmatprep.subr.bf16.mxu0 %v2851
        %3941 = vmatpush2.bf16.xpose.msra.mxu0 %v2850
        %3942 = vmatprep.subr.bf16.mxu0 %v2843
        %3943 = vmatpush2.bf16.xpose.msra.mxu0 %v2842
        %3944 = vmatprep.subr.bf16.mxu0 %v2835
        %3945 = vmatpush2.bf16.xpose.msra.mxu0 %v2834
        %3946 = vmatprep.subr.bf16.mxu0 %v2827
        %3947 = vmatpush2.bf16.xpose.msra.mxu0 %v2826
        %3948 = vmatprep.subr.bf16.mxu0 %v2819
        %3949 = vmatpush2.bf16.xpose.msra.mxu0 %v2818
        %3950 = vmatprep.subr.bf16.mxu0 %v2811
        %3951 = vmatpush2.bf16.xpose.msra.mxu0 %v2810
        %3952 = vmatprep.mubr.bf16.mxu0 %v937
        %3953 = vmatmul.mubr.bf16.gmra.mxu0 %v923
        %v3954 = vpop.f32.mrf.mxu0
        %v3955 = vadd.f32 %v3914, %v3954
        %v3956 = vpop.f32.mrf.mxu0
        %v3957 = vadd.f32 %v3916, %v3956
        %v3958 = vpop.f32.mrf.mxu0
        %v3959 = vpop.f32.mrf.mxu0
        %3960 = vdwg.mxu0
        %3961 = vmatprep.subr.bf16.mxu0 %v2805
        %3962 = vmatpush1.bf16.xpose.msra.mxu0 %v2804
        %3963 = vmatprep.subr.bf16.mxu0 %v2797
        %3964 = vmatpush1.bf16.xpose.msra.mxu0 %v2796
        %3965 = vmatprep.subr.bf16.mxu0 %v2789
        %3966 = vmatpush1.bf16.xpose.msra.mxu0 %v2788
        %3967 = vmatprep.subr.bf16.mxu0 %v2781
        %3968 = vmatpush1.bf16.xpose.msra.mxu0 %v2780
        %3969 = vmatprep.subr.bf16.mxu0 %v2773
        %3970 = vmatpush1.bf16.xpose.msra.mxu0 %v2772
        %3971 = vmatprep.subr.bf16.mxu0 %v2765
        %3972 = vmatpush1.bf16.xpose.msra.mxu0 %v2764
        %3973 = vmatprep.subr.bf16.mxu0 %v2757
        %3974 = vmatpush1.bf16.xpose.msra.mxu0 %v2756
        %3975 = vmatprep.subr.bf16.mxu0 %v2749
        %3976 = vmatpush1.bf16.xpose.msra.mxu0 %v2748
        %3977 = vmatprep.subr.bf16.mxu0 %v2869
        %3978 = vmatpush2.bf16.xpose.msra.mxu0 %v2868
        %3979 = vmatprep.subr.bf16.mxu0 %v2861
        %3980 = vmatpush2.bf16.xpose.msra.mxu0 %v2860
        %3981 = vmatprep.subr.bf16.mxu0 %v2853
        %3982 = vmatpush2.bf16.xpose.msra.mxu0 %v2852
        %3983 = vmatprep.subr.bf16.mxu0 %v2845
        %3984 = vmatpush2.bf16.xpose.msra.mxu0 %v2844
        %3985 = vmatprep.subr.bf16.mxu0 %v2837
        %3986 = vmatpush2.bf16.xpose.msra.mxu0 %v2836
        %3987 = vmatprep.subr.bf16.mxu0 %v2829
        %3988 = vmatpush2.bf16.xpose.msra.mxu0 %v2828
        %3989 = vmatprep.subr.bf16.mxu0 %v2821
        %3990 = vmatpush2.bf16.xpose.msra.mxu0 %v2820
        %3991 = vmatprep.subr.bf16.mxu0 %v2813
        %3992 = vmatpush2.bf16.xpose.msra.mxu0 %v2812
        %3993 = vmatprep.mubr.bf16.mxu0 %v941
        %3994 = vmatmul.mubr.bf16.gmra.mxu0 %v939
        %v3995 = vpop.f32.mrf.mxu0
        %v3996 = vadd.f32 %v3955, %v3995
        %v3997 = vpop.f32.mrf.mxu0
        %v3998 = vadd.f32 %v3957, %v3997
        %v3999 = vpop.f32.mrf.mxu0
        %v4000 = vpop.f32.mrf.mxu0
        %4001 = vdwg.mxu0
        %4002 = vmatprep.subr.bf16.mxu0 %v2927
        %4003 = vmatpush1.bf16.xpose.msra.mxu0 %v2926
        %4004 = vmatprep.subr.bf16.mxu0 %v2919
        %4005 = vmatpush1.bf16.xpose.msra.mxu0 %v2918
        %4006 = vmatprep.subr.bf16.mxu0 %v2911
        %4007 = vmatpush1.bf16.xpose.msra.mxu0 %v2910
        %4008 = vmatprep.subr.bf16.mxu0 %v2903
        %4009 = vmatpush1.bf16.xpose.msra.mxu0 %v2902
        %4010 = vmatprep.subr.bf16.mxu0 %v2895
        %4011 = vmatpush1.bf16.xpose.msra.mxu0 %v2894
        %4012 = vmatprep.subr.bf16.mxu0 %v2887
        %4013 = vmatpush1.bf16.xpose.msra.mxu0 %v2886
        %4014 = vmatprep.subr.bf16.mxu0 %v2879
        %4015 = vmatpush1.bf16.xpose.msra.mxu0 %v2878
        %4016 = vmatprep.subr.bf16.mxu0 %v2871
        %4017 = vmatpush1.bf16.xpose.msra.mxu0 %v2870
        %4018 = vmatprep.subr.bf16.mxu0 %v2991
        %4019 = vmatpush2.bf16.xpose.msra.mxu0 %v2990
        %4020 = vmatprep.subr.bf16.mxu0 %v2983
        %4021 = vmatpush2.bf16.xpose.msra.mxu0 %v2982
        %4022 = vmatprep.subr.bf16.mxu0 %v2975
        %4023 = vmatpush2.bf16.xpose.msra.mxu0 %v2974
        %4024 = vmatprep.subr.bf16.mxu0 %v2967
        %4025 = vmatpush2.bf16.xpose.msra.mxu0 %v2966
        %4026 = vmatprep.subr.bf16.mxu0 %v2959
        %4027 = vmatpush2.bf16.xpose.msra.mxu0 %v2958
        %4028 = vmatprep.subr.bf16.mxu0 %v2951
        %4029 = vmatpush2.bf16.xpose.msra.mxu0 %v2950
        %4030 = vmatprep.subr.bf16.mxu0 %v2943
        %4031 = vmatpush2.bf16.xpose.msra.mxu0 %v2942
        %4032 = vmatprep.subr.bf16.mxu0 %v2935
        %4033 = vmatpush2.bf16.xpose.msra.mxu0 %v2934
        %4034 = vmatprep.mubr.bf16.mxu0 %v930
        %4035 = vmatmul.mubr.bf16.gmra.mxu0 %v916
        %v4036 = vpop.f32.mrf.mxu0
        %v4037 = vadd.f32 0.0, %v4036
        %v4038 = vpop.f32.mrf.mxu0
        %v4039 = vadd.f32 0.0, %v4038
        %v4040 = vpop.f32.mrf.mxu0
        %v4041 = vpop.f32.mrf.mxu0
        %4042 = vdwg.mxu0
        %4043 = vmatprep.subr.bf16.mxu0 %v2929
        %4044 = vmatpush1.bf16.xpose.msra.mxu0 %v2928
        %4045 = vmatprep.subr.bf16.mxu0 %v2921
        %4046 = vmatpush1.bf16.xpose.msra.mxu0 %v2920
        %4047 = vmatprep.subr.bf16.mxu0 %v2913
        %4048 = vmatpush1.bf16.xpose.msra.mxu0 %v2912
        %4049 = vmatprep.subr.bf16.mxu0 %v2905
        %4050 = vmatpush1.bf16.xpose.msra.mxu0 %v2904
        %4051 = vmatprep.subr.bf16.mxu0 %v2897
        %4052 = vmatpush1.bf16.xpose.msra.mxu0 %v2896
        %4053 = vmatprep.subr.bf16.mxu0 %v2889
        %4054 = vmatpush1.bf16.xpose.msra.mxu0 %v2888
        %4055 = vmatprep.subr.bf16.mxu0 %v2881
        %4056 = vmatpush1.bf16.xpose.msra.mxu0 %v2880
        %4057 = vmatprep.subr.bf16.mxu0 %v2873
        %4058 = vmatpush1.bf16.xpose.msra.mxu0 %v2872
        %4059 = vmatprep.subr.bf16.mxu0 %v2993
        %4060 = vmatpush2.bf16.xpose.msra.mxu0 %v2992
        %4061 = vmatprep.subr.bf16.mxu0 %v2985
        %4062 = vmatpush2.bf16.xpose.msra.mxu0 %v2984
        %4063 = vmatprep.subr.bf16.mxu0 %v2977
        %4064 = vmatpush2.bf16.xpose.msra.mxu0 %v2976
        %4065 = vmatprep.subr.bf16.mxu0 %v2969
        %4066 = vmatpush2.bf16.xpose.msra.mxu0 %v2968
        %4067 = vmatprep.subr.bf16.mxu0 %v2961
        %4068 = vmatpush2.bf16.xpose.msra.mxu0 %v2960
        %4069 = vmatprep.subr.bf16.mxu0 %v2953
        %4070 = vmatpush2.bf16.xpose.msra.mxu0 %v2952
        %4071 = vmatprep.subr.bf16.mxu0 %v2945
        %4072 = vmatpush2.bf16.xpose.msra.mxu0 %v2944
        %4073 = vmatprep.subr.bf16.mxu0 %v2937
        %4074 = vmatpush2.bf16.xpose.msra.mxu0 %v2936
        %4075 = vmatprep.mubr.bf16.mxu0 %v940
        %4076 = vmatmul.mubr.bf16.gmra.mxu0 %v938
        %v4077 = vpop.f32.mrf.mxu0
        %v4078 = vadd.f32 %v4037, %v4077
        %v4079 = vpop.f32.mrf.mxu0
        %v4080 = vadd.f32 %v4039, %v4079
        %v4081 = vpop.f32.mrf.mxu0
        %v4082 = vpop.f32.mrf.mxu0
        %4083 = vdwg.mxu0
        %4084 = vmatprep.subr.bf16.mxu0 %v2931
        %4085 = vmatpush1.bf16.xpose.msra.mxu0 %v2930
        %4086 = vmatprep.subr.bf16.mxu0 %v2923
        %4087 = vmatpush1.bf16.xpose.msra.mxu0 %v2922
        %4088 = vmatprep.subr.bf16.mxu0 %v2915
        %4089 = vmatpush1.bf16.xpose.msra.mxu0 %v2914
        %4090 = vmatprep.subr.bf16.mxu0 %v2907
        %4091 = vmatpush1.bf16.xpose.msra.mxu0 %v2906
        %4092 = vmatprep.subr.bf16.mxu0 %v2899
        %4093 = vmatpush1.bf16.xpose.msra.mxu0 %v2898
        %4094 = vmatprep.subr.bf16.mxu0 %v2891
        %4095 = vmatpush1.bf16.xpose.msra.mxu0 %v2890
        %4096 = vmatprep.subr.bf16.mxu0 %v2883
        %4097 = vmatpush1.bf16.xpose.msra.mxu0 %v2882
        %4098 = vmatprep.subr.bf16.mxu0 %v2875
        %4099 = vmatpush1.bf16.xpose.msra.mxu0 %v2874
        %4100 = vmatprep.subr.bf16.mxu0 %v2995
        %4101 = vmatpush2.bf16.xpose.msra.mxu0 %v2994
        %4102 = vmatprep.subr.bf16.mxu0 %v2987
        %4103 = vmatpush2.bf16.xpose.msra.mxu0 %v2986
        %4104 = vmatprep.subr.bf16.mxu0 %v2979
        %4105 = vmatpush2.bf16.xpose.msra.mxu0 %v2978
        %4106 = vmatprep.subr.bf16.mxu0 %v2971
        %4107 = vmatpush2.bf16.xpose.msra.mxu0 %v2970
        %4108 = vmatprep.subr.bf16.mxu0 %v2963
        %4109 = vmatpush2.bf16.xpose.msra.mxu0 %v2962
        %4110 = vmatprep.subr.bf16.mxu0 %v2955
        %4111 = vmatpush2.bf16.xpose.msra.mxu0 %v2954
        %4112 = vmatprep.subr.bf16.mxu0 %v2947
        %4113 = vmatpush2.bf16.xpose.msra.mxu0 %v2946
        %4114 = vmatprep.subr.bf16.mxu0 %v2939
        %4115 = vmatpush2.bf16.xpose.msra.mxu0 %v2938
        %4116 = vmatprep.mubr.bf16.mxu0 %v937
        %4117 = vmatmul.mubr.bf16.gmra.mxu0 %v923
        %v4118 = vpop.f32.mrf.mxu0
        %v4119 = vadd.f32 %v4078, %v4118
        %v4120 = vpop.f32.mrf.mxu0
        %v4121 = vadd.f32 %v4080, %v4120
        %v4122 = vpop.f32.mrf.mxu0
        %v4123 = vpop.f32.mrf.mxu0
        %4124 = vdwg.mxu0
        %4125 = vmatprep.subr.bf16.mxu0 %v2933
        %4126 = vmatpush1.bf16.xpose.msra.mxu0 %v2932
        %4127 = vmatprep.subr.bf16.mxu0 %v2925
        %4128 = vmatpush1.bf16.xpose.msra.mxu0 %v2924
        %4129 = vmatprep.subr.bf16.mxu0 %v2917
        %4130 = vmatpush1.bf16.xpose.msra.mxu0 %v2916
        %4131 = vmatprep.subr.bf16.mxu0 %v2909
        %4132 = vmatpush1.bf16.xpose.msra.mxu0 %v2908
        %4133 = vmatprep.subr.bf16.mxu0 %v2901
        %4134 = vmatpush1.bf16.xpose.msra.mxu0 %v2900
        %4135 = vmatprep.subr.bf16.mxu0 %v2893
        %4136 = vmatpush1.bf16.xpose.msra.mxu0 %v2892
        %4137 = vmatprep.subr.bf16.mxu0 %v2885
        %4138 = vmatpush1.bf16.xpose.msra.mxu0 %v2884
        %4139 = vmatprep.subr.bf16.mxu0 %v2877
        %4140 = vmatpush1.bf16.xpose.msra.mxu0 %v2876
        %4141 = vmatprep.subr.bf16.mxu0 %v2997
        %4142 = vmatpush2.bf16.xpose.msra.mxu0 %v2996
        %4143 = vmatprep.subr.bf16.mxu0 %v2989
        %4144 = vmatpush2.bf16.xpose.msra.mxu0 %v2988
        %4145 = vmatprep.subr.bf16.mxu0 %v2981
        %4146 = vmatpush2.bf16.xpose.msra.mxu0 %v2980
        %4147 = vmatprep.subr.bf16.mxu0 %v2973
        %4148 = vmatpush2.bf16.xpose.msra.mxu0 %v2972
        %4149 = vmatprep.subr.bf16.mxu0 %v2965
        %4150 = vmatpush2.bf16.xpose.msra.mxu0 %v2964
        %4151 = vmatprep.subr.bf16.mxu0 %v2957
        %4152 = vmatpush2.bf16.xpose.msra.mxu0 %v2956
        %4153 = vmatprep.subr.bf16.mxu0 %v2949
        %4154 = vmatpush2.bf16.xpose.msra.mxu0 %v2948
        %4155 = vmatprep.subr.bf16.mxu0 %v2941
        %4156 = vmatpush2.bf16.xpose.msra.mxu0 %v2940
        %4157 = vmatprep.mubr.bf16.mxu0 %v941
        %4158 = vmatmul.mubr.bf16.gmra.mxu0 %v939
        %v4159 = vpop.f32.mrf.mxu0
        %v4160 = vadd.f32 %v4119, %v4159
        %v4161 = vpop.f32.mrf.mxu0
        %v4162 = vadd.f32 %v4121, %v4161
        %v4163 = vpop.f32.mrf.mxu0
        %v4164 = vpop.f32.mrf.mxu0
        %4165 = vdwg.mxu0
        %v4174 = vcombine.low %v3668, %v3670
        %v4175 = vcombine.low %v3832, %v3834
        %v4177 = vunpack.c.l.s4 1983009808
        %v4178 = vunpack.c.0.s8 %v4177
        %v4179 = vlaneseq
        %v4180 = vshrl.u32 %v4179, 7
        %v4181 = vsub.s32 %v4178, %v4180
        %v4182 = vrot.slane %v4174, %v4181
        %v4184 = vunpack.c.l.s4 1983009808
        %v4185 = vunpack.c.0.s8 %v4184
        %v4186 = vlaneseq
        %v4187 = vshrl.u32 %v4186, 7
        %v4188 = vsub.s32 %v4185, %v4187
        %v4189 = vrot.slane %v4175, %v4188
        %v4190 = vcombine.low %v4182, %v4189
        %v4191 = vcombine.low %v3996, %v3998
        %v4192 = vcombine.low %v4160, %v4162
        %v4194 = vunpack.c.l.s4 1983009808
        %v4195 = vunpack.c.0.s8 %v4194
        %v4196 = vlaneseq
        %v4197 = vshrl.u32 %v4196, 7
        %v4198 = vsub.s32 %v4195, %v4197
        %v4199 = vrot.slane %v4191, %v4198
        %v4201 = vunpack.c.l.s4 1983009808
        %v4202 = vunpack.c.0.s8 %v4201
        %v4203 = vlaneseq
        %v4204 = vshrl.u32 %v4203, 7
        %v4205 = vsub.s32 %v4202, %v4204
        %v4206 = vrot.slane %v4192, %v4205
        %v4207 = vcombine.low %v4199, %v4206
        %v4210 = vadd.f32 %v377, %v4190
        %v4211 = vadd.f32 %v378, %v4207
        %4212 = vst [vmem:[#allocation2] sm:$0xff] %v4210
        %4213 = vst [vmem:[#allocation2 + $0x8] sm:$0xff] %v4211
        %p4214 = scmp.eq.s32.totalorder %s25, 1
        // Predicated region
        $region77: #{mycnn_forward.3} parent=47 // pred_check
          %p4215 = pneg %p4214
        $region78: #{mycnn_forward.3} parent=47 // pred_check_branch
          %4217 = sbr.rel (%p4215) target = $region80
        $region79: #{mycnn_forward.3} parent=47 // pred_region
          %v4218 = vld [vmem:[#allocation2] sm:$0xff]
          %v4219 = vld [vmem:[#allocation2 + $0x8] sm:$0xff]
          %v4220 = vld [vmem:[#allocation6] sm:$0xff]
          %v4222 = vlaneseq
          %v4223 = vshrl.u32 %v4222, 7
          %v4224 = vsub.s32 0, %v4223
          %v4225 = vrot.slane %v4220, %v4224
          %v4226 = vlaneseq
          %v4227 = vshrl.u32 %v4226, 7
          %v4228 = vsub.s32 1, %v4227
          %v4229 = vrot.slane %v4220, %v4228
          %v4230 = vlaneseq
          %v4231 = vshrl.u32 %v4230, 7
          %v4232 = vsub.s32 2, %v4231
          %v4233 = vrot.slane %v4220, %v4232
          %v4234 = vlaneseq
          %v4235 = vshrl.u32 %v4234, 7
          %v4236 = vsub.s32 3, %v4235
          %v4237 = vrot.slane %v4220, %v4236
          %v4238 = vlaneseq
          %v4239 = vshrl.u32 %v4238, 7
          %v4240 = vsub.s32 4, %v4239
          %v4241 = vrot.slane %v4220, %v4240
          %v4242 = vlaneseq
          %v4243 = vshrl.u32 %v4242, 7
          %v4244 = vsub.s32 5, %v4243
          %v4245 = vrot.slane %v4220, %v4244
          %v4246 = vlaneseq
          %v4247 = vshrl.u32 %v4246, 7
          %v4248 = vsub.s32 6, %v4247
          %v4249 = vrot.slane %v4220, %v4248
          %v4250 = vlaneseq
          %v4251 = vshrl.u32 %v4250, 7
          %v4252 = vsub.s32 7, %v4251
          %v4253 = vrot.slane %v4220, %v4252
          %v4254 = vcombine.low %v4225, %v4229
          %v4255 = vcombine.low %v4233, %v4237
          %v4257 = vunpack.c.l.s4 1983009808
          %v4258 = vunpack.c.0.s8 %v4257
          %v4259 = vlaneseq
          %v4260 = vshrl.u32 %v4259, 7
          %v4261 = vsub.s32 %v4258, %v4260
          %v4262 = vrot.slane %v4254, %v4261
          %v4264 = vunpack.c.l.s4 1983009808
          %v4265 = vunpack.c.0.s8 %v4264
          %v4266 = vlaneseq
          %v4267 = vshrl.u32 %v4266, 7
          %v4268 = vsub.s32 %v4265, %v4267
          %v4269 = vrot.slane %v4255, %v4268
          %v4270 = vcombine.low %v4262, %v4269
          %v4271 = vcombine.low %v4241, %v4245
          %v4272 = vcombine.low %v4249, %v4253
          %v4274 = vunpack.c.l.s4 1983009808
          %v4275 = vunpack.c.0.s8 %v4274
          %v4276 = vlaneseq
          %v4277 = vshrl.u32 %v4276, 7
          %v4278 = vsub.s32 %v4275, %v4277
          %v4279 = vrot.slane %v4271, %v4278
          %v4281 = vunpack.c.l.s4 1983009808
          %v4282 = vunpack.c.0.s8 %v4281
          %v4283 = vlaneseq
          %v4284 = vshrl.u32 %v4283, 7
          %v4285 = vsub.s32 %v4282, %v4284
          %v4286 = vrot.slane %v4272, %v4285
          %v4287 = vcombine.low %v4279, %v4286
          %v4290 = vadd.f32 %v4218, %v4270
          %v4291 = vadd.f32 %v4219, %v4287
          %vm4292 = vcmp.gt.f32.partialorder %v4290, 0.0
          %vm4293 = vcmp.gt.f32.partialorder %v4291, 0.0
          %v4294 = vmul.f32 %v4290, 0.01
          %v4295 = vmul.f32 %v4291, 0.01
          %v4296 = vsel %vm4292, %v4290, %v4294
          %v4297 = vsel %vm4293, %v4291, %v4295
          %v4300 = vcombine.high %v4296, %v4296
          %v4302 = vunpack.c.l.s4 1983009808
          %v4303 = vunpack.c.0.s8 %v4302
          %v4304 = vlaneseq
          %v4305 = vshrl.u32 %v4304, 7
          %v4306 = vsub.s32 %v4303, %v4305
          %v4307 = vrot.slane %v4296, %v4306
          %v4309 = vunpack.c.l.s4 1983009808
          %v4310 = vunpack.c.0.s8 %v4309
          %v4311 = vlaneseq
          %v4312 = vshrl.u32 %v4311, 7
          %v4313 = vsub.s32 %v4310, %v4312
          %v4314 = vrot.slane %v4300, %v4313
          %v4315 = vcombine.high %v4307, %v4307
          %v4316 = vcombine.high %v4314, %v4314
          %v4317 = vcombine.high %v4297, %v4297
          %v4319 = vunpack.c.l.s4 1983009808
          %v4320 = vunpack.c.0.s8 %v4319
          %v4321 = vlaneseq
          %v4322 = vshrl.u32 %v4321, 7
          %v4323 = vsub.s32 %v4320, %v4322
          %v4324 = vrot.slane %v4297, %v4323
          %v4326 = vunpack.c.l.s4 1983009808
          %v4327 = vunpack.c.0.s8 %v4326
          %v4328 = vlaneseq
          %v4329 = vshrl.u32 %v4328, 7
          %v4330 = vsub.s32 %v4327, %v4329
          %v4331 = vrot.slane %v4317, %v4330
          %v4332 = vcombine.high %v4324, %v4324
          %v4333 = vcombine.high %v4331, %v4331
          %v4342 = vpack.c.bf16 %v4307, %v4307
          %v4343 = vpack.c.bf16 %v4315, %v4315
          %v4344 = vpack.c.bf16 %v4314, %v4314
          %v4345 = vpack.c.bf16 %v4316, %v4316
          %v4346 = vpack.c.bf16 %v4324, %v4324
          %v4347 = vpack.c.bf16 %v4332, %v4332
          %v4348 = vpack.c.bf16 %v4331, %v4331
          %v4349 = vpack.c.bf16 %v4333, %v4333
          %v4350 = vld [vmem:[#allocation8] sm:$0xff]
          %v4351 = vld [vmem:[#allocation8 + $0x8] sm:$0xff]
          %v4352 = vld [vmem:[#allocation8 + $0x10] sm:$0xff]
          %v4353 = vld [vmem:[#allocation8 + $0x18] sm:$0xff]
          %v4354 = vld [vmem:[#allocation8 + $0x20] sm:$0xff]
          %v4355 = vld [vmem:[#allocation8 + $0x28] sm:$0xff]
          %v4356 = vld [vmem:[#allocation8 + $0x30] sm:$0xff]
          %v4357 = vld [vmem:[#allocation8 + $0x38] sm:$0xff]
          %v4358 = vld [vmem:[#allocation8 + $0x40] sm:$0xff]
          %v4359 = vld [vmem:[#allocation8 + $0x48] sm:$0xff]
          %v4360 = vld [vmem:[#allocation8 + $0x50] sm:$0xff]
          %v4361 = vld [vmem:[#allocation8 + $0x58] sm:$0xff]
          %v4362 = vld [vmem:[#allocation8 + $0x60] sm:$0xff]
          %v4363 = vld [vmem:[#allocation8 + $0x68] sm:$0xff]
          %v4364 = vld [vmem:[#allocation8 + $0x70] sm:$0xff]
          %v4365 = vld [vmem:[#allocation8 + $0x78] sm:$0xff]
          %v4366 = vld [vmem:[#allocation8 + $0x80] sm:$0xff]
          %v4367 = vld [vmem:[#allocation8 + $0x88] sm:$0xff]
          %v4368 = vld [vmem:[#allocation8 + $0x90] sm:$0xff]
          %v4369 = vld [vmem:[#allocation8 + $0x98] sm:$0xff]
          %v4370 = vld [vmem:[#allocation8 + $0xa0] sm:$0xff]
          %v4371 = vld [vmem:[#allocation8 + $0xa8] sm:$0xff]
          %v4372 = vld [vmem:[#allocation8 + $0xb0] sm:$0xff]
          %v4373 = vld [vmem:[#allocation8 + $0xb8] sm:$0xff]
          %v4374 = vld [vmem:[#allocation8 + $0xc0] sm:$0xff]
          %v4375 = vld [vmem:[#allocation8 + $0xc8] sm:$0xff]
          %v4376 = vld [vmem:[#allocation8 + $0xd0] sm:$0xff]
          %v4377 = vld [vmem:[#allocation8 + $0xd8] sm:$0xff]
          %v4378 = vld [vmem:[#allocation8 + $0xe0] sm:$0xff]
          %v4379 = vld [vmem:[#allocation8 + $0xe8] sm:$0xff]
          %v4380 = vld [vmem:[#allocation8 + $0xf0] sm:$0xff]
          %v4381 = vld [vmem:[#allocation8 + $0xf8] sm:$0xff]
          %v4382 = vld [vmem:[#allocation8 + $0x100] sm:$0xff]
          %v4383 = vld [vmem:[#allocation8 + $0x108] sm:$0xff]
          %v4384 = vld [vmem:[#allocation8 + $0x110] sm:$0xff]
          %v4385 = vld [vmem:[#allocation8 + $0x118] sm:$0xff]
          %v4386 = vld [vmem:[#allocation8 + $0x120] sm:$0xff]
          %v4387 = vld [vmem:[#allocation8 + $0x128] sm:$0xff]
          %v4388 = vld [vmem:[#allocation8 + $0x130] sm:$0xff]
          %v4389 = vld [vmem:[#allocation8 + $0x138] sm:$0xff]
          %v4390 = vld [vmem:[#allocation8 + $0x140] sm:$0xff]
          %v4391 = vld [vmem:[#allocation8 + $0x148] sm:$0xff]
          %v4392 = vld [vmem:[#allocation8 + $0x150] sm:$0xff]
          %v4393 = vld [vmem:[#allocation8 + $0x158] sm:$0xff]
          %v4394 = vld [vmem:[#allocation8 + $0x160] sm:$0xff]
          %v4395 = vld [vmem:[#allocation8 + $0x168] sm:$0xff]
          %v4396 = vld [vmem:[#allocation8 + $0x170] sm:$0xff]
          %v4397 = vld [vmem:[#allocation8 + $0x178] sm:$0xff]
          %v4398 = vld [vmem:[#allocation8 + $0x180] sm:$0xff]
          %v4399 = vld [vmem:[#allocation8 + $0x188] sm:$0xff]
          %v4400 = vld [vmem:[#allocation8 + $0x190] sm:$0xff]
          %v4401 = vld [vmem:[#allocation8 + $0x198] sm:$0xff]
          %v4402 = vld [vmem:[#allocation8 + $0x1a0] sm:$0xff]
          %v4403 = vld [vmem:[#allocation8 + $0x1a8] sm:$0xff]
          %v4404 = vld [vmem:[#allocation8 + $0x1b0] sm:$0xff]
          %v4405 = vld [vmem:[#allocation8 + $0x1b8] sm:$0xff]
          %v4406 = vld [vmem:[#allocation8 + $0x1c0] sm:$0xff]
          %v4407 = vld [vmem:[#allocation8 + $0x1c8] sm:$0xff]
          %v4408 = vld [vmem:[#allocation8 + $0x1d0] sm:$0xff]
          %v4409 = vld [vmem:[#allocation8 + $0x1d8] sm:$0xff]
          %v4410 = vld [vmem:[#allocation8 + $0x1e0] sm:$0xff]
          %v4411 = vld [vmem:[#allocation8 + $0x1e8] sm:$0xff]
          %v4412 = vld [vmem:[#allocation8 + $0x1f0] sm:$0xff]
          %v4413 = vld [vmem:[#allocation8 + $0x1f8] sm:$0xff]
          %v4414 = vld [vmem:[#allocation8 + $0x200] sm:$0xff]
          %v4415 = vld [vmem:[#allocation8 + $0x208] sm:$0xff]
          %v4416 = vld [vmem:[#allocation8 + $0x210] sm:$0xff]
          %v4417 = vld [vmem:[#allocation8 + $0x218] sm:$0xff]
          %v4418 = vld [vmem:[#allocation8 + $0x220] sm:$0xff]
          %v4419 = vld [vmem:[#allocation8 + $0x228] sm:$0xff]
          %v4420 = vld [vmem:[#allocation8 + $0x230] sm:$0xff]
          %v4421 = vld [vmem:[#allocation8 + $0x238] sm:$0xff]
          %v4422 = vld [vmem:[#allocation8 + $0x240] sm:$0xff]
          %v4423 = vld [vmem:[#allocation8 + $0x248] sm:$0xff]
          %v4424 = vld [vmem:[#allocation8 + $0x250] sm:$0xff]
          %v4425 = vld [vmem:[#allocation8 + $0x258] sm:$0xff]
          %v4426 = vld [vmem:[#allocation8 + $0x260] sm:$0xff]
          %v4427 = vld [vmem:[#allocation8 + $0x268] sm:$0xff]
          %v4428 = vld [vmem:[#allocation8 + $0x270] sm:$0xff]
          %v4429 = vld [vmem:[#allocation8 + $0x278] sm:$0xff]
          %v4430 = vld [vmem:[#allocation8 + $0x280] sm:$0xff]
          %v4431 = vld [vmem:[#allocation8 + $0x288] sm:$0xff]
          %v4432 = vld [vmem:[#allocation8 + $0x290] sm:$0xff]
          %v4433 = vld [vmem:[#allocation8 + $0x298] sm:$0xff]
          %v4434 = vld [vmem:[#allocation8 + $0x2a0] sm:$0xff]
          %v4435 = vld [vmem:[#allocation8 + $0x2a8] sm:$0xff]
          %v4436 = vld [vmem:[#allocation8 + $0x2b0] sm:$0xff]
          %v4437 = vld [vmem:[#allocation8 + $0x2b8] sm:$0xff]
          %v4438 = vld [vmem:[#allocation8 + $0x2c0] sm:$0xff]
          %v4439 = vld [vmem:[#allocation8 + $0x2c8] sm:$0xff]
          %v4440 = vld [vmem:[#allocation8 + $0x2d0] sm:$0xff]
          %v4441 = vld [vmem:[#allocation8 + $0x2d8] sm:$0xff]
          %v4442 = vld [vmem:[#allocation8 + $0x2e0] sm:$0xff]
          %v4443 = vld [vmem:[#allocation8 + $0x2e8] sm:$0xff]
          %v4444 = vld [vmem:[#allocation8 + $0x2f0] sm:$0xff]
          %v4445 = vld [vmem:[#allocation8 + $0x2f8] sm:$0xff]
          %v4446 = vld [vmem:[#allocation8 + $0x300] sm:$0xff]
          %v4447 = vld [vmem:[#allocation8 + $0x308] sm:$0xff]
          %v4448 = vld [vmem:[#allocation8 + $0x310] sm:$0xff]
          %v4449 = vld [vmem:[#allocation8 + $0x318] sm:$0xff]
          %v4450 = vld [vmem:[#allocation8 + $0x320] sm:$0xff]
          %v4451 = vld [vmem:[#allocation8 + $0x328] sm:$0xff]
          %v4452 = vld [vmem:[#allocation8 + $0x330] sm:$0xff]
          %v4453 = vld [vmem:[#allocation8 + $0x338] sm:$0xff]
          %v4454 = vld [vmem:[#allocation8 + $0x340] sm:$0xff]
          %v4455 = vld [vmem:[#allocation8 + $0x348] sm:$0xff]
          %v4456 = vld [vmem:[#allocation8 + $0x350] sm:$0xff]
          %v4457 = vld [vmem:[#allocation8 + $0x358] sm:$0xff]
          %v4458 = vld [vmem:[#allocation8 + $0x360] sm:$0xff]
          %v4459 = vld [vmem:[#allocation8 + $0x368] sm:$0xff]
          %v4460 = vld [vmem:[#allocation8 + $0x370] sm:$0xff]
          %v4461 = vld [vmem:[#allocation8 + $0x378] sm:$0xff]
          %v4462 = vld [vmem:[#allocation8 + $0x380] sm:$0xff]
          %v4463 = vld [vmem:[#allocation8 + $0x388] sm:$0xff]
          %v4464 = vld [vmem:[#allocation8 + $0x390] sm:$0xff]
          %v4465 = vld [vmem:[#allocation8 + $0x398] sm:$0xff]
          %v4466 = vld [vmem:[#allocation8 + $0x3a0] sm:$0xff]
          %v4467 = vld [vmem:[#allocation8 + $0x3a8] sm:$0xff]
          %v4468 = vld [vmem:[#allocation8 + $0x3b0] sm:$0xff]
          %v4469 = vld [vmem:[#allocation8 + $0x3b8] sm:$0xff]
          %v4470 = vld [vmem:[#allocation8 + $0x3c0] sm:$0xff]
          %v4471 = vld [vmem:[#allocation8 + $0x3c8] sm:$0xff]
          %v4472 = vld [vmem:[#allocation8 + $0x3d0] sm:$0xff]
          %v4473 = vld [vmem:[#allocation8 + $0x3d8] sm:$0xff]
          %v4474 = vld [vmem:[#allocation8 + $0x3e0] sm:$0xff]
          %v4475 = vld [vmem:[#allocation8 + $0x3e8] sm:$0xff]
          %v4476 = vld [vmem:[#allocation8 + $0x3f0] sm:$0xff]
          %v4477 = vld [vmem:[#allocation8 + $0x3f8] sm:$0xff]
          %v4478 = vld [vmem:[#allocation8 + $0x400] sm:$0xff]
          %v4479 = vld [vmem:[#allocation8 + $0x408] sm:$0xff]
          %v4480 = vld [vmem:[#allocation8 + $0x410] sm:$0xff]
          %v4481 = vld [vmem:[#allocation8 + $0x418] sm:$0xff]
          %v4482 = vld [vmem:[#allocation8 + $0x420] sm:$0xff]
          %v4483 = vld [vmem:[#allocation8 + $0x428] sm:$0xff]
          %v4484 = vld [vmem:[#allocation8 + $0x430] sm:$0xff]
          %v4485 = vld [vmem:[#allocation8 + $0x438] sm:$0xff]
          %v4486 = vld [vmem:[#allocation8 + $0x440] sm:$0xff]
          %v4487 = vld [vmem:[#allocation8 + $0x448] sm:$0xff]
          %v4488 = vld [vmem:[#allocation8 + $0x450] sm:$0xff]
          %v4489 = vld [vmem:[#allocation8 + $0x458] sm:$0xff]
          %v4490 = vld [vmem:[#allocation8 + $0x460] sm:$0xff]
          %v4491 = vld [vmem:[#allocation8 + $0x468] sm:$0xff]
          %v4492 = vld [vmem:[#allocation8 + $0x470] sm:$0xff]
          %v4493 = vld [vmem:[#allocation8 + $0x478] sm:$0xff]
          %v4494 = vld [vmem:[#allocation8 + $0x480] sm:$0xff]
          %v4495 = vld [vmem:[#allocation8 + $0x488] sm:$0xff]
          %v4496 = vld [vmem:[#allocation8 + $0x490] sm:$0xff]
          %v4497 = vld [vmem:[#allocation8 + $0x498] sm:$0xff]
          %v4498 = vld [vmem:[#allocation8 + $0x4a0] sm:$0xff]
          %v4499 = vld [vmem:[#allocation8 + $0x4a8] sm:$0xff]
          %v4500 = vld [vmem:[#allocation8 + $0x4b0] sm:$0xff]
          %v4501 = vld [vmem:[#allocation8 + $0x4b8] sm:$0xff]
          %v4502 = vld [vmem:[#allocation8 + $0x4c0] sm:$0xff]
          %v4503 = vld [vmem:[#allocation8 + $0x4c8] sm:$0xff]
          %v4504 = vld [vmem:[#allocation8 + $0x4d0] sm:$0xff]
          %v4505 = vld [vmem:[#allocation8 + $0x4d8] sm:$0xff]
          %v4506 = vld [vmem:[#allocation8 + $0x4e0] sm:$0xff]
          %v4507 = vld [vmem:[#allocation8 + $0x4e8] sm:$0xff]
          %v4508 = vld [vmem:[#allocation8 + $0x4f0] sm:$0xff]
          %v4509 = vld [vmem:[#allocation8 + $0x4f8] sm:$0xff]
          %v4510 = vld [vmem:[#allocation8 + $0x500] sm:$0xff]
          %v4511 = vld [vmem:[#allocation8 + $0x508] sm:$0xff]
          %v4512 = vld [vmem:[#allocation8 + $0x510] sm:$0xff]
          %v4513 = vld [vmem:[#allocation8 + $0x518] sm:$0xff]
          %v4514 = vld [vmem:[#allocation8 + $0x520] sm:$0xff]
          %v4515 = vld [vmem:[#allocation8 + $0x528] sm:$0xff]
          %v4516 = vld [vmem:[#allocation8 + $0x530] sm:$0xff]
          %v4517 = vld [vmem:[#allocation8 + $0x538] sm:$0xff]
          %v4518 = vld [vmem:[#allocation8 + $0x540] sm:$0xff]
          %v4519 = vld [vmem:[#allocation8 + $0x548] sm:$0xff]
          %v4520 = vld [vmem:[#allocation8 + $0x550] sm:$0xff]
          %v4521 = vld [vmem:[#allocation8 + $0x558] sm:$0xff]
          %v4522 = vld [vmem:[#allocation8 + $0x560] sm:$0xff]
          %v4523 = vld [vmem:[#allocation8 + $0x568] sm:$0xff]
          %v4524 = vld [vmem:[#allocation8 + $0x570] sm:$0xff]
          %v4525 = vld [vmem:[#allocation8 + $0x578] sm:$0xff]
          %v4526 = vld [vmem:[#allocation8 + $0x580] sm:$0xff]
          %v4527 = vld [vmem:[#allocation8 + $0x588] sm:$0xff]
          %v4528 = vld [vmem:[#allocation8 + $0x590] sm:$0xff]
          %v4529 = vld [vmem:[#allocation8 + $0x598] sm:$0xff]
          %v4530 = vld [vmem:[#allocation8 + $0x5a0] sm:$0xff]
          %v4531 = vld [vmem:[#allocation8 + $0x5a8] sm:$0xff]
          %v4532 = vld [vmem:[#allocation8 + $0x5b0] sm:$0xff]
          %v4533 = vld [vmem:[#allocation8 + $0x5b8] sm:$0xff]
          %v4534 = vld [vmem:[#allocation8 + $0x5c0] sm:$0xff]
          %v4535 = vld [vmem:[#allocation8 + $0x5c8] sm:$0xff]
          %v4536 = vld [vmem:[#allocation8 + $0x5d0] sm:$0xff]
          %v4537 = vld [vmem:[#allocation8 + $0x5d8] sm:$0xff]
          %v4538 = vld [vmem:[#allocation8 + $0x5e0] sm:$0xff]
          %v4539 = vld [vmem:[#allocation8 + $0x5e8] sm:$0xff]
          %v4540 = vld [vmem:[#allocation8 + $0x5f0] sm:$0xff]
          %v4541 = vld [vmem:[#allocation8 + $0x5f8] sm:$0xff]
          %v4542 = vld [vmem:[#allocation8 + $0x600] sm:$0xff]
          %v4543 = vld [vmem:[#allocation8 + $0x608] sm:$0xff]
          %v4544 = vld [vmem:[#allocation8 + $0x610] sm:$0xff]
          %v4545 = vld [vmem:[#allocation8 + $0x618] sm:$0xff]
          %v4546 = vld [vmem:[#allocation8 + $0x620] sm:$0xff]
          %v4547 = vld [vmem:[#allocation8 + $0x628] sm:$0xff]
          %v4548 = vld [vmem:[#allocation8 + $0x630] sm:$0xff]
          %v4549 = vld [vmem:[#allocation8 + $0x638] sm:$0xff]
          %v4550 = vld [vmem:[#allocation8 + $0x640] sm:$0xff]
          %v4551 = vld [vmem:[#allocation8 + $0x648] sm:$0xff]
          %v4552 = vld [vmem:[#allocation8 + $0x650] sm:$0xff]
          %v4553 = vld [vmem:[#allocation8 + $0x658] sm:$0xff]
          %v4554 = vld [vmem:[#allocation8 + $0x660] sm:$0xff]
          %v4555 = vld [vmem:[#allocation8 + $0x668] sm:$0xff]
          %v4556 = vld [vmem:[#allocation8 + $0x670] sm:$0xff]
          %v4557 = vld [vmem:[#allocation8 + $0x678] sm:$0xff]
          %v4558 = vld [vmem:[#allocation8 + $0x680] sm:$0xff]
          %v4559 = vld [vmem:[#allocation8 + $0x688] sm:$0xff]
          %v4560 = vld [vmem:[#allocation8 + $0x690] sm:$0xff]
          %v4561 = vld [vmem:[#allocation8 + $0x698] sm:$0xff]
          %v4562 = vld [vmem:[#allocation8 + $0x6a0] sm:$0xff]
          %v4563 = vld [vmem:[#allocation8 + $0x6a8] sm:$0xff]
          %v4564 = vld [vmem:[#allocation8 + $0x6b0] sm:$0xff]
          %v4565 = vld [vmem:[#allocation8 + $0x6b8] sm:$0xff]
          %v4566 = vld [vmem:[#allocation8 + $0x6c0] sm:$0xff]
          %v4567 = vld [vmem:[#allocation8 + $0x6c8] sm:$0xff]
          %v4568 = vld [vmem:[#allocation8 + $0x6d0] sm:$0xff]
          %v4569 = vld [vmem:[#allocation8 + $0x6d8] sm:$0xff]
          %v4570 = vld [vmem:[#allocation8 + $0x6e0] sm:$0xff]
          %v4571 = vld [vmem:[#allocation8 + $0x6e8] sm:$0xff]
          %v4572 = vld [vmem:[#allocation8 + $0x6f0] sm:$0xff]
          %v4573 = vld [vmem:[#allocation8 + $0x6f8] sm:$0xff]
          %v4574 = vld [vmem:[#allocation8 + $0x700] sm:$0xff]
          %v4575 = vld [vmem:[#allocation8 + $0x708] sm:$0xff]
          %v4576 = vld [vmem:[#allocation8 + $0x710] sm:$0xff]
          %v4577 = vld [vmem:[#allocation8 + $0x718] sm:$0xff]
          %v4578 = vld [vmem:[#allocation8 + $0x720] sm:$0xff]
          %v4579 = vld [vmem:[#allocation8 + $0x728] sm:$0xff]
          %v4580 = vld [vmem:[#allocation8 + $0x730] sm:$0xff]
          %v4581 = vld [vmem:[#allocation8 + $0x738] sm:$0xff]
          %v4582 = vld [vmem:[#allocation8 + $0x740] sm:$0xff]
          %v4583 = vld [vmem:[#allocation8 + $0x748] sm:$0xff]
          %v4584 = vld [vmem:[#allocation8 + $0x750] sm:$0xff]
          %v4585 = vld [vmem:[#allocation8 + $0x758] sm:$0xff]
          %v4586 = vld [vmem:[#allocation8 + $0x760] sm:$0xff]
          %v4587 = vld [vmem:[#allocation8 + $0x768] sm:$0xff]
          %v4588 = vld [vmem:[#allocation8 + $0x770] sm:$0xff]
          %v4589 = vld [vmem:[#allocation8 + $0x778] sm:$0xff]
          %v4590 = vld [vmem:[#allocation8 + $0x780] sm:$0xff]
          %v4591 = vld [vmem:[#allocation8 + $0x788] sm:$0xff]
          %v4592 = vld [vmem:[#allocation8 + $0x790] sm:$0xff]
          %v4593 = vld [vmem:[#allocation8 + $0x798] sm:$0xff]
          %v4594 = vld [vmem:[#allocation8 + $0x7a0] sm:$0xff]
          %v4595 = vld [vmem:[#allocation8 + $0x7a8] sm:$0xff]
          %v4596 = vld [vmem:[#allocation8 + $0x7b0] sm:$0xff]
          %v4597 = vld [vmem:[#allocation8 + $0x7b8] sm:$0xff]
          %v4598 = vld [vmem:[#allocation8 + $0x7c0] sm:$0xff]
          %v4599 = vld [vmem:[#allocation8 + $0x7c8] sm:$0xff]
          %v4600 = vld [vmem:[#allocation8 + $0x7d0] sm:$0xff]
          %v4601 = vld [vmem:[#allocation8 + $0x7d8] sm:$0xff]
          %v4602 = vld [vmem:[#allocation8 + $0x7e0] sm:$0xff]
          %v4603 = vld [vmem:[#allocation8 + $0x7e8] sm:$0xff]
          %v4604 = vld [vmem:[#allocation8 + $0x7f0] sm:$0xff]
          %v4605 = vld [vmem:[#allocation8 + $0x7f8] sm:$0xff]
          %v4606 = vld [vmem:[#allocation9] sm:$0xf]
          %v4608 = vlaneseq
          %v4609 = vshrl.u32 %v4608, 7
          %v4610 = vsub.s32 0, %v4609
          %v4611 = vrot.slane %v4606, %v4610
          %v4612 = vlaneseq
          %v4613 = vshrl.u32 %v4612, 7
          %v4614 = vsub.s32 1, %v4613
          %v4615 = vrot.slane %v4606, %v4614
          %v4616 = vlaneseq
          %v4617 = vshrl.u32 %v4616, 7
          %v4618 = vsub.s32 2, %v4617
          %v4619 = vrot.slane %v4606, %v4618
          %v4620 = vlaneseq
          %v4621 = vshrl.u32 %v4620, 7
          %v4622 = vsub.s32 3, %v4621
          %v4623 = vrot.slane %v4606, %v4622
          %v4884 = vunpack.c.l.b16 %v4350
          %v4885 = vunpack.c.h.b16 %v4350
          %v4886 = vunpack.c.l.b16 %v4351
          %v4887 = vunpack.c.h.b16 %v4351
          %v4888 = vunpack.c.l.b16 %v4352
          %v4889 = vunpack.c.h.b16 %v4352
          %v4890 = vunpack.c.l.b16 %v4353
          %v4891 = vunpack.c.h.b16 %v4353
          %v4892 = vunpack.c.l.b16 %v4354
          %v4893 = vunpack.c.h.b16 %v4354
          %v4894 = vunpack.c.l.b16 %v4355
          %v4895 = vunpack.c.h.b16 %v4355
          %v4896 = vunpack.c.l.b16 %v4356
          %v4897 = vunpack.c.h.b16 %v4356
          %v4898 = vunpack.c.l.b16 %v4357
          %v4899 = vunpack.c.h.b16 %v4357
          %v4900 = vunpack.c.l.b16 %v4358
          %v4901 = vunpack.c.h.b16 %v4358
          %v4902 = vunpack.c.l.b16 %v4359
          %v4903 = vunpack.c.h.b16 %v4359
          %v4904 = vunpack.c.l.b16 %v4360
          %v4905 = vunpack.c.h.b16 %v4360
          %v4906 = vunpack.c.l.b16 %v4361
          %v4907 = vunpack.c.h.b16 %v4361
          %v4908 = vunpack.c.l.b16 %v4362
          %v4909 = vunpack.c.h.b16 %v4362
          %v4910 = vunpack.c.l.b16 %v4363
          %v4911 = vunpack.c.h.b16 %v4363
          %v4912 = vunpack.c.l.b16 %v4364
          %v4913 = vunpack.c.h.b16 %v4364
          %v4914 = vunpack.c.l.b16 %v4365
          %v4915 = vunpack.c.h.b16 %v4365
          %v4916 = vunpack.c.l.b16 %v4366
          %v4917 = vunpack.c.h.b16 %v4366
          %v4918 = vunpack.c.l.b16 %v4367
          %v4919 = vunpack.c.h.b16 %v4367
          %v4920 = vunpack.c.l.b16 %v4368
          %v4921 = vunpack.c.h.b16 %v4368
          %v4922 = vunpack.c.l.b16 %v4369
          %v4923 = vunpack.c.h.b16 %v4369
          %v4924 = vunpack.c.l.b16 %v4370
          %v4925 = vunpack.c.h.b16 %v4370
          %v4926 = vunpack.c.l.b16 %v4371
          %v4927 = vunpack.c.h.b16 %v4371
          %v4928 = vunpack.c.l.b16 %v4372
          %v4929 = vunpack.c.h.b16 %v4372
          %v4930 = vunpack.c.l.b16 %v4373
          %v4931 = vunpack.c.h.b16 %v4373
          %v4932 = vunpack.c.l.b16 %v4374
          %v4933 = vunpack.c.h.b16 %v4374
          %v4934 = vunpack.c.l.b16 %v4375
          %v4935 = vunpack.c.h.b16 %v4375
          %v4936 = vunpack.c.l.b16 %v4376
          %v4937 = vunpack.c.h.b16 %v4376
          %v4938 = vunpack.c.l.b16 %v4377
          %v4939 = vunpack.c.h.b16 %v4377
          %v4940 = vunpack.c.l.b16 %v4378
          %v4941 = vunpack.c.h.b16 %v4378
          %v4942 = vunpack.c.l.b16 %v4379
          %v4943 = vunpack.c.h.b16 %v4379
          %v4944 = vunpack.c.l.b16 %v4380
          %v4945 = vunpack.c.h.b16 %v4380
          %v4946 = vunpack.c.l.b16 %v4381
          %v4947 = vunpack.c.h.b16 %v4381
          %v4948 = vunpack.c.l.b16 %v4382
          %v4949 = vunpack.c.h.b16 %v4382
          %v4950 = vunpack.c.l.b16 %v4383
          %v4951 = vunpack.c.h.b16 %v4383
          %v4952 = vunpack.c.l.b16 %v4384
          %v4953 = vunpack.c.h.b16 %v4384
          %v4954 = vunpack.c.l.b16 %v4385
          %v4955 = vunpack.c.h.b16 %v4385
          %v4956 = vunpack.c.l.b16 %v4386
          %v4957 = vunpack.c.h.b16 %v4386
          %v4958 = vunpack.c.l.b16 %v4387
          %v4959 = vunpack.c.h.b16 %v4387
          %v4960 = vunpack.c.l.b16 %v4388
          %v4961 = vunpack.c.h.b16 %v4388
          %v4962 = vunpack.c.l.b16 %v4389
          %v4963 = vunpack.c.h.b16 %v4389
          %v4964 = vunpack.c.l.b16 %v4390
          %v4965 = vunpack.c.h.b16 %v4390
          %v4966 = vunpack.c.l.b16 %v4391
          %v4967 = vunpack.c.h.b16 %v4391
          %v4968 = vunpack.c.l.b16 %v4392
          %v4969 = vunpack.c.h.b16 %v4392
          %v4970 = vunpack.c.l.b16 %v4393
          %v4971 = vunpack.c.h.b16 %v4393
          %v4972 = vunpack.c.l.b16 %v4394
          %v4973 = vunpack.c.h.b16 %v4394
          %v4974 = vunpack.c.l.b16 %v4395
          %v4975 = vunpack.c.h.b16 %v4395
          %v4976 = vunpack.c.l.b16 %v4396
          %v4977 = vunpack.c.h.b16 %v4396
          %v4978 = vunpack.c.l.b16 %v4397
          %v4979 = vunpack.c.h.b16 %v4397
          %v4980 = vunpack.c.l.b16 %v4398
          %v4981 = vunpack.c.h.b16 %v4398
          %v4982 = vunpack.c.l.b16 %v4399
          %v4983 = vunpack.c.h.b16 %v4399
          %v4984 = vunpack.c.l.b16 %v4400
          %v4985 = vunpack.c.h.b16 %v4400
          %v4986 = vunpack.c.l.b16 %v4401
          %v4987 = vunpack.c.h.b16 %v4401
          %v4988 = vunpack.c.l.b16 %v4402
          %v4989 = vunpack.c.h.b16 %v4402
          %v4990 = vunpack.c.l.b16 %v4403
          %v4991 = vunpack.c.h.b16 %v4403
          %v4992 = vunpack.c.l.b16 %v4404
          %v4993 = vunpack.c.h.b16 %v4404
          %v4994 = vunpack.c.l.b16 %v4405
          %v4995 = vunpack.c.h.b16 %v4405
          %v4996 = vunpack.c.l.b16 %v4406
          %v4997 = vunpack.c.h.b16 %v4406
          %v4998 = vunpack.c.l.b16 %v4407
          %v4999 = vunpack.c.h.b16 %v4407
          %v5000 = vunpack.c.l.b16 %v4408
          %v5001 = vunpack.c.h.b16 %v4408
          %v5002 = vunpack.c.l.b16 %v4409
          %v5003 = vunpack.c.h.b16 %v4409
          %v5004 = vunpack.c.l.b16 %v4410
          %v5005 = vunpack.c.h.b16 %v4410
          %v5006 = vunpack.c.l.b16 %v4411
          %v5007 = vunpack.c.h.b16 %v4411
          %v5008 = vunpack.c.l.b16 %v4412
          %v5009 = vunpack.c.h.b16 %v4412
          %v5010 = vunpack.c.l.b16 %v4413
          %v5011 = vunpack.c.h.b16 %v4413
          %v5012 = vunpack.c.l.b16 %v4414
          %v5013 = vunpack.c.h.b16 %v4414
          %v5014 = vunpack.c.l.b16 %v4415
          %v5015 = vunpack.c.h.b16 %v4415
          %v5016 = vunpack.c.l.b16 %v4416
          %v5017 = vunpack.c.h.b16 %v4416
          %v5018 = vunpack.c.l.b16 %v4417
          %v5019 = vunpack.c.h.b16 %v4417
          %v5020 = vunpack.c.l.b16 %v4418
          %v5021 = vunpack.c.h.b16 %v4418
          %v5022 = vunpack.c.l.b16 %v4419
          %v5023 = vunpack.c.h.b16 %v4419
          %v5024 = vunpack.c.l.b16 %v4420
          %v5025 = vunpack.c.h.b16 %v4420
          %v5026 = vunpack.c.l.b16 %v4421
          %v5027 = vunpack.c.h.b16 %v4421
          %v5028 = vunpack.c.l.b16 %v4422
          %v5029 = vunpack.c.h.b16 %v4422
          %v5030 = vunpack.c.l.b16 %v4423
          %v5031 = vunpack.c.h.b16 %v4423
          %v5032 = vunpack.c.l.b16 %v4424
          %v5033 = vunpack.c.h.b16 %v4424
          %v5034 = vunpack.c.l.b16 %v4425
          %v5035 = vunpack.c.h.b16 %v4425
          %v5036 = vunpack.c.l.b16 %v4426
          %v5037 = vunpack.c.h.b16 %v4426
          %v5038 = vunpack.c.l.b16 %v4427
          %v5039 = vunpack.c.h.b16 %v4427
          %v5040 = vunpack.c.l.b16 %v4428
          %v5041 = vunpack.c.h.b16 %v4428
          %v5042 = vunpack.c.l.b16 %v4429
          %v5043 = vunpack.c.h.b16 %v4429
          %v5044 = vunpack.c.l.b16 %v4430
          %v5045 = vunpack.c.h.b16 %v4430
          %v5046 = vunpack.c.l.b16 %v4431
          %v5047 = vunpack.c.h.b16 %v4431
          %v5048 = vunpack.c.l.b16 %v4432
          %v5049 = vunpack.c.h.b16 %v4432
          %v5050 = vunpack.c.l.b16 %v4433
          %v5051 = vunpack.c.h.b16 %v4433
          %v5052 = vunpack.c.l.b16 %v4434
          %v5053 = vunpack.c.h.b16 %v4434
          %v5054 = vunpack.c.l.b16 %v4435
          %v5055 = vunpack.c.h.b16 %v4435
          %v5056 = vunpack.c.l.b16 %v4436
          %v5057 = vunpack.c.h.b16 %v4436
          %v5058 = vunpack.c.l.b16 %v4437
          %v5059 = vunpack.c.h.b16 %v4437
          %v5060 = vunpack.c.l.b16 %v4438
          %v5061 = vunpack.c.h.b16 %v4438
          %v5062 = vunpack.c.l.b16 %v4439
          %v5063 = vunpack.c.h.b16 %v4439
          %v5064 = vunpack.c.l.b16 %v4440
          %v5065 = vunpack.c.h.b16 %v4440
          %v5066 = vunpack.c.l.b16 %v4441
          %v5067 = vunpack.c.h.b16 %v4441
          %v5068 = vunpack.c.l.b16 %v4442
          %v5069 = vunpack.c.h.b16 %v4442
          %v5070 = vunpack.c.l.b16 %v4443
          %v5071 = vunpack.c.h.b16 %v4443
          %v5072 = vunpack.c.l.b16 %v4444
          %v5073 = vunpack.c.h.b16 %v4444
          %v5074 = vunpack.c.l.b16 %v4445
          %v5075 = vunpack.c.h.b16 %v4445
          %v5076 = vunpack.c.l.b16 %v4446
          %v5077 = vunpack.c.h.b16 %v4446
          %v5078 = vunpack.c.l.b16 %v4447
          %v5079 = vunpack.c.h.b16 %v4447
          %v5080 = vunpack.c.l.b16 %v4448
          %v5081 = vunpack.c.h.b16 %v4448
          %v5082 = vunpack.c.l.b16 %v4449
          %v5083 = vunpack.c.h.b16 %v4449
          %v5084 = vunpack.c.l.b16 %v4450
          %v5085 = vunpack.c.h.b16 %v4450
          %v5086 = vunpack.c.l.b16 %v4451
          %v5087 = vunpack.c.h.b16 %v4451
          %v5088 = vunpack.c.l.b16 %v4452
          %v5089 = vunpack.c.h.b16 %v4452
          %v5090 = vunpack.c.l.b16 %v4453
          %v5091 = vunpack.c.h.b16 %v4453
          %v5092 = vunpack.c.l.b16 %v4454
          %v5093 = vunpack.c.h.b16 %v4454
          %v5094 = vunpack.c.l.b16 %v4455
          %v5095 = vunpack.c.h.b16 %v4455
          %v5096 = vunpack.c.l.b16 %v4456
          %v5097 = vunpack.c.h.b16 %v4456
          %v5098 = vunpack.c.l.b16 %v4457
          %v5099 = vunpack.c.h.b16 %v4457
          %v5100 = vunpack.c.l.b16 %v4458
          %v5101 = vunpack.c.h.b16 %v4458
          %v5102 = vunpack.c.l.b16 %v4459
          %v5103 = vunpack.c.h.b16 %v4459
          %v5104 = vunpack.c.l.b16 %v4460
          %v5105 = vunpack.c.h.b16 %v4460
          %v5106 = vunpack.c.l.b16 %v4461
          %v5107 = vunpack.c.h.b16 %v4461
          %v5108 = vunpack.c.l.b16 %v4462
          %v5109 = vunpack.c.h.b16 %v4462
          %v5110 = vunpack.c.l.b16 %v4463
          %v5111 = vunpack.c.h.b16 %v4463
          %v5112 = vunpack.c.l.b16 %v4464
          %v5113 = vunpack.c.h.b16 %v4464
          %v5114 = vunpack.c.l.b16 %v4465
          %v5115 = vunpack.c.h.b16 %v4465
          %v5116 = vunpack.c.l.b16 %v4466
          %v5117 = vunpack.c.h.b16 %v4466
          %v5118 = vunpack.c.l.b16 %v4467
          %v5119 = vunpack.c.h.b16 %v4467
          %v5120 = vunpack.c.l.b16 %v4468
          %v5121 = vunpack.c.h.b16 %v4468
          %v5122 = vunpack.c.l.b16 %v4469
          %v5123 = vunpack.c.h.b16 %v4469
          %v5124 = vunpack.c.l.b16 %v4470
          %v5125 = vunpack.c.h.b16 %v4470
          %v5126 = vunpack.c.l.b16 %v4471
          %v5127 = vunpack.c.h.b16 %v4471
          %v5128 = vunpack.c.l.b16 %v4472
          %v5129 = vunpack.c.h.b16 %v4472
          %v5130 = vunpack.c.l.b16 %v4473
          %v5131 = vunpack.c.h.b16 %v4473
          %v5132 = vunpack.c.l.b16 %v4474
          %v5133 = vunpack.c.h.b16 %v4474
          %v5134 = vunpack.c.l.b16 %v4475
          %v5135 = vunpack.c.h.b16 %v4475
          %v5136 = vunpack.c.l.b16 %v4476
          %v5137 = vunpack.c.h.b16 %v4476
          %v5138 = vunpack.c.l.b16 %v4477
          %v5139 = vunpack.c.h.b16 %v4477
          %v5140 = vunpack.c.l.b16 %v4478
          %v5141 = vunpack.c.h.b16 %v4478
          %v5142 = vunpack.c.l.b16 %v4479
          %v5143 = vunpack.c.h.b16 %v4479
          %v5144 = vunpack.c.l.b16 %v4480
          %v5145 = vunpack.c.h.b16 %v4480
          %v5146 = vunpack.c.l.b16 %v4481
          %v5147 = vunpack.c.h.b16 %v4481
          %v5148 = vunpack.c.l.b16 %v4482
          %v5149 = vunpack.c.h.b16 %v4482
          %v5150 = vunpack.c.l.b16 %v4483
          %v5151 = vunpack.c.h.b16 %v4483
          %v5152 = vunpack.c.l.b16 %v4484
          %v5153 = vunpack.c.h.b16 %v4484
          %v5154 = vunpack.c.l.b16 %v4485
          %v5155 = vunpack.c.h.b16 %v4485
          %v5156 = vunpack.c.l.b16 %v4486
          %v5157 = vunpack.c.h.b16 %v4486
          %v5158 = vunpack.c.l.b16 %v4487
          %v5159 = vunpack.c.h.b16 %v4487
          %v5160 = vunpack.c.l.b16 %v4488
          %v5161 = vunpack.c.h.b16 %v4488
          %v5162 = vunpack.c.l.b16 %v4489
          %v5163 = vunpack.c.h.b16 %v4489
          %v5164 = vunpack.c.l.b16 %v4490
          %v5165 = vunpack.c.h.b16 %v4490
          %v5166 = vunpack.c.l.b16 %v4491
          %v5167 = vunpack.c.h.b16 %v4491
          %v5168 = vunpack.c.l.b16 %v4492
          %v5169 = vunpack.c.h.b16 %v4492
          %v5170 = vunpack.c.l.b16 %v4493
          %v5171 = vunpack.c.h.b16 %v4493
          %v5172 = vunpack.c.l.b16 %v4494
          %v5173 = vunpack.c.h.b16 %v4494
          %v5174 = vunpack.c.l.b16 %v4495
          %v5175 = vunpack.c.h.b16 %v4495
          %v5176 = vunpack.c.l.b16 %v4496
          %v5177 = vunpack.c.h.b16 %v4496
          %v5178 = vunpack.c.l.b16 %v4497
          %v5179 = vunpack.c.h.b16 %v4497
          %v5180 = vunpack.c.l.b16 %v4498
          %v5181 = vunpack.c.h.b16 %v4498
          %v5182 = vunpack.c.l.b16 %v4499
          %v5183 = vunpack.c.h.b16 %v4499
          %v5184 = vunpack.c.l.b16 %v4500
          %v5185 = vunpack.c.h.b16 %v4500
          %v5186 = vunpack.c.l.b16 %v4501
          %v5187 = vunpack.c.h.b16 %v4501
          %v5188 = vunpack.c.l.b16 %v4502
          %v5189 = vunpack.c.h.b16 %v4502
          %v5190 = vunpack.c.l.b16 %v4503
          %v5191 = vunpack.c.h.b16 %v4503
          %v5192 = vunpack.c.l.b16 %v4504
          %v5193 = vunpack.c.h.b16 %v4504
          %v5194 = vunpack.c.l.b16 %v4505
          %v5195 = vunpack.c.h.b16 %v4505
          %v5196 = vunpack.c.l.b16 %v4506
          %v5197 = vunpack.c.h.b16 %v4506
          %v5198 = vunpack.c.l.b16 %v4507
          %v5199 = vunpack.c.h.b16 %v4507
          %v5200 = vunpack.c.l.b16 %v4508
          %v5201 = vunpack.c.h.b16 %v4508
          %v5202 = vunpack.c.l.b16 %v4509
          %v5203 = vunpack.c.h.b16 %v4509
          %v5204 = vunpack.c.l.b16 %v4510
          %v5205 = vunpack.c.h.b16 %v4510
          %v5206 = vunpack.c.l.b16 %v4511
          %v5207 = vunpack.c.h.b16 %v4511
          %v5208 = vunpack.c.l.b16 %v4512
          %v5209 = vunpack.c.h.b16 %v4512
          %v5210 = vunpack.c.l.b16 %v4513
          %v5211 = vunpack.c.h.b16 %v4513
          %v5212 = vunpack.c.l.b16 %v4514
          %v5213 = vunpack.c.h.b16 %v4514
          %v5214 = vunpack.c.l.b16 %v4515
          %v5215 = vunpack.c.h.b16 %v4515
          %v5216 = vunpack.c.l.b16 %v4516
          %v5217 = vunpack.c.h.b16 %v4516
          %v5218 = vunpack.c.l.b16 %v4517
          %v5219 = vunpack.c.h.b16 %v4517
          %v5220 = vunpack.c.l.b16 %v4518
          %v5221 = vunpack.c.h.b16 %v4518
          %v5222 = vunpack.c.l.b16 %v4519
          %v5223 = vunpack.c.h.b16 %v4519
          %v5224 = vunpack.c.l.b16 %v4520
          %v5225 = vunpack.c.h.b16 %v4520
          %v5226 = vunpack.c.l.b16 %v4521
          %v5227 = vunpack.c.h.b16 %v4521
          %v5228 = vunpack.c.l.b16 %v4522
          %v5229 = vunpack.c.h.b16 %v4522
          %v5230 = vunpack.c.l.b16 %v4523
          %v5231 = vunpack.c.h.b16 %v4523
          %v5232 = vunpack.c.l.b16 %v4524
          %v5233 = vunpack.c.h.b16 %v4524
          %v5234 = vunpack.c.l.b16 %v4525
          %v5235 = vunpack.c.h.b16 %v4525
          %v5236 = vunpack.c.l.b16 %v4526
          %v5237 = vunpack.c.h.b16 %v4526
          %v5238 = vunpack.c.l.b16 %v4527
          %v5239 = vunpack.c.h.b16 %v4527
          %v5240 = vunpack.c.l.b16 %v4528
          %v5241 = vunpack.c.h.b16 %v4528
          %v5242 = vunpack.c.l.b16 %v4529
          %v5243 = vunpack.c.h.b16 %v4529
          %v5244 = vunpack.c.l.b16 %v4530
          %v5245 = vunpack.c.h.b16 %v4530
          %v5246 = vunpack.c.l.b16 %v4531
          %v5247 = vunpack.c.h.b16 %v4531
          %v5248 = vunpack.c.l.b16 %v4532
          %v5249 = vunpack.c.h.b16 %v4532
          %v5250 = vunpack.c.l.b16 %v4533
          %v5251 = vunpack.c.h.b16 %v4533
          %v5252 = vunpack.c.l.b16 %v4534
          %v5253 = vunpack.c.h.b16 %v4534
          %v5254 = vunpack.c.l.b16 %v4535
          %v5255 = vunpack.c.h.b16 %v4535
          %v5256 = vunpack.c.l.b16 %v4536
          %v5257 = vunpack.c.h.b16 %v4536
          %v5258 = vunpack.c.l.b16 %v4537
          %v5259 = vunpack.c.h.b16 %v4537
          %v5260 = vunpack.c.l.b16 %v4538
          %v5261 = vunpack.c.h.b16 %v4538
          %v5262 = vunpack.c.l.b16 %v4539
          %v5263 = vunpack.c.h.b16 %v4539
          %v5264 = vunpack.c.l.b16 %v4540
          %v5265 = vunpack.c.h.b16 %v4540
          %v5266 = vunpack.c.l.b16 %v4541
          %v5267 = vunpack.c.h.b16 %v4541
          %v5268 = vunpack.c.l.b16 %v4542
          %v5269 = vunpack.c.h.b16 %v4542
          %v5270 = vunpack.c.l.b16 %v4543
          %v5271 = vunpack.c.h.b16 %v4543
          %v5272 = vunpack.c.l.b16 %v4544
          %v5273 = vunpack.c.h.b16 %v4544
          %v5274 = vunpack.c.l.b16 %v4545
          %v5275 = vunpack.c.h.b16 %v4545
          %v5276 = vunpack.c.l.b16 %v4546
          %v5277 = vunpack.c.h.b16 %v4546
          %v5278 = vunpack.c.l.b16 %v4547
          %v5279 = vunpack.c.h.b16 %v4547
          %v5280 = vunpack.c.l.b16 %v4548
          %v5281 = vunpack.c.h.b16 %v4548
          %v5282 = vunpack.c.l.b16 %v4549
          %v5283 = vunpack.c.h.b16 %v4549
          %v5284 = vunpack.c.l.b16 %v4550
          %v5285 = vunpack.c.h.b16 %v4550
          %v5286 = vunpack.c.l.b16 %v4551
          %v5287 = vunpack.c.h.b16 %v4551
          %v5288 = vunpack.c.l.b16 %v4552
          %v5289 = vunpack.c.h.b16 %v4552
          %v5290 = vunpack.c.l.b16 %v4553
          %v5291 = vunpack.c.h.b16 %v4553
          %v5292 = vunpack.c.l.b16 %v4554
          %v5293 = vunpack.c.h.b16 %v4554
          %v5294 = vunpack.c.l.b16 %v4555
          %v5295 = vunpack.c.h.b16 %v4555
          %v5296 = vunpack.c.l.b16 %v4556
          %v5297 = vunpack.c.h.b16 %v4556
          %v5298 = vunpack.c.l.b16 %v4557
          %v5299 = vunpack.c.h.b16 %v4557
          %v5300 = vunpack.c.l.b16 %v4558
          %v5301 = vunpack.c.h.b16 %v4558
          %v5302 = vunpack.c.l.b16 %v4559
          %v5303 = vunpack.c.h.b16 %v4559
          %v5304 = vunpack.c.l.b16 %v4560
          %v5305 = vunpack.c.h.b16 %v4560
          %v5306 = vunpack.c.l.b16 %v4561
          %v5307 = vunpack.c.h.b16 %v4561
          %v5308 = vunpack.c.l.b16 %v4562
          %v5309 = vunpack.c.h.b16 %v4562
          %v5310 = vunpack.c.l.b16 %v4563
          %v5311 = vunpack.c.h.b16 %v4563
          %v5312 = vunpack.c.l.b16 %v4564
          %v5313 = vunpack.c.h.b16 %v4564
          %v5314 = vunpack.c.l.b16 %v4565
          %v5315 = vunpack.c.h.b16 %v4565
          %v5316 = vunpack.c.l.b16 %v4566
          %v5317 = vunpack.c.h.b16 %v4566
          %v5318 = vunpack.c.l.b16 %v4567
          %v5319 = vunpack.c.h.b16 %v4567
          %v5320 = vunpack.c.l.b16 %v4568
          %v5321 = vunpack.c.h.b16 %v4568
          %v5322 = vunpack.c.l.b16 %v4569
          %v5323 = vunpack.c.h.b16 %v4569
          %v5324 = vunpack.c.l.b16 %v4570
          %v5325 = vunpack.c.h.b16 %v4570
          %v5326 = vunpack.c.l.b16 %v4571
          %v5327 = vunpack.c.h.b16 %v4571
          %v5328 = vunpack.c.l.b16 %v4572
          %v5329 = vunpack.c.h.b16 %v4572
          %v5330 = vunpack.c.l.b16 %v4573
          %v5331 = vunpack.c.h.b16 %v4573
          %v5332 = vunpack.c.l.b16 %v4574
          %v5333 = vunpack.c.h.b16 %v4574
          %v5334 = vunpack.c.l.b16 %v4575
          %v5335 = vunpack.c.h.b16 %v4575
          %v5336 = vunpack.c.l.b16 %v4576
          %v5337 = vunpack.c.h.b16 %v4576
          %v5338 = vunpack.c.l.b16 %v4577
          %v5339 = vunpack.c.h.b16 %v4577
          %v5340 = vunpack.c.l.b16 %v4578
          %v5341 = vunpack.c.h.b16 %v4578
          %v5342 = vunpack.c.l.b16 %v4579
          %v5343 = vunpack.c.h.b16 %v4579
          %v5344 = vunpack.c.l.b16 %v4580
          %v5345 = vunpack.c.h.b16 %v4580
          %v5346 = vunpack.c.l.b16 %v4581
          %v5347 = vunpack.c.h.b16 %v4581
          %v5348 = vunpack.c.l.b16 %v4582
          %v5349 = vunpack.c.h.b16 %v4582
          %v5350 = vunpack.c.l.b16 %v4583
          %v5351 = vunpack.c.h.b16 %v4583
          %v5352 = vunpack.c.l.b16 %v4584
          %v5353 = vunpack.c.h.b16 %v4584
          %v5354 = vunpack.c.l.b16 %v4585
          %v5355 = vunpack.c.h.b16 %v4585
          %v5356 = vunpack.c.l.b16 %v4586
          %v5357 = vunpack.c.h.b16 %v4586
          %v5358 = vunpack.c.l.b16 %v4587
          %v5359 = vunpack.c.h.b16 %v4587
          %v5360 = vunpack.c.l.b16 %v4588
          %v5361 = vunpack.c.h.b16 %v4588
          %v5362 = vunpack.c.l.b16 %v4589
          %v5363 = vunpack.c.h.b16 %v4589
          %v5364 = vunpack.c.l.b16 %v4590
          %v5365 = vunpack.c.h.b16 %v4590
          %v5366 = vunpack.c.l.b16 %v4591
          %v5367 = vunpack.c.h.b16 %v4591
          %v5368 = vunpack.c.l.b16 %v4592
          %v5369 = vunpack.c.h.b16 %v4592
          %v5370 = vunpack.c.l.b16 %v4593
          %v5371 = vunpack.c.h.b16 %v4593
          %v5372 = vunpack.c.l.b16 %v4594
          %v5373 = vunpack.c.h.b16 %v4594
          %v5374 = vunpack.c.l.b16 %v4595
          %v5375 = vunpack.c.h.b16 %v4595
          %v5376 = vunpack.c.l.b16 %v4596
          %v5377 = vunpack.c.h.b16 %v4596
          %v5378 = vunpack.c.l.b16 %v4597
          %v5379 = vunpack.c.h.b16 %v4597
          %v5380 = vunpack.c.l.b16 %v4598
          %v5381 = vunpack.c.h.b16 %v4598
          %v5382 = vunpack.c.l.b16 %v4599
          %v5383 = vunpack.c.h.b16 %v4599
          %v5384 = vunpack.c.l.b16 %v4600
          %v5385 = vunpack.c.h.b16 %v4600
          %v5386 = vunpack.c.l.b16 %v4601
          %v5387 = vunpack.c.h.b16 %v4601
          %v5388 = vunpack.c.l.b16 %v4602
          %v5389 = vunpack.c.h.b16 %v4602
          %v5390 = vunpack.c.l.b16 %v4603
          %v5391 = vunpack.c.h.b16 %v4603
          %v5392 = vunpack.c.l.b16 %v4604
          %v5393 = vunpack.c.h.b16 %v4604
          %v5394 = vunpack.c.l.b16 %v4605
          %v5395 = vunpack.c.h.b16 %v4605
          %v5396 = vpack.c.b16 %v4892, %v4884
          %v5397 = vpack.c.b16 %v4893, %v4885
          %v5398 = vpack.c.b16 %v4894, %v4886
          %v5399 = vpack.c.b16 %v4895, %v4887
          %v5400 = vpack.c.b16 %v4896, %v4888
          %v5401 = vpack.c.b16 %v4897, %v4889
          %v5402 = vpack.c.b16 %v4898, %v4890
          %v5403 = vpack.c.b16 %v4899, %v4891
          %v5404 = vpack.c.b16 %v4908, %v4900
          %v5405 = vpack.c.b16 %v4909, %v4901
          %v5406 = vpack.c.b16 %v4910, %v4902
          %v5407 = vpack.c.b16 %v4911, %v4903
          %v5408 = vpack.c.b16 %v4912, %v4904
          %v5409 = vpack.c.b16 %v4913, %v4905
          %v5410 = vpack.c.b16 %v4914, %v4906
          %v5411 = vpack.c.b16 %v4915, %v4907
          %v5412 = vpack.c.b16 %v4924, %v4916
          %v5413 = vpack.c.b16 %v4925, %v4917
          %v5414 = vpack.c.b16 %v4926, %v4918
          %v5415 = vpack.c.b16 %v4927, %v4919
          %v5416 = vpack.c.b16 %v4928, %v4920
          %v5417 = vpack.c.b16 %v4929, %v4921
          %v5418 = vpack.c.b16 %v4930, %v4922
          %v5419 = vpack.c.b16 %v4931, %v4923
          %v5420 = vpack.c.b16 %v4940, %v4932
          %v5421 = vpack.c.b16 %v4941, %v4933
          %v5422 = vpack.c.b16 %v4942, %v4934
          %v5423 = vpack.c.b16 %v4943, %v4935
          %v5424 = vpack.c.b16 %v4944, %v4936
          %v5425 = vpack.c.b16 %v4945, %v4937
          %v5426 = vpack.c.b16 %v4946, %v4938
          %v5427 = vpack.c.b16 %v4947, %v4939
          %v5428 = vpack.c.b16 %v4956, %v4948
          %v5429 = vpack.c.b16 %v4957, %v4949
          %v5430 = vpack.c.b16 %v4958, %v4950
          %v5431 = vpack.c.b16 %v4959, %v4951
          %v5432 = vpack.c.b16 %v4960, %v4952
          %v5433 = vpack.c.b16 %v4961, %v4953
          %v5434 = vpack.c.b16 %v4962, %v4954
          %v5435 = vpack.c.b16 %v4963, %v4955
          %v5436 = vpack.c.b16 %v4972, %v4964
          %v5437 = vpack.c.b16 %v4973, %v4965
          %v5438 = vpack.c.b16 %v4974, %v4966
          %v5439 = vpack.c.b16 %v4975, %v4967
          %v5440 = vpack.c.b16 %v4976, %v4968
          %v5441 = vpack.c.b16 %v4977, %v4969
          %v5442 = vpack.c.b16 %v4978, %v4970
          %v5443 = vpack.c.b16 %v4979, %v4971
          %v5444 = vpack.c.b16 %v4988, %v4980
          %v5445 = vpack.c.b16 %v4989, %v4981
          %v5446 = vpack.c.b16 %v4990, %v4982
          %v5447 = vpack.c.b16 %v4991, %v4983
          %v5448 = vpack.c.b16 %v4992, %v4984
          %v5449 = vpack.c.b16 %v4993, %v4985
          %v5450 = vpack.c.b16 %v4994, %v4986
          %v5451 = vpack.c.b16 %v4995, %v4987
          %v5452 = vpack.c.b16 %v5004, %v4996
          %v5453 = vpack.c.b16 %v5005, %v4997
          %v5454 = vpack.c.b16 %v5006, %v4998
          %v5455 = vpack.c.b16 %v5007, %v4999
          %v5456 = vpack.c.b16 %v5008, %v5000
          %v5457 = vpack.c.b16 %v5009, %v5001
          %v5458 = vpack.c.b16 %v5010, %v5002
          %v5459 = vpack.c.b16 %v5011, %v5003
          %v5460 = vpack.c.b16 %v5020, %v5012
          %v5461 = vpack.c.b16 %v5021, %v5013
          %v5462 = vpack.c.b16 %v5022, %v5014
          %v5463 = vpack.c.b16 %v5023, %v5015
          %v5464 = vpack.c.b16 %v5024, %v5016
          %v5465 = vpack.c.b16 %v5025, %v5017
          %v5466 = vpack.c.b16 %v5026, %v5018
          %v5467 = vpack.c.b16 %v5027, %v5019
          %v5468 = vpack.c.b16 %v5036, %v5028
          %v5469 = vpack.c.b16 %v5037, %v5029
          %v5470 = vpack.c.b16 %v5038, %v5030
          %v5471 = vpack.c.b16 %v5039, %v5031
          %v5472 = vpack.c.b16 %v5040, %v5032
          %v5473 = vpack.c.b16 %v5041, %v5033
          %v5474 = vpack.c.b16 %v5042, %v5034
          %v5475 = vpack.c.b16 %v5043, %v5035
          %v5476 = vpack.c.b16 %v5052, %v5044
          %v5477 = vpack.c.b16 %v5053, %v5045
          %v5478 = vpack.c.b16 %v5054, %v5046
          %v5479 = vpack.c.b16 %v5055, %v5047
          %v5480 = vpack.c.b16 %v5056, %v5048
          %v5481 = vpack.c.b16 %v5057, %v5049
          %v5482 = vpack.c.b16 %v5058, %v5050
          %v5483 = vpack.c.b16 %v5059, %v5051
          %v5484 = vpack.c.b16 %v5068, %v5060
          %v5485 = vpack.c.b16 %v5069, %v5061
          %v5486 = vpack.c.b16 %v5070, %v5062
          %v5487 = vpack.c.b16 %v5071, %v5063
          %v5488 = vpack.c.b16 %v5072, %v5064
          %v5489 = vpack.c.b16 %v5073, %v5065
          %v5490 = vpack.c.b16 %v5074, %v5066
          %v5491 = vpack.c.b16 %v5075, %v5067
          %v5492 = vpack.c.b16 %v5084, %v5076
          %v5493 = vpack.c.b16 %v5085, %v5077
          %v5494 = vpack.c.b16 %v5086, %v5078
          %v5495 = vpack.c.b16 %v5087, %v5079
          %v5496 = vpack.c.b16 %v5088, %v5080
          %v5497 = vpack.c.b16 %v5089, %v5081
          %v5498 = vpack.c.b16 %v5090, %v5082
          %v5499 = vpack.c.b16 %v5091, %v5083
          %v5500 = vpack.c.b16 %v5100, %v5092
          %v5501 = vpack.c.b16 %v5101, %v5093
          %v5502 = vpack.c.b16 %v5102, %v5094
          %v5503 = vpack.c.b16 %v5103, %v5095
          %v5504 = vpack.c.b16 %v5104, %v5096
          %v5505 = vpack.c.b16 %v5105, %v5097
          %v5506 = vpack.c.b16 %v5106, %v5098
          %v5507 = vpack.c.b16 %v5107, %v5099
          %v5508 = vpack.c.b16 %v5116, %v5108
          %v5509 = vpack.c.b16 %v5117, %v5109
          %v5510 = vpack.c.b16 %v5118, %v5110
          %v5511 = vpack.c.b16 %v5119, %v5111
          %v5512 = vpack.c.b16 %v5120, %v5112
          %v5513 = vpack.c.b16 %v5121, %v5113
          %v5514 = vpack.c.b16 %v5122, %v5114
          %v5515 = vpack.c.b16 %v5123, %v5115
          %v5516 = vpack.c.b16 %v5132, %v5124
          %v5517 = vpack.c.b16 %v5133, %v5125
          %v5518 = vpack.c.b16 %v5134, %v5126
          %v5519 = vpack.c.b16 %v5135, %v5127
          %v5520 = vpack.c.b16 %v5136, %v5128
          %v5521 = vpack.c.b16 %v5137, %v5129
          %v5522 = vpack.c.b16 %v5138, %v5130
          %v5523 = vpack.c.b16 %v5139, %v5131
          %v5524 = vpack.c.b16 %v5148, %v5140
          %v5525 = vpack.c.b16 %v5149, %v5141
          %v5526 = vpack.c.b16 %v5150, %v5142
          %v5527 = vpack.c.b16 %v5151, %v5143
          %v5528 = vpack.c.b16 %v5152, %v5144
          %v5529 = vpack.c.b16 %v5153, %v5145
          %v5530 = vpack.c.b16 %v5154, %v5146
          %v5531 = vpack.c.b16 %v5155, %v5147
          %v5532 = vpack.c.b16 %v5164, %v5156
          %v5533 = vpack.c.b16 %v5165, %v5157
          %v5534 = vpack.c.b16 %v5166, %v5158
          %v5535 = vpack.c.b16 %v5167, %v5159
          %v5536 = vpack.c.b16 %v5168, %v5160
          %v5537 = vpack.c.b16 %v5169, %v5161
          %v5538 = vpack.c.b16 %v5170, %v5162
          %v5539 = vpack.c.b16 %v5171, %v5163
          %v5540 = vpack.c.b16 %v5180, %v5172
          %v5541 = vpack.c.b16 %v5181, %v5173
          %v5542 = vpack.c.b16 %v5182, %v5174
          %v5543 = vpack.c.b16 %v5183, %v5175
          %v5544 = vpack.c.b16 %v5184, %v5176
          %v5545 = vpack.c.b16 %v5185, %v5177
          %v5546 = vpack.c.b16 %v5186, %v5178
          %v5547 = vpack.c.b16 %v5187, %v5179
          %v5548 = vpack.c.b16 %v5196, %v5188
          %v5549 = vpack.c.b16 %v5197, %v5189
          %v5550 = vpack.c.b16 %v5198, %v5190
          %v5551 = vpack.c.b16 %v5199, %v5191
          %v5552 = vpack.c.b16 %v5200, %v5192
          %v5553 = vpack.c.b16 %v5201, %v5193
          %v5554 = vpack.c.b16 %v5202, %v5194
          %v5555 = vpack.c.b16 %v5203, %v5195
          %v5556 = vpack.c.b16 %v5212, %v5204
          %v5557 = vpack.c.b16 %v5213, %v5205
          %v5558 = vpack.c.b16 %v5214, %v5206
          %v5559 = vpack.c.b16 %v5215, %v5207
          %v5560 = vpack.c.b16 %v5216, %v5208
          %v5561 = vpack.c.b16 %v5217, %v5209
          %v5562 = vpack.c.b16 %v5218, %v5210
          %v5563 = vpack.c.b16 %v5219, %v5211
          %v5564 = vpack.c.b16 %v5228, %v5220
          %v5565 = vpack.c.b16 %v5229, %v5221
          %v5566 = vpack.c.b16 %v5230, %v5222
          %v5567 = vpack.c.b16 %v5231, %v5223
          %v5568 = vpack.c.b16 %v5232, %v5224
          %v5569 = vpack.c.b16 %v5233, %v5225
          %v5570 = vpack.c.b16 %v5234, %v5226
          %v5571 = vpack.c.b16 %v5235, %v5227
          %v5572 = vpack.c.b16 %v5244, %v5236
          %v5573 = vpack.c.b16 %v5245, %v5237
          %v5574 = vpack.c.b16 %v5246, %v5238
          %v5575 = vpack.c.b16 %v5247, %v5239
          %v5576 = vpack.c.b16 %v5248, %v5240
          %v5577 = vpack.c.b16 %v5249, %v5241
          %v5578 = vpack.c.b16 %v5250, %v5242
          %v5579 = vpack.c.b16 %v5251, %v5243
          %v5580 = vpack.c.b16 %v5260, %v5252
          %v5581 = vpack.c.b16 %v5261, %v5253
          %v5582 = vpack.c.b16 %v5262, %v5254
          %v5583 = vpack.c.b16 %v5263, %v5255
          %v5584 = vpack.c.b16 %v5264, %v5256
          %v5585 = vpack.c.b16 %v5265, %v5257
          %v5586 = vpack.c.b16 %v5266, %v5258
          %v5587 = vpack.c.b16 %v5267, %v5259
          %v5588 = vpack.c.b16 %v5276, %v5268
          %v5589 = vpack.c.b16 %v5277, %v5269
          %v5590 = vpack.c.b16 %v5278, %v5270
          %v5591 = vpack.c.b16 %v5279, %v5271
          %v5592 = vpack.c.b16 %v5280, %v5272
          %v5593 = vpack.c.b16 %v5281, %v5273
          %v5594 = vpack.c.b16 %v5282, %v5274
          %v5595 = vpack.c.b16 %v5283, %v5275
          %v5596 = vpack.c.b16 %v5292, %v5284
          %v5597 = vpack.c.b16 %v5293, %v5285
          %v5598 = vpack.c.b16 %v5294, %v5286
          %v5599 = vpack.c.b16 %v5295, %v5287
          %v5600 = vpack.c.b16 %v5296, %v5288
          %v5601 = vpack.c.b16 %v5297, %v5289
          %v5602 = vpack.c.b16 %v5298, %v5290
          %v5603 = vpack.c.b16 %v5299, %v5291
          %v5604 = vpack.c.b16 %v5308, %v5300
          %v5605 = vpack.c.b16 %v5309, %v5301
          %v5606 = vpack.c.b16 %v5310, %v5302
          %v5607 = vpack.c.b16 %v5311, %v5303
          %v5608 = vpack.c.b16 %v5312, %v5304
          %v5609 = vpack.c.b16 %v5313, %v5305
          %v5610 = vpack.c.b16 %v5314, %v5306
          %v5611 = vpack.c.b16 %v5315, %v5307
          %v5612 = vpack.c.b16 %v5324, %v5316
          %v5613 = vpack.c.b16 %v5325, %v5317
          %v5614 = vpack.c.b16 %v5326, %v5318
          %v5615 = vpack.c.b16 %v5327, %v5319
          %v5616 = vpack.c.b16 %v5328, %v5320
          %v5617 = vpack.c.b16 %v5329, %v5321
          %v5618 = vpack.c.b16 %v5330, %v5322
          %v5619 = vpack.c.b16 %v5331, %v5323
          %v5620 = vpack.c.b16 %v5340, %v5332
          %v5621 = vpack.c.b16 %v5341, %v5333
          %v5622 = vpack.c.b16 %v5342, %v5334
          %v5623 = vpack.c.b16 %v5343, %v5335
          %v5624 = vpack.c.b16 %v5344, %v5336
          %v5625 = vpack.c.b16 %v5345, %v5337
          %v5626 = vpack.c.b16 %v5346, %v5338
          %v5627 = vpack.c.b16 %v5347, %v5339
          %v5628 = vpack.c.b16 %v5356, %v5348
          %v5629 = vpack.c.b16 %v5357, %v5349
          %v5630 = vpack.c.b16 %v5358, %v5350
          %v5631 = vpack.c.b16 %v5359, %v5351
          %v5632 = vpack.c.b16 %v5360, %v5352
          %v5633 = vpack.c.b16 %v5361, %v5353
          %v5634 = vpack.c.b16 %v5362, %v5354
          %v5635 = vpack.c.b16 %v5363, %v5355
          %v5636 = vpack.c.b16 %v5372, %v5364
          %v5637 = vpack.c.b16 %v5373, %v5365
          %v5638 = vpack.c.b16 %v5374, %v5366
          %v5639 = vpack.c.b16 %v5375, %v5367
          %v5640 = vpack.c.b16 %v5376, %v5368
          %v5641 = vpack.c.b16 %v5377, %v5369
          %v5642 = vpack.c.b16 %v5378, %v5370
          %v5643 = vpack.c.b16 %v5379, %v5371
          %v5644 = vpack.c.b16 %v5388, %v5380
          %v5645 = vpack.c.b16 %v5389, %v5381
          %v5646 = vpack.c.b16 %v5390, %v5382
          %v5647 = vpack.c.b16 %v5391, %v5383
          %v5648 = vpack.c.b16 %v5392, %v5384
          %v5649 = vpack.c.b16 %v5393, %v5385
          %v5650 = vpack.c.b16 %v5394, %v5386
          %v5651 = vpack.c.b16 %v5395, %v5387
          %5908 = vmatprep.subr.bf16.mxu0 %v5453
          %5909 = vmatpush1.bf16.xpose.msra.mxu0 %v5452
          %5910 = vmatprep.subr.bf16.mxu0 %v5445
          %5911 = vmatpush1.bf16.xpose.msra.mxu0 %v5444
          %5912 = vmatprep.subr.bf16.mxu0 %v5437
          %5913 = vmatpush1.bf16.xpose.msra.mxu0 %v5436
          %5914 = vmatprep.subr.bf16.mxu0 %v5429
          %5915 = vmatpush1.bf16.xpose.msra.mxu0 %v5428
          %5916 = vmatprep.subr.bf16.mxu0 %v5421
          %5917 = vmatpush1.bf16.xpose.msra.mxu0 %v5420
          %5918 = vmatprep.subr.bf16.mxu0 %v5413
          %5919 = vmatpush1.bf16.xpose.msra.mxu0 %v5412
          %5920 = vmatprep.subr.bf16.mxu0 %v5405
          %5921 = vmatpush1.bf16.xpose.msra.mxu0 %v5404
          %5922 = vmatprep.subr.bf16.mxu0 %v5397
          %5923 = vmatpush1.bf16.xpose.msra.mxu0 %v5396
          %5924 = vmatprep.subr.bf16.mxu0 %v5517
          %5925 = vmatpush2.bf16.xpose.msra.mxu0 %v5516
          %5926 = vmatprep.subr.bf16.mxu0 %v5509
          %5927 = vmatpush2.bf16.xpose.msra.mxu0 %v5508
          %5928 = vmatprep.subr.bf16.mxu0 %v5501
          %5929 = vmatpush2.bf16.xpose.msra.mxu0 %v5500
          %5930 = vmatprep.subr.bf16.mxu0 %v5493
          %5931 = vmatpush2.bf16.xpose.msra.mxu0 %v5492
          %5932 = vmatprep.subr.bf16.mxu0 %v5485
          %5933 = vmatpush2.bf16.xpose.msra.mxu0 %v5484
          %5934 = vmatprep.subr.bf16.mxu0 %v5477
          %5935 = vmatpush2.bf16.xpose.msra.mxu0 %v5476
          %5936 = vmatprep.subr.bf16.mxu0 %v5469
          %5937 = vmatpush2.bf16.xpose.msra.mxu0 %v5468
          %5938 = vmatprep.subr.bf16.mxu0 %v5461
          %5939 = vmatpush2.bf16.xpose.msra.mxu0 %v5460
          %5940 = vmatprep.mubr.bf16.mxu0 %v4343
          %5941 = vmatmul.mubr.bf16.gmra.mxu0 %v4342
          %v5942 = vpop.f32.mrf.mxu0
          %v5943 = vadd.f32 %v4611, %v5942
          %v5944 = vpop.f32.mrf.mxu0
          %v5945 = vadd.f32 %v4615, %v5944
          %v5946 = vpop.f32.mrf.mxu0
          %v5947 = vpop.f32.mrf.mxu0
          %5948 = vdwg.mxu0
          %5949 = vmatprep.subr.bf16.mxu0 %v5455
          %5950 = vmatpush1.bf16.xpose.msra.mxu0 %v5454
          %5951 = vmatprep.subr.bf16.mxu0 %v5447
          %5952 = vmatpush1.bf16.xpose.msra.mxu0 %v5446
          %5953 = vmatprep.subr.bf16.mxu0 %v5439
          %5954 = vmatpush1.bf16.xpose.msra.mxu0 %v5438
          %5955 = vmatprep.subr.bf16.mxu0 %v5431
          %5956 = vmatpush1.bf16.xpose.msra.mxu0 %v5430
          %5957 = vmatprep.subr.bf16.mxu0 %v5423
          %5958 = vmatpush1.bf16.xpose.msra.mxu0 %v5422
          %5959 = vmatprep.subr.bf16.mxu0 %v5415
          %5960 = vmatpush1.bf16.xpose.msra.mxu0 %v5414
          %5961 = vmatprep.subr.bf16.mxu0 %v5407
          %5962 = vmatpush1.bf16.xpose.msra.mxu0 %v5406
          %5963 = vmatprep.subr.bf16.mxu0 %v5399
          %5964 = vmatpush1.bf16.xpose.msra.mxu0 %v5398
          %5965 = vmatprep.subr.bf16.mxu0 %v5519
          %5966 = vmatpush2.bf16.xpose.msra.mxu0 %v5518
          %5967 = vmatprep.subr.bf16.mxu0 %v5511
          %5968 = vmatpush2.bf16.xpose.msra.mxu0 %v5510
          %5969 = vmatprep.subr.bf16.mxu0 %v5503
          %5970 = vmatpush2.bf16.xpose.msra.mxu0 %v5502
          %5971 = vmatprep.subr.bf16.mxu0 %v5495
          %5972 = vmatpush2.bf16.xpose.msra.mxu0 %v5494
          %5973 = vmatprep.subr.bf16.mxu0 %v5487
          %5974 = vmatpush2.bf16.xpose.msra.mxu0 %v5486
          %5975 = vmatprep.subr.bf16.mxu0 %v5479
          %5976 = vmatpush2.bf16.xpose.msra.mxu0 %v5478
          %5977 = vmatprep.subr.bf16.mxu0 %v5471
          %5978 = vmatpush2.bf16.xpose.msra.mxu0 %v5470
          %5979 = vmatprep.subr.bf16.mxu0 %v5463
          %5980 = vmatpush2.bf16.xpose.msra.mxu0 %v5462
          %5981 = vmatprep.mubr.bf16.mxu0 %v4345
          %5982 = vmatmul.mubr.bf16.gmra.mxu0 %v4344
          %v5983 = vpop.f32.mrf.mxu0
          %v5984 = vadd.f32 %v5943, %v5983
          %v5985 = vpop.f32.mrf.mxu0
          %v5986 = vadd.f32 %v5945, %v5985
          %v5987 = vpop.f32.mrf.mxu0
          %v5988 = vpop.f32.mrf.mxu0
          %5989 = vdwg.mxu0
          %5990 = vmatprep.subr.bf16.mxu0 %v5457
          %5991 = vmatpush1.bf16.xpose.msra.mxu0 %v5456
          %5992 = vmatprep.subr.bf16.mxu0 %v5449
          %5993 = vmatpush1.bf16.xpose.msra.mxu0 %v5448
          %5994 = vmatprep.subr.bf16.mxu0 %v5441
          %5995 = vmatpush1.bf16.xpose.msra.mxu0 %v5440
          %5996 = vmatprep.subr.bf16.mxu0 %v5433
          %5997 = vmatpush1.bf16.xpose.msra.mxu0 %v5432
          %5998 = vmatprep.subr.bf16.mxu0 %v5425
          %5999 = vmatpush1.bf16.xpose.msra.mxu0 %v5424
          %6000 = vmatprep.subr.bf16.mxu0 %v5417
          %6001 = vmatpush1.bf16.xpose.msra.mxu0 %v5416
          %6002 = vmatprep.subr.bf16.mxu0 %v5409
          %6003 = vmatpush1.bf16.xpose.msra.mxu0 %v5408
          %6004 = vmatprep.subr.bf16.mxu0 %v5401
          %6005 = vmatpush1.bf16.xpose.msra.mxu0 %v5400
          %6006 = vmatprep.subr.bf16.mxu0 %v5521
          %6007 = vmatpush2.bf16.xpose.msra.mxu0 %v5520
          %6008 = vmatprep.subr.bf16.mxu0 %v5513
          %6009 = vmatpush2.bf16.xpose.msra.mxu0 %v5512
          %6010 = vmatprep.subr.bf16.mxu0 %v5505
          %6011 = vmatpush2.bf16.xpose.msra.mxu0 %v5504
          %6012 = vmatprep.subr.bf16.mxu0 %v5497
          %6013 = vmatpush2.bf16.xpose.msra.mxu0 %v5496
          %6014 = vmatprep.subr.bf16.mxu0 %v5489
          %6015 = vmatpush2.bf16.xpose.msra.mxu0 %v5488
          %6016 = vmatprep.subr.bf16.mxu0 %v5481
          %6017 = vmatpush2.bf16.xpose.msra.mxu0 %v5480
          %6018 = vmatprep.subr.bf16.mxu0 %v5473
          %6019 = vmatpush2.bf16.xpose.msra.mxu0 %v5472
          %6020 = vmatprep.subr.bf16.mxu0 %v5465
          %6021 = vmatpush2.bf16.xpose.msra.mxu0 %v5464
          %6022 = vmatprep.mubr.bf16.mxu0 %v4347
          %6023 = vmatmul.mubr.bf16.gmra.mxu0 %v4346
          %v6024 = vpop.f32.mrf.mxu0
          %v6025 = vadd.f32 %v5984, %v6024
          %v6026 = vpop.f32.mrf.mxu0
          %v6027 = vadd.f32 %v5986, %v6026
          %v6028 = vpop.f32.mrf.mxu0
          %v6029 = vpop.f32.mrf.mxu0
          %6030 = vdwg.mxu0
          %6031 = vmatprep.subr.bf16.mxu0 %v5459
          %6032 = vmatpush1.bf16.xpose.msra.mxu0 %v5458
          %6033 = vmatprep.subr.bf16.mxu0 %v5451
          %6034 = vmatpush1.bf16.xpose.msra.mxu0 %v5450
          %6035 = vmatprep.subr.bf16.mxu0 %v5443
          %6036 = vmatpush1.bf16.xpose.msra.mxu0 %v5442
          %6037 = vmatprep.subr.bf16.mxu0 %v5435
          %6038 = vmatpush1.bf16.xpose.msra.mxu0 %v5434
          %6039 = vmatprep.subr.bf16.mxu0 %v5427
          %6040 = vmatpush1.bf16.xpose.msra.mxu0 %v5426
          %6041 = vmatprep.subr.bf16.mxu0 %v5419
          %6042 = vmatpush1.bf16.xpose.msra.mxu0 %v5418
          %6043 = vmatprep.subr.bf16.mxu0 %v5411
          %6044 = vmatpush1.bf16.xpose.msra.mxu0 %v5410
          %6045 = vmatprep.subr.bf16.mxu0 %v5403
          %6046 = vmatpush1.bf16.xpose.msra.mxu0 %v5402
          %6047 = vmatprep.subr.bf16.mxu0 %v5523
          %6048 = vmatpush2.bf16.xpose.msra.mxu0 %v5522
          %6049 = vmatprep.subr.bf16.mxu0 %v5515
          %6050 = vmatpush2.bf16.xpose.msra.mxu0 %v5514
          %6051 = vmatprep.subr.bf16.mxu0 %v5507
          %6052 = vmatpush2.bf16.xpose.msra.mxu0 %v5506
          %6053 = vmatprep.subr.bf16.mxu0 %v5499
          %6054 = vmatpush2.bf16.xpose.msra.mxu0 %v5498
          %6055 = vmatprep.subr.bf16.mxu0 %v5491
          %6056 = vmatpush2.bf16.xpose.msra.mxu0 %v5490
          %6057 = vmatprep.subr.bf16.mxu0 %v5483
          %6058 = vmatpush2.bf16.xpose.msra.mxu0 %v5482
          %6059 = vmatprep.subr.bf16.mxu0 %v5475
          %6060 = vmatpush2.bf16.xpose.msra.mxu0 %v5474
          %6061 = vmatprep.subr.bf16.mxu0 %v5467
          %6062 = vmatpush2.bf16.xpose.msra.mxu0 %v5466
          %6063 = vmatprep.mubr.bf16.mxu0 %v4349
          %6064 = vmatmul.mubr.bf16.gmra.mxu0 %v4348
          %v6065 = vpop.f32.mrf.mxu0
          %v6066 = vadd.f32 %v6025, %v6065
          %v6067 = vpop.f32.mrf.mxu0
          %v6068 = vadd.f32 %v6027, %v6067
          %v6069 = vpop.f32.mrf.mxu0
          %v6070 = vpop.f32.mrf.mxu0
          %6071 = vdwg.mxu0
          %6072 = vmatprep.subr.bf16.mxu0 %v5581
          %6073 = vmatpush1.bf16.xpose.msra.mxu0 %v5580
          %6074 = vmatprep.subr.bf16.mxu0 %v5573
          %6075 = vmatpush1.bf16.xpose.msra.mxu0 %v5572
          %6076 = vmatprep.subr.bf16.mxu0 %v5565
          %6077 = vmatpush1.bf16.xpose.msra.mxu0 %v5564
          %6078 = vmatprep.subr.bf16.mxu0 %v5557
          %6079 = vmatpush1.bf16.xpose.msra.mxu0 %v5556
          %6080 = vmatprep.subr.bf16.mxu0 %v5549
          %6081 = vmatpush1.bf16.xpose.msra.mxu0 %v5548
          %6082 = vmatprep.subr.bf16.mxu0 %v5541
          %6083 = vmatpush1.bf16.xpose.msra.mxu0 %v5540
          %6084 = vmatprep.subr.bf16.mxu0 %v5533
          %6085 = vmatpush1.bf16.xpose.msra.mxu0 %v5532
          %6086 = vmatprep.subr.bf16.mxu0 %v5525
          %6087 = vmatpush1.bf16.xpose.msra.mxu0 %v5524
          %6088 = vmatprep.subr.bf16.mxu0 %v5645
          %6089 = vmatpush2.bf16.xpose.msra.mxu0 %v5644
          %6090 = vmatprep.subr.bf16.mxu0 %v5637
          %6091 = vmatpush2.bf16.xpose.msra.mxu0 %v5636
          %6092 = vmatprep.subr.bf16.mxu0 %v5629
          %6093 = vmatpush2.bf16.xpose.msra.mxu0 %v5628
          %6094 = vmatprep.subr.bf16.mxu0 %v5621
          %6095 = vmatpush2.bf16.xpose.msra.mxu0 %v5620
          %6096 = vmatprep.subr.bf16.mxu0 %v5613
          %6097 = vmatpush2.bf16.xpose.msra.mxu0 %v5612
          %6098 = vmatprep.subr.bf16.mxu0 %v5605
          %6099 = vmatpush2.bf16.xpose.msra.mxu0 %v5604
          %6100 = vmatprep.subr.bf16.mxu0 %v5597
          %6101 = vmatpush2.bf16.xpose.msra.mxu0 %v5596
          %6102 = vmatprep.subr.bf16.mxu0 %v5589
          %6103 = vmatpush2.bf16.xpose.msra.mxu0 %v5588
          %6104 = vmatprep.mubr.bf16.mxu0 %v4343
          %6105 = vmatmul.mubr.bf16.gmra.mxu0 %v4342
          %v6106 = vpop.f32.mrf.mxu0
          %v6107 = vadd.f32 %v4619, %v6106
          %v6108 = vpop.f32.mrf.mxu0
          %v6109 = vadd.f32 %v4623, %v6108
          %v6110 = vpop.f32.mrf.mxu0
          %v6111 = vpop.f32.mrf.mxu0
          %6112 = vdwg.mxu0
          %6113 = vmatprep.subr.bf16.mxu0 %v5583
          %6114 = vmatpush1.bf16.xpose.msra.mxu0 %v5582
          %6115 = vmatprep.subr.bf16.mxu0 %v5575
          %6116 = vmatpush1.bf16.xpose.msra.mxu0 %v5574
          %6117 = vmatprep.subr.bf16.mxu0 %v5567
          %6118 = vmatpush1.bf16.xpose.msra.mxu0 %v5566
          %6119 = vmatprep.subr.bf16.mxu0 %v5559
          %6120 = vmatpush1.bf16.xpose.msra.mxu0 %v5558
          %6121 = vmatprep.subr.bf16.mxu0 %v5551
          %6122 = vmatpush1.bf16.xpose.msra.mxu0 %v5550
          %6123 = vmatprep.subr.bf16.mxu0 %v5543
          %6124 = vmatpush1.bf16.xpose.msra.mxu0 %v5542
          %6125 = vmatprep.subr.bf16.mxu0 %v5535
          %6126 = vmatpush1.bf16.xpose.msra.mxu0 %v5534
          %6127 = vmatprep.subr.bf16.mxu0 %v5527
          %6128 = vmatpush1.bf16.xpose.msra.mxu0 %v5526
          %6129 = vmatprep.subr.bf16.mxu0 %v5647
          %6130 = vmatpush2.bf16.xpose.msra.mxu0 %v5646
          %6131 = vmatprep.subr.bf16.mxu0 %v5639
          %6132 = vmatpush2.bf16.xpose.msra.mxu0 %v5638
          %6133 = vmatprep.subr.bf16.mxu0 %v5631
          %6134 = vmatpush2.bf16.xpose.msra.mxu0 %v5630
          %6135 = vmatprep.subr.bf16.mxu0 %v5623
          %6136 = vmatpush2.bf16.xpose.msra.mxu0 %v5622
          %6137 = vmatprep.subr.bf16.mxu0 %v5615
          %6138 = vmatpush2.bf16.xpose.msra.mxu0 %v5614
          %6139 = vmatprep.subr.bf16.mxu0 %v5607
          %6140 = vmatpush2.bf16.xpose.msra.mxu0 %v5606
          %6141 = vmatprep.subr.bf16.mxu0 %v5599
          %6142 = vmatpush2.bf16.xpose.msra.mxu0 %v5598
          %6143 = vmatprep.subr.bf16.mxu0 %v5591
          %6144 = vmatpush2.bf16.xpose.msra.mxu0 %v5590
          %6145 = vmatprep.mubr.bf16.mxu0 %v4345
          %6146 = vmatmul.mubr.bf16.gmra.mxu0 %v4344
          %v6147 = vpop.f32.mrf.mxu0
          %v6148 = vadd.f32 %v6107, %v6147
          %v6149 = vpop.f32.mrf.mxu0
          %v6150 = vadd.f32 %v6109, %v6149
          %v6151 = vpop.f32.mrf.mxu0
          %v6152 = vpop.f32.mrf.mxu0
          %6153 = vdwg.mxu0
          %6154 = vmatprep.subr.bf16.mxu0 %v5585
          %6155 = vmatpush1.bf16.xpose.msra.mxu0 %v5584
          %6156 = vmatprep.subr.bf16.mxu0 %v5577
          %6157 = vmatpush1.bf16.xpose.msra.mxu0 %v5576
          %6158 = vmatprep.subr.bf16.mxu0 %v5569
          %6159 = vmatpush1.bf16.xpose.msra.mxu0 %v5568
          %6160 = vmatprep.subr.bf16.mxu0 %v5561
          %6161 = vmatpush1.bf16.xpose.msra.mxu0 %v5560
          %6162 = vmatprep.subr.bf16.mxu0 %v5553
          %6163 = vmatpush1.bf16.xpose.msra.mxu0 %v5552
          %6164 = vmatprep.subr.bf16.mxu0 %v5545
          %6165 = vmatpush1.bf16.xpose.msra.mxu0 %v5544
          %6166 = vmatprep.subr.bf16.mxu0 %v5537
          %6167 = vmatpush1.bf16.xpose.msra.mxu0 %v5536
          %6168 = vmatprep.subr.bf16.mxu0 %v5529
          %6169 = vmatpush1.bf16.xpose.msra.mxu0 %v5528
          %6170 = vmatprep.subr.bf16.mxu0 %v5649
          %6171 = vmatpush2.bf16.xpose.msra.mxu0 %v5648
          %6172 = vmatprep.subr.bf16.mxu0 %v5641
          %6173 = vmatpush2.bf16.xpose.msra.mxu0 %v5640
          %6174 = vmatprep.subr.bf16.mxu0 %v5633
          %6175 = vmatpush2.bf16.xpose.msra.mxu0 %v5632
          %6176 = vmatprep.subr.bf16.mxu0 %v5625
          %6177 = vmatpush2.bf16.xpose.msra.mxu0 %v5624
          %6178 = vmatprep.subr.bf16.mxu0 %v5617
          %6179 = vmatpush2.bf16.xpose.msra.mxu0 %v5616
          %6180 = vmatprep.subr.bf16.mxu0 %v5609
          %6181 = vmatpush2.bf16.xpose.msra.mxu0 %v5608
          %6182 = vmatprep.subr.bf16.mxu0 %v5601
          %6183 = vmatpush2.bf16.xpose.msra.mxu0 %v5600
          %6184 = vmatprep.subr.bf16.mxu0 %v5593
          %6185 = vmatpush2.bf16.xpose.msra.mxu0 %v5592
          %6186 = vmatprep.mubr.bf16.mxu0 %v4347
          %6187 = vmatmul.mubr.bf16.gmra.mxu0 %v4346
          %v6188 = vpop.f32.mrf.mxu0
          %v6189 = vadd.f32 %v6148, %v6188
          %v6190 = vpop.f32.mrf.mxu0
          %v6191 = vadd.f32 %v6150, %v6190
          %v6192 = vpop.f32.mrf.mxu0
          %v6193 = vpop.f32.mrf.mxu0
          %6194 = vdwg.mxu0
          %6195 = vmatprep.subr.bf16.mxu0 %v5587
          %6196 = vmatpush1.bf16.xpose.msra.mxu0 %v5586
          %6197 = vmatprep.subr.bf16.mxu0 %v5579
          %6198 = vmatpush1.bf16.xpose.msra.mxu0 %v5578
          %6199 = vmatprep.subr.bf16.mxu0 %v5571
          %6200 = vmatpush1.bf16.xpose.msra.mxu0 %v5570
          %6201 = vmatprep.subr.bf16.mxu0 %v5563
          %6202 = vmatpush1.bf16.xpose.msra.mxu0 %v5562
          %6203 = vmatprep.subr.bf16.mxu0 %v5555
          %6204 = vmatpush1.bf16.xpose.msra.mxu0 %v5554
          %6205 = vmatprep.subr.bf16.mxu0 %v5547
          %6206 = vmatpush1.bf16.xpose.msra.mxu0 %v5546
          %6207 = vmatprep.subr.bf16.mxu0 %v5539
          %6208 = vmatpush1.bf16.xpose.msra.mxu0 %v5538
          %6209 = vmatprep.subr.bf16.mxu0 %v5531
          %6210 = vmatpush1.bf16.xpose.msra.mxu0 %v5530
          %6211 = vmatprep.subr.bf16.mxu0 %v5651
          %6212 = vmatpush2.bf16.xpose.msra.mxu0 %v5650
          %6213 = vmatprep.subr.bf16.mxu0 %v5643
          %6214 = vmatpush2.bf16.xpose.msra.mxu0 %v5642
          %6215 = vmatprep.subr.bf16.mxu0 %v5635
          %6216 = vmatpush2.bf16.xpose.msra.mxu0 %v5634
          %6217 = vmatprep.subr.bf16.mxu0 %v5627
          %6218 = vmatpush2.bf16.xpose.msra.mxu0 %v5626
          %6219 = vmatprep.subr.bf16.mxu0 %v5619
          %6220 = vmatpush2.bf16.xpose.msra.mxu0 %v5618
          %6221 = vmatprep.subr.bf16.mxu0 %v5611
          %6222 = vmatpush2.bf16.xpose.msra.mxu0 %v5610
          %6223 = vmatprep.subr.bf16.mxu0 %v5603
          %6224 = vmatpush2.bf16.xpose.msra.mxu0 %v5602
          %6225 = vmatprep.subr.bf16.mxu0 %v5595
          %6226 = vmatpush2.bf16.xpose.msra.mxu0 %v5594
          %6227 = vmatprep.mubr.bf16.mxu0 %v4349
          %6228 = vmatmul.mubr.bf16.gmra.mxu0 %v4348
          %v6229 = vpop.f32.mrf.mxu0
          %v6230 = vadd.f32 %v6189, %v6229
          %v6231 = vpop.f32.mrf.mxu0
          %v6232 = vadd.f32 %v6191, %v6231
          %v6233 = vpop.f32.mrf.mxu0
          %v6234 = vpop.f32.mrf.mxu0
          %6235 = vdwg.mxu0
          %vm6236 = vcmp.gt.f32.partialorder %v6066, 0.0
          %vm6237 = vcmp.gt.f32.partialorder %v6068, 0.0
          %vm6238 = vcmp.gt.f32.partialorder %v6230, 0.0
          %vm6239 = vcmp.gt.f32.partialorder %v6232, 0.0
          %v6240 = vmul.f32 %v6066, 0.01
          %v6241 = vmul.f32 %v6068, 0.01
          %v6242 = vmul.f32 %v6230, 0.01
          %v6243 = vmul.f32 %v6232, 0.01
          %v6244 = vsel %vm6236, %v6066, %v6240
          %v6245 = vsel %vm6237, %v6068, %v6241
          %v6246 = vsel %vm6238, %v6230, %v6242
          %v6247 = vsel %vm6239, %v6232, %v6243
          %v6248 = vpack.c.bf16 %v6244, %v6244
          %v6249 = vpack.c.bf16 %v6245, %v6245
          %v6250 = vpack.c.bf16 %v6246, %v6246
          %v6251 = vpack.c.bf16 %v6247, %v6247
          %v6252 = vld [vmem:[#allocation11] sm:$0xf]
          %v6253 = vld [vmem:[#allocation12] sm:$0x1]
          %v6255 = vlaneseq
          %v6256 = vshrl.u32 %v6255, 7
          %v6257 = vsub.s32 0, %v6256
          %v6258 = vrot.slane %v6253, %v6257
          %v6262 = vunpack.c.l.s4 1966171168
          %v6263 = vunpack.c.0.s8 %v6262
          %v6264 = vlaneseq
          %v6265 = vshrl.u32 %v6264, 7
          %v6266 = vsub.s32 %v6263, %v6265
          %v6267 = vrot.slane %v6252, %v6266
          %v6268 = vcombine.high %v6267, %v6267
          %v6270 = vunpack.c.l.s4 1966171168
          %v6271 = vunpack.c.0.s8 %v6270
          %v6272 = vlaneseq
          %v6273 = vshrl.u32 %v6272, 7
          %v6274 = vsub.s32 %v6271, %v6273
          %v6275 = vrot.slane %v6267, %v6274
          %v6277 = vunpack.c.l.s4 1966171168
          %v6278 = vunpack.c.0.s8 %v6277
          %v6279 = vlaneseq
          %v6280 = vshrl.u32 %v6279, 7
          %v6281 = vsub.s32 %v6278, %v6280
          %v6282 = vrot.slane %v6268, %v6281
          %v6283 = vcombine.high %v6275, %v6275
          %v6284 = vcombine.high %v6282, %v6282
          %6289 = vmatprep.subr.bf16.mxu0 0
          %6290 = vmatpush1.bf16.xpose.msra.mxu0 0
          %6291 = vmatprep.subr.bf16.mxu0 0
          %6292 = vmatpush1.bf16.xpose.msra.mxu0 0
          %6293 = vmatprep.subr.bf16.mxu0 0
          %6294 = vmatpush1.bf16.xpose.msra.mxu0 0
          %6295 = vmatprep.subr.bf16.mxu0 0
          %6296 = vmatpush1.bf16.xpose.msra.mxu0 0
          %6297 = vmatprep.subr.bf16.mxu0 0
          %6298 = vmatpush1.bf16.xpose.msra.mxu0 0
          %6299 = vmatprep.subr.bf16.mxu0 0
          %6300 = vmatpush1.bf16.xpose.msra.mxu0 0
          %6301 = vmatprep.subr.bf16.mxu0 0
          %6302 = vmatpush1.bf16.xpose.msra.mxu0 0
          %6303 = vmatprep.subr.bf16.mxu0 %v6282
          %6304 = vmatpush1.bf16.xpose.msra.mxu0 %v6275
          %6305 = vmatprep.subr.bf16.mxu0 0
          %6306 = vmatpush2.bf16.xpose.msra.mxu0 0
          %6307 = vmatprep.subr.bf16.mxu0 0
          %6308 = vmatpush2.bf16.xpose.msra.mxu0 0
          %6309 = vmatprep.subr.bf16.mxu0 0
          %6310 = vmatpush2.bf16.xpose.msra.mxu0 0
          %6311 = vmatprep.subr.bf16.mxu0 0
          %6312 = vmatpush2.bf16.xpose.msra.mxu0 0
          %6313 = vmatprep.subr.bf16.mxu0 0
          %6314 = vmatpush2.bf16.xpose.msra.mxu0 0
          %6315 = vmatprep.subr.bf16.mxu0 0
          %6316 = vmatpush2.bf16.xpose.msra.mxu0 0
          %6317 = vmatprep.subr.bf16.mxu0 0
          %6318 = vmatpush2.bf16.xpose.msra.mxu0 0
          %6319 = vmatprep.subr.bf16.mxu0 0
          %6320 = vmatpush2.bf16.xpose.msra.mxu0 0
          %6321 = vmatprep.mubr.bf16.mxu0 %v6249
          %6322 = vmatmul.mubr.bf16.gmra.mxu0 %v6248
          %v6323 = vpop.f32.mrf.mxu0
          %v6324 = vadd.f32 %v6258, %v6323
          %v6325 = vpop.f32.mrf.mxu0
          %v6326 = vpop.f32.mrf.mxu0
          %v6327 = vpop.f32.mrf.mxu0
          %6328 = vdwg.mxu0
          %6329 = vmatprep.subr.bf16.mxu0 0
          %6330 = vmatpush1.bf16.xpose.msra.mxu0 0
          %6331 = vmatprep.subr.bf16.mxu0 0
          %6332 = vmatpush1.bf16.xpose.msra.mxu0 0
          %6333 = vmatprep.subr.bf16.mxu0 0
          %6334 = vmatpush1.bf16.xpose.msra.mxu0 0
          %6335 = vmatprep.subr.bf16.mxu0 0
          %6336 = vmatpush1.bf16.xpose.msra.mxu0 0
          %6337 = vmatprep.subr.bf16.mxu0 0
          %6338 = vmatpush1.bf16.xpose.msra.mxu0 0
          %6339 = vmatprep.subr.bf16.mxu0 0
          %6340 = vmatpush1.bf16.xpose.msra.mxu0 0
          %6341 = vmatprep.subr.bf16.mxu0 0
          %6342 = vmatpush1.bf16.xpose.msra.mxu0 0
          %6343 = vmatprep.subr.bf16.mxu0 %v6284
          %6344 = vmatpush1.bf16.xpose.msra.mxu0 %v6283
          %6345 = vmatprep.subr.bf16.mxu0 0
          %6346 = vmatpush2.bf16.xpose.msra.mxu0 0
          %6347 = vmatprep.subr.bf16.mxu0 0
          %6348 = vmatpush2.bf16.xpose.msra.mxu0 0
          %6349 = vmatprep.subr.bf16.mxu0 0
          %6350 = vmatpush2.bf16.xpose.msra.mxu0 0
          %6351 = vmatprep.subr.bf16.mxu0 0
          %6352 = vmatpush2.bf16.xpose.msra.mxu0 0
          %6353 = vmatprep.subr.bf16.mxu0 0
          %6354 = vmatpush2.bf16.xpose.msra.mxu0 0
          %6355 = vmatprep.subr.bf16.mxu0 0
          %6356 = vmatpush2.bf16.xpose.msra.mxu0 0
          %6357 = vmatprep.subr.bf16.mxu0 0
          %6358 = vmatpush2.bf16.xpose.msra.mxu0 0
          %6359 = vmatprep.subr.bf16.mxu0 0
          %6360 = vmatpush2.bf16.xpose.msra.mxu0 0
          %6361 = vmatprep.mubr.bf16.mxu0 %v6251
          %6362 = vmatmul.mubr.bf16.gmra.mxu0 %v6250
          %v6363 = vpop.f32.mrf.mxu0
          %v6364 = vadd.f32 %v6324, %v6363
          %v6365 = vpop.f32.mrf.mxu0
          %v6366 = vpop.f32.mrf.mxu0
          %v6367 = vpop.f32.mrf.mxu0
          %6368 = vdwg.mxu0
          %vm6369 = vcmp.gt.f32.partialorder %v6364, 0.0
          %v6370 = vmul.f32 %v6364, 0.01
          %v6371 = vsel %vm6369, %v6364, %v6370
          %vm6372 = vcmask 9216
          %6373 = vst.msk [vmem:[#allocation14] sm:$0x3] %vm6372, %v6371
        $region80: #{mycnn_forward.3} parent=47 // pred_fallthru
          _
        // Predicated region
        $region81: #{mycnn_forward.3} parent=47 // pred_check
          %p6374 = pneg %p195
        $region82: #{mycnn_forward.3} parent=47 // pred_check_branch
          %6376 = sbr.rel (%p6374) target = $region84
        $region83: #{mycnn_forward.3} parent=47 // pred_region
          %s6378 = ssub.s32 32, 32
          %6379 = vsyncadd [#allocation5], %s6378
          %s6381 = sshll.u32 [#allocation14], 4
          %s6382 = int_to_ptr.vmem [resolvable:$true] %s6381
          %6384 = dma.vmem_to_hbm [thread:$0]  %s6382, 32, %s7, [#allocation5]
        $region84: #{mycnn_forward.3} parent=47 // pred_fallthru
          _
        // Predicated region
        $region85: #{mycnn_forward.3} parent=47 // pred_check
          %p6385 = pneg %p195
        $region86: #{mycnn_forward.3} parent=47 // pred_check_branch
          %6387 = sbr.rel (%p6385) target = $region88
        $region87: #{mycnn_forward.3} parent=47 // pred_region
          %6388 = dma.done [#allocation5], 32
        $region88: #{mycnn_forward.3} parent=47 // pred_fallthru
          _
      $region48: #{mycnn_forward.3} parent=5 // pred_fallthru
        _
      %p6389 = scmp.le.s32.totalorder 2, %s20
      // Predicated region
      $region89: #{mycnn_forward.3} parent=5 // pred_check
        %p6390 = pneg %p6389
      $region90: #{mycnn_forward.3} parent=5 // pred_check_branch
        %6392 = sbr.rel (%p6390) target = $region92
      $region91: #{mycnn_forward.3} parent=5 // pred_region
        %s6393 = ssub.s32 %s20, 2
      $region92: #{mycnn_forward.3} parent=5 // pred_fallthru
        _
    $region6: #{mycnn_forward.3} parent=1 // loop_footer
      %s24 = sadd.s32 1, %s20
    $region7: #{mycnn_forward.3} parent=1 // loop_footer_branch
      %19 = sbr.rel target = $region3
    $region8: #{mycnn_forward.3} parent=1 // loop_exit
      _
    %6394 = vsyncpa [#allocation4], 1
    %s6395 = scalar_lea.sflag [#allocation4], 1
    %6396 = vsyncpa %s6395, 1
    %6397 = vsyncpa [#allocation7], 1
    %6398 = vsyncpa [#allocation10], 1
    %6399 = vsyncpa [#allocation13], 1
    %6400 = vsyncpa [#allocation5], 1
    %s6401 = scalar_lea.sflag [#allocation5], 1
    %6402 = vsyncpa %s6401, 1

</llo_original>
